<compile_context>
chip_gen: v7x
topology: tpu7x:2x2x1
jax: 0.10.0
libtpu: 0.0.40
codegen_flags: <defaults>
</compile_context>

<pallas_src>
import functools
import math

import jax
import jax.numpy as jnp
from jax.experimental import pallas as pl
from jax.experimental.pallas import tpu as pltpu


def _round_up(a, m):
    return ((a + m - 1) // m) * m


# ------------------------- tiled linear (matmul + bias) -------------------------

def _linear_kernel(x_ref, w_ref, b_ref, o_ref, acc_ref):
    @pl.when(pl.program_id(2) == 0)
    def _():
        acc_ref[...] = jnp.zeros_like(acc_ref)

    acc_ref[...] += jnp.dot(x_ref[...], w_ref[...],
                            preferred_element_type=jnp.float32)

    @pl.when(pl.program_id(2) == pl.num_programs(2) - 1)
    def _():
        o_ref[...] = (acc_ref[...] + b_ref[...].astype(jnp.float32)).astype(o_ref.dtype)


def pallas_linear(x, w, b, *, tm=256, tn=256, tk=512):
    """x: (M, K), w: (K, N), b: (1, N) -> (M, N).  Tiled, K-reduction accumulator."""
    M, K = x.shape
    N = w.shape[1]
    TM = M if M <= tm else tm          # 256: multiple of 8  (MXU-friendly)
    TK = K if K <= tk else tk          # 512: multiple of 128
    TN = N if N <= tn else tn          # 256: multiple of 128 (lane-dense stores)
    Mp, Kp, Np = _round_up(M, TM), _round_up(K, TK), _round_up(N, TN)

    xp = x if (Mp, Kp) == (M, K) else jnp.pad(x, ((0, Mp - M), (0, Kp - K)))
    wp = w if (Kp, Np) == (K, N) else jnp.pad(w, ((0, Kp - K), (0, Np - N)))
    bp = b if Np == N else jnp.pad(b, ((0, 0), (0, Np - N)))

    out = pl.pallas_call(
        _linear_kernel,
        out_shape=jax.ShapeDtypeStruct((Mp, Np), x.dtype),
        grid_spec=pltpu.PrefetchScalarGridSpec(
            num_scalar_prefetch=0,
            grid=(Mp // TM, Np // TN, Kp // TK),
            in_specs=[
                pl.BlockSpec((TM, TK), lambda i, j, k: (i, k)),
                pl.BlockSpec((TK, TN), lambda i, j, k: (k, j)),
                pl.BlockSpec((1, TN), lambda i, j, k: (0, j)),
            ],
            out_specs=pl.BlockSpec((TM, TN), lambda i, j, k: (i, j)),
            scratch_shapes=[pltpu.VMEM((TM, TN), jnp.float32)],
        ),
        compiler_params=pltpu.CompilerParams(
            dimension_semantics=("parallel", "parallel", "arbitrary"),
            vmem_limit_bytes=32 * 1024 * 1024,
        ),
    )(xp, wp, bp)

    if (Mp, Np) != (M, N):
        out = out[:M, :N]
    return out


# -------------- flash attention (heads batched, KV-blocked online softmax) --------------

def _attn_kernel(q_ref, k_ref, v_ref, o_ref, m_sc, l_sc, acc_sc,
                 *, kv_len, block_kv, masked):
    j = pl.program_id(2)

    @pl.when(j == 0)
    def _():
        m_sc[...] = jnp.full_like(m_sc, -jnp.inf)
        l_sc[...] = jnp.zeros_like(l_sc)
        acc_sc[...] = jnp.zeros_like(acc_sc)

    q = q_ref[0]                                     # (TQ, H, hd)
    k = k_ref[0]                                     # (TK, H, hd)
    v = v_ref[0]                                     # (TK, H, hd)
    scale = 1.0 / math.sqrt(q.shape[-1])

    # scores: contract hd, batch over heads -> (H, TQ, TK); no explicit K transpose.
    s = jax.lax.dot_general(
        q, k, (((2,), (2,)), ((1,), (1,))),
        preferred_element_type=jnp.float32) * scale

    if masked:  # static: only emitted when the KV length was padded
        kpos = j * block_kv + jax.lax.broadcasted_iota(jnp.int32, (1, 1, block_kv), 2)
        s = jnp.where(kpos < kv_len, s, jnp.float32(-1e30))

    m_prev = m_sc[...]
    m_new = jnp.maximum(m_prev, jnp.max(s, axis=-1, keepdims=True))
    alpha = jnp.exp(m_prev - m_new)
    p = jnp.exp(s - m_new)                           # (H, TQ, TK), f32
    l_sc[...] = alpha * l_sc[...] + jnp.sum(p, axis=-1, keepdims=True)

    # p @ v: contract TK, batch over heads -> (H, TQ, hd)
    pv = jax.lax.dot_general(
        p.astype(v.dtype), v, (((2,), (0,)), ((0,), (1,))),
        preferred_element_type=jnp.float32)
    acc_sc[...] = alpha * acc_sc[...] + pv
    m_sc[...] = m_new

    @pl.when(j == pl.num_programs(2) - 1)
    def _():
        out = acc_sc[...] * pl.reciprocal(l_sc[...], approx=True)   # (H, TQ, hd)
        num_heads = out.shape[0]
        for h in range(num_heads):   # static unroll: write merged-head (seq, H, hd) layout
            o_ref[0, :, h, :] = out[h].astype(o_ref.dtype)


def _attn_tiles(sy, sx, h, hd, itemsize, budget=24 * 1024 * 1024):
    tq = min(256, sy)
    tk = min(256, sx)

    def footprint(a, b):
        io = (2 * a + 2 * b) * h * hd * itemsize   # q, o, k, v blocks
        scratch = h * a * (hd + 2) * 4             # acc + m + l (f32)
        return 2 * io + scratch                    # double-buffered pipeline

    while footprint(tq, tk) > budget and max(tq, tk) > 64:
        if tk >= tq:
            tk = max(64, tk // 2)
        else:
            tq = max(64, tq // 2)
    return tq, tk


def pallas_attention(q, k, v):
    """q: (B, Sy, H, hd), k/v: (B, Sx, H, hd) -> (B, Sy, H, hd) (merged-head layout)."""
    B, Sy, H, hd = q.shape
    Sx = k.shape[1]
    TQ, TK = _attn_tiles(Sy, Sx, H, hd, jnp.dtype(q.dtype).itemsize)
    Syp, Sxp = _round_up(Sy, TQ), _round_up(Sx, TK)

    if Syp != Sy:
        q = jnp.pad(q, ((0, 0), (0, Syp - Sy), (0, 0), (0, 0)))
    if Sxp != Sx:
        k = jnp.pad(k, ((0, 0), (0, Sxp - Sx), (0, 0), (0, 0)))
        v = jnp.pad(v, ((0, 0), (0, Sxp - Sx), (0, 0), (0, 0)))

    kernel = functools.partial(_attn_kernel, kv_len=Sx, block_kv=TK,
                               masked=(Sxp != Sx))

    out = pl.pallas_call(
        kernel,
        out_shape=jax.ShapeDtypeStruct((B, Syp, H, hd), q.dtype),
        grid_spec=pltpu.PrefetchScalarGridSpec(
            num_scalar_prefetch=0,
            grid=(B, Syp // TQ, Sxp // TK),
            in_specs=[
                pl.BlockSpec((1, TQ, H, hd), lambda b, i, j: (b, i, 0, 0)),
                pl.BlockSpec((1, TK, H, hd), lambda b, i, j: (b, j, 0, 0)),
                pl.BlockSpec((1, TK, H, hd), lambda b, i, j: (b, j, 0, 0)),
            ],
            out_specs=pl.BlockSpec((1, TQ, H, hd), lambda b, i, j: (b, i, 0, 0)),
            scratch_shapes=[
                pltpu.VMEM((H, TQ, 1), jnp.float32),    # running max
                pltpu.VMEM((H, TQ, 1), jnp.float32),    # running denom
                pltpu.VMEM((H, TQ, hd), jnp.float32),   # running output acc
            ],
        ),
        compiler_params=pltpu.CompilerParams(
            dimension_semantics=("parallel", "parallel", "arbitrary"),
            vmem_limit_bytes=32 * 1024 * 1024,
        ),
    )(q, k, v)

    if Syp != Sy:
        out = out[:, :Sy]
    return out


# --------------------------- params & module forward -------------------------------

def init_params(key, embedding_size):
    """Deterministic init mirroring nn.Linear shapes (stored as (in, out))."""
    E = embedding_size
    ks = jax.random.split(key, 6)
    bound = 1.0 / math.sqrt(E)
    w_kv = jax.random.uniform(ks[0], (E, 2 * E), jnp.float32, -bound, bound)
    b_kv = jax.random.uniform(ks[1], (1, 2 * E), jnp.float32, -bound, bound)
    w_q = jax.random.uniform(ks[2], (E, E), jnp.float32, -bound, bound)
    b_q = jax.random.uniform(ks[3], (1, E), jnp.float32, -bound, bound)
    w_out = jax.random.uniform(ks[4], (E, E), jnp.float32, -bound, bound)
    b_out = jax.random.uniform(ks[5], (1, E), jnp.float32, -bound, bound)
    return dict(w_kv=w_kv, b_kv=b_kv, w_q=w_q, b_q=b_q, w_out=w_out, b_out=b_out)


def prepare_params(params, num_heads):
    """One-time column permutation of the kv projection so K columns come first
    (head-major) and V columns second.  This lets the K/V split after the fused kv
    projection happen at the 128-aligned column boundary (kv[:, :E] / kv[:, E:])
    instead of per-head sub-128-lane slices + HBM transposes."""
    E = params["w_q"].shape[0]
    hd = E // num_heads
    cols = jnp.arange(2 * E).reshape(num_heads, 2, hd)
    perm = jnp.concatenate([cols[:, 0, :].reshape(-1), cols[:, 1, :].reshape(-1)])
    return dict(
        w_kv=params["w_kv"][:, perm], b_kv=params["b_kv"][:, perm],
        w_q=params["w_q"], b_q=params["b_q"],
        w_out=params["w_out"], b_out=params["b_out"],
    )


def multi_head_cross_attention(x, y, prepared, num_heads):
    """x: (B, Sx, E) encoder output (provides K, V); y: (B, Sy, E) provides Q."""
    # TODO(synk): optional padding `mask` and attention dropout not implemented
    #             (example forward uses mask=None / eval mode).
    B, Sx, E = x.shape
    _, Sy, _ = y.shape
    H = num_heads
    hd = E // H

    kv = pallas_linear(x.reshape(B * Sx, E), prepared["w_kv"], prepared["b_kv"])  # (B*Sx, 2E)
    q = pallas_linear(y.reshape(B * Sy, E), prepared["w_q"], prepared["b_q"])     # (B*Sy, E)

    # contiguous reshapes only (no transposes between pallas_calls)
    k = kv[:, :E].reshape(B, Sx, H, hd)
    v = kv[:, E:].reshape(B, Sx, H, hd)
    qh = q.reshape(B, Sy, H, hd)

    out = pallas_attention(qh, k, v)                 # (B, Sy, H, hd), merged-head layout
    out = pallas_linear(out.reshape(B * Sy, E), prepared["w_out"], prepared["b_out"])
    return out.reshape(B, Sy, E)


# ------------------------------- reference --------------------------------

def reference_forward(x, y, params, num_heads):
    B, Sx, E = x.shape
    _, Sy, _ = y.shape
    H, hd = num_heads, E // num_heads
    kv = x.reshape(B * Sx, E) @ params["w_kv"] + params["b_kv"]
    q = y.reshape(B * Sy, E) @ params["w_q"] + params["b_q"]
    kv = kv.reshape(B, Sx, H, 2 * hd).transpose(0, 2, 1, 3)
    k, v = kv[..., :hd], kv[..., hd:]
    q = q.reshape(B, Sy, H, hd).transpose(0, 2, 1, 3)
    s = jnp.einsum("bhqd,bhkd->bhqk", q, k) / math.sqrt(hd)
    a = jax.nn.softmax(s, axis=-1)
    o = jnp.einsum("bhqk,bhkd->bhqd", a, v)
    o = o.transpose(0, 2, 1, 3).reshape(B * Sy, E)
    return (o @ params["w_out"] + params["b_out"]).reshape(B, Sy, E)


if __name__ == "__main__":
    B, Sx, Sy, E, H = 2, 8, 8, 32, 4

    key = jax.random.PRNGKey(0)
    kx, ky, kp = jax.random.split(key, 3)
    x = jax.random.normal(kx, (B, Sx, E), jnp.float32)   # encoder output (K, V source)
    y = jax.random.normal(ky, (B, Sy, E), jnp.float32)   # decoder input (Q source)
    params = init_params(kp, E)
    prepared = prepare_params(params, H)

    fwd = jax.jit(multi_head_cross_attention, static_argnums=(3,))

    # f32 correctness check against the plain-JAX reference
    out = jax.block_until_ready(fwd(x, y, prepared, H))
    ref = reference_forward(x, y, params, H)
    assert out.shape == (B, Sy, E)
    assert jnp.allclose(out, ref, atol=5e-3, rtol=5e-3), "mismatch vs reference"

    # bf16 path (MXU-rate dtype, f32 accumulation): shape / finiteness smoke check
    xb, yb = x.astype(jnp.bfloat16), y.astype(jnp.bfloat16)
    pb = jax.tree_util.tree_map(lambda a: a.astype(jnp.bfloat16), prepared)
    outb = jax.block_until_ready(fwd(xb, yb, pb, H))
    assert outb.shape == (B, Sy, E)
    assert bool(jnp.all(jnp.isfinite(outb.astype(jnp.float32))))

    print("KERNEL_OK")
</pallas_src>

<mosaic_0001>
module attributes {stable_mosaic.version = 11 : i64} {
  func.func @_linear_kernel(%arg0: i32, %arg1: i32, %arg2: i32, %arg3: memref<16x32xf32, #tpu.memory_space<vmem>>, %arg4: memref<32x32xf32, #tpu.memory_space<vmem>>, %arg5: memref<1x32xf32, #tpu.memory_space<vmem>>, %arg6: memref<16x32xf32, #tpu.memory_space<vmem>>, %arg7: memref<16x32xf32, #tpu.memory_space<vmem>>) attributes {dimension_semantics = [#tpu.dimension_semantics<parallel>, #tpu.dimension_semantics<parallel>, #tpu.dimension_semantics<arbitrary>], iteration_bounds = array<i64: 1, 1, 1>, scalar_prefetch = 0 : i64, scratch_operands = 1 : i64, tpu.core_type = #tpu.core_type<tc>, window_params = [{transform_indices = @transform_0, window_bounds = array<i64: 16, 32>}, {transform_indices = @transform_1, window_bounds = array<i64: 32, 32>}, {transform_indices = @transform_2, window_bounds = array<i64: 1, 32>}, {transform_indices = @transform_3, window_bounds = array<i64: 16, 32>}]} {
    %c0_i32 = arith.constant 0 : i32
    %0 = arith.cmpi eq, %arg2, %c0_i32 : i32
    %1 = arith.extui %0 : i1 to i32
    %c0_i32_0 = arith.constant 0 : i32
    %2 = arith.cmpi ne, %1, %c0_i32_0 : i32
    scf.if %2 {
      %cst_10 = arith.constant 0.000000e+00 : f32
      %12 = vector.broadcast %cst_10 : f32 to vector<16x32xf32>
      %c0_11 = arith.constant 0 : index
      %c0_12 = arith.constant 0 : index
      %13 = vector.load %arg7[%c0_11, %c0_12] : memref<16x32xf32, #tpu.memory_space<vmem>>, vector<16x32xf32>
      tpu.vector_store %arg7[%c0_11, %c0_12], %12 {strides = array<i32>} : memref<16x32xf32, #tpu.memory_space<vmem>>, vector<16x32xf32>,
    } else {
    }
    %c0 = arith.constant 0 : index
    %c0_1 = arith.constant 0 : index
    %3 = vector.load %arg7[%c0, %c0_1] : memref<16x32xf32, #tpu.memory_space<vmem>>, vector<16x32xf32>
    %c0_2 = arith.constant 0 : index
    %c0_3 = arith.constant 0 : index
    %4 = vector.load %arg3[%c0_2, %c0_3] : memref<16x32xf32, #tpu.memory_space<vmem>>, vector<16x32xf32>
    %c0_4 = arith.constant 0 : index
    %c0_5 = arith.constant 0 : index
    %5 = vector.load %arg4[%c0_4, %c0_5] : memref<32x32xf32, #tpu.memory_space<vmem>>, vector<32x32xf32>
    %cst = arith.constant dense<0.000000e+00> : vector<16x32xf32>
    %6 = tpu.matmul %4, %5, %cst {dimension_numbers = #tpu.dot_dimension_numbers<[1], [0], [0], [1], [0, 0, 1, 1], [], []>} : vector<16x32xf32>, vector<32x32xf32>, vector<16x32xf32> -> vector<16x32xf32>
    %7 = arith.addf %3, %6 : vector<16x32xf32>
    %c0_6 = arith.constant 0 : index
    %c0_7 = arith.constant 0 : index
    %8 = vector.load %arg7[%c0_6, %c0_7] : memref<16x32xf32, #tpu.memory_space<vmem>>, vector<16x32xf32>
    tpu.vector_store %arg7[%c0_6, %c0_7], %7 {strides = array<i32>} : memref<16x32xf32, #tpu.memory_space<vmem>>, vector<16x32xf32>,
    %c0_i32_8 = arith.constant 0 : i32
    %9 = arith.cmpi eq, %arg2, %c0_i32_8 : i32
    %10 = arith.extui %9 : i1 to i32
    %c0_i32_9 = arith.constant 0 : i32
    %11 = arith.cmpi ne, %10, %c0_i32_9 : i32
    scf.if %11 {
      %c0_10 = arith.constant 0 : index
      %c0_11 = arith.constant 0 : index
      %12 = vector.load %arg7[%c0_10, %c0_11] : memref<16x32xf32, #tpu.memory_space<vmem>>, vector<16x32xf32>
      %c0_12 = arith.constant 0 : index
      %c0_13 = arith.constant 0 : index
      %13 = vector.load %arg5[%c0_12, %c0_13] : memref<1x32xf32, #tpu.memory_space<vmem>>, vector<1x32xf32>
      %14 = vector.broadcast %13 : vector<1x32xf32> to vector<16x32xf32>
      %15 = arith.addf %12, %14 : vector<16x32xf32>
      %c0_14 = arith.constant 0 : index
      %c0_15 = arith.constant 0 : index
      %16 = vector.load %arg6[%c0_14, %c0_15] : memref<16x32xf32, #tpu.memory_space<vmem>>, vector<16x32xf32>
      tpu.vector_store %arg6[%c0_14, %c0_15], %15 {strides = array<i32>} : memref<16x32xf32, #tpu.memory_space<vmem>>, vector<16x32xf32>,
    } else {
    }
    return
  }
  func.func @transform_0(%arg0: i32, %arg1: i32, %arg2: i32) -> (i32, i32) {
    %c0_i32 = arith.constant 0 : i32
    return %arg0, %arg2 : i32, i32
  }
  func.func @transform_1(%arg0: i32, %arg1: i32, %arg2: i32) -> (i32, i32) {
    %c0_i32 = arith.constant 0 : i32
    return %arg2, %arg1 : i32, i32
  }
  func.func @transform_2(%arg0: i32, %arg1: i32, %arg2: i32) -> (i32, i32) {
    %c0_i32 = arith.constant 0 : i32
    %c0_i32_0 = arith.constant 0 : i32
    return %c0_i32, %arg1 : i32, i32
  }
  func.func @transform_3(%arg0: i32, %arg1: i32, %arg2: i32) -> (i32, i32) {
    %c0_i32 = arith.constant 0 : i32
    return %arg0, %arg1 : i32, i32
  }
}

module attributes {stable_mosaic.version = 11 : i64} {
  func.func @_linear_kernel(%arg0: i32, %arg1: i32, %arg2: i32, %arg3: memref<16x32xf32, #tpu.memory_space<vmem>>, %arg4: memref<32x64xf32, #tpu.memory_space<vmem>>, %arg5: memref<1x64xf32, #tpu.memory_space<vmem>>, %arg6: memref<16x64xf32, #tpu.memory_space<vmem>>, %arg7: memref<16x64xf32, #tpu.memory_space<vmem>>) attributes {dimension_semantics = [#tpu.dimension_semantics<parallel>, #tpu.dimension_semantics<parallel>, #tpu.dimension_semantics<arbitrary>], iteration_bounds = array<i64: 1, 1, 1>, scalar_prefetch = 0 : i64, scratch_operands = 1 : i64, tpu.core_type = #tpu.core_type<tc>, window_params = [{transform_indices = @transform_0, window_bounds = array<i64: 16, 32>}, {transform_indices = @transform_1, window_bounds = array<i64: 32, 64>}, {transform_indices = @transform_2, window_bounds = array<i64: 1, 64>}, {transform_indices = @transform_3, window_bounds = array<i64: 16, 64>}]} {
    %c0_i32 = arith.constant 0 : i32
    %0 = arith.cmpi eq, %arg2, %c0_i32 : i32
    %1 = arith.extui %0 : i1 to i32
    %c0_i32_0 = arith.constant 0 : i32
    %2 = arith.cmpi ne, %1, %c0_i32_0 : i32
    scf.if %2 {
      %cst_10 = arith.constant 0.000000e+00 : f32
      %12 = vector.broadcast %cst_10 : f32 to vector<16x64xf32>
      %c0_11 = arith.constant 0 : index
      %c0_12 = arith.constant 0 : index
      %13 = vector.load %arg7[%c0_11, %c0_12] : memref<16x64xf32, #tpu.memory_space<vmem>>, vector<16x64xf32>
      tpu.vector_store %arg7[%c0_11, %c0_12], %12 {strides = array<i32>} : memref<16x64xf32, #tpu.memory_space<vmem>>, vector<16x64xf32>,
    } else {
    }
    %c0 = arith.constant 0 : index
    %c0_1 = arith.constant 0 : index
    %3 = vector.load %arg7[%c0, %c0_1] : memref<16x64xf32, #tpu.memory_space<vmem>>, vector<16x64xf32>
    %c0_2 = arith.constant 0 : index
    %c0_3 = arith.constant 0 : index
    %4 = vector.load %arg3[%c0_2, %c0_3] : memref<16x32xf32, #tpu.memory_space<vmem>>, vector<16x32xf32>
    %c0_4 = arith.constant 0 : index
    %c0_5 = arith.constant 0 : index
    %5 = vector.load %arg4[%c0_4, %c0_5] : memref<32x64xf32, #tpu.memory_space<vmem>>, vector<32x64xf32>
    %cst = arith.constant dense<0.000000e+00> : vector<16x64xf32>
    %6 = tpu.matmul %4, %5, %cst {dimension_numbers = #tpu.dot_dimension_numbers<[1], [0], [0], [1], [0, 0, 1, 1], [], []>} : vector<16x32xf32>, vector<32x64xf32>, vector<16x64xf32> -> vector<16x64xf32>
    %7 = arith.addf %3, %6 : vector<16x64xf32>
    %c0_6 = arith.constant 0 : index
    %c0_7 = arith.constant 0 : index
    %8 = vector.load %arg7[%c0_6, %c0_7] : memref<16x64xf32, #tpu.memory_space<vmem>>, vector<16x64xf32>
    tpu.vector_store %arg7[%c0_6, %c0_7], %7 {strides = array<i32>} : memref<16x64xf32, #tpu.memory_space<vmem>>, vector<16x64xf32>,
    %c0_i32_8 = arith.constant 0 : i32
    %9 = arith.cmpi eq, %arg2, %c0_i32_8 : i32
    %10 = arith.extui %9 : i1 to i32
    %c0_i32_9 = arith.constant 0 : i32
    %11 = arith.cmpi ne, %10, %c0_i32_9 : i32
    scf.if %11 {
      %c0_10 = arith.constant 0 : index
      %c0_11 = arith.constant 0 : index
      %12 = vector.load %arg7[%c0_10, %c0_11] : memref<16x64xf32, #tpu.memory_space<vmem>>, vector<16x64xf32>
      %c0_12 = arith.constant 0 : index
      %c0_13 = arith.constant 0 : index
      %13 = vector.load %arg5[%c0_12, %c0_13] : memref<1x64xf32, #tpu.memory_space<vmem>>, vector<1x64xf32>
      %14 = vector.broadcast %13 : vector<1x64xf32> to vector<16x64xf32>
      %15 = arith.addf %12, %14 : vector<16x64xf32>
      %c0_14 = arith.constant 0 : index
      %c0_15 = arith.constant 0 : index
      %16 = vector.load %arg6[%c0_14, %c0_15] : memref<16x64xf32, #tpu.memory_space<vmem>>, vector<16x64xf32>
      tpu.vector_store %arg6[%c0_14, %c0_15], %15 {strides = array<i32>} : memref<16x64xf32, #tpu.memory_space<vmem>>, vector<16x64xf32>,
    } else {
    }
    return
  }
  func.func @transform_0(%arg0: i32, %arg1: i32, %arg2: i32) -> (i32, i32) {
    %c0_i32 = arith.constant 0 : i32
    return %arg0, %arg2 : i32, i32
  }
  func.func @transform_1(%arg0: i32, %arg1: i32, %arg2: i32) -> (i32, i32) {
    %c0_i32 = arith.constant 0 : i32
    return %arg2, %arg1 : i32, i32
  }
  func.func @transform_2(%arg0: i32, %arg1: i32, %arg2: i32) -> (i32, i32) {
    %c0_i32 = arith.constant 0 : i32
    %c0_i32_0 = arith.constant 0 : i32
    return %c0_i32, %arg1 : i32, i32
  }
  func.func @transform_3(%arg0: i32, %arg1: i32, %arg2: i32) -> (i32, i32) {
    %c0_i32 = arith.constant 0 : i32
    return %arg0, %arg1 : i32, i32
  }
}

module attributes {stable_mosaic.version = 11 : i64} {
  func.func @_attn_kernel(%arg0: i32, %arg1: i32, %arg2: i32, %arg3: memref<1x8x4x8xf32, #tpu.memory_space<vmem>>, %arg4: memref<1x8x4x8xf32, #tpu.memory_space<vmem>>, %arg5: memref<1x8x4x8xf32, #tpu.memory_space<vmem>>, %arg6: memref<1x8x4x8xf32, #tpu.memory_space<vmem>>, %arg7: memref<4x8x1xf32, #tpu.memory_space<vmem>>, %arg8: memref<4x8x1xf32, #tpu.memory_space<vmem>>, %arg9: memref<4x8x8xf32, #tpu.memory_space<vmem>>) attributes {dimension_semantics = [#tpu.dimension_semantics<parallel>, #tpu.dimension_semantics<parallel>, #tpu.dimension_semantics<arbitrary>], iteration_bounds = array<i64: 2, 1, 1>, scalar_prefetch = 0 : i64, scratch_operands = 3 : i64, tpu.core_type = #tpu.core_type<tc>, window_params = [{transform_indices = @transform_0, window_bounds = array<i64: 1, 8, 4, 8>}, {transform_indices = @transform_1, window_bounds = array<i64: 1, 8, 4, 8>}, {transform_indices = @transform_2, window_bounds = array<i64: 1, 8, 4, 8>}, {transform_indices = @transform_3, window_bounds = array<i64: 1, 8, 4, 8>}]} {
    %c0_i32 = arith.constant 0 : i32
    %0 = arith.cmpi eq, %arg2, %c0_i32 : i32
    %1 = arith.extui %0 : i1 to i32
    %c0_i32_0 = arith.constant 0 : i32
    %2 = arith.cmpi ne, %1, %c0_i32_0 : i32
    scf.if %2 {
      %cst_36 = arith.constant 0xFF800000 : f32
      %37 = vector.broadcast %cst_36 : f32 to vector<4x8x1xf32>
      %c0_37 = arith.constant 0 : index
      %c0_38 = arith.constant 0 : index
      %c0_39 = arith.constant 0 : index
      %38 = vector.load %arg7[%c0_37, %c0_38, %c0_39] : memref<4x8x1xf32, #tpu.memory_space<vmem>>, vector<4x8x1xf32>
      tpu.vector_store %arg7[%c0_37, %c0_38, %c0_39], %37 {strides = array<i32>} : memref<4x8x1xf32, #tpu.memory_space<vmem>>, vector<4x8x1xf32>,
      %cst_40 = arith.constant 0.000000e+00 : f32
      %39 = vector.broadcast %cst_40 : f32 to vector<4x8x1xf32>
      %c0_41 = arith.constant 0 : index
      %c0_42 = arith.constant 0 : index
      %c0_43 = arith.constant 0 : index
      %40 = vector.load %arg8[%c0_41, %c0_42, %c0_43] : memref<4x8x1xf32, #tpu.memory_space<vmem>>, vector<4x8x1xf32>
      tpu.vector_store %arg8[%c0_41, %c0_42, %c0_43], %39 {strides = array<i32>} : memref<4x8x1xf32, #tpu.memory_space<vmem>>, vector<4x8x1xf32>,
      %cst_44 = arith.constant 0.000000e+00 : f32
      %41 = vector.broadcast %cst_44 : f32 to vector<4x8x8xf32>
      %c0_45 = arith.constant 0 : index
      %c0_46 = arith.constant 0 : index
      %c0_47 = arith.constant 0 : index
      %42 = vector.load %arg9[%c0_45, %c0_46, %c0_47] : memref<4x8x8xf32, #tpu.memory_space<vmem>>, vector<4x8x8xf32>
      tpu.vector_store %arg9[%c0_45, %c0_46, %c0_47], %41 {strides = array<i32>} : memref<4x8x8xf32, #tpu.memory_space<vmem>>, vector<4x8x8xf32>,
    } else {
    }
    %c0 = arith.constant 0 : index
    %c0_1 = arith.constant 0 : index
    %c0_2 = arith.constant 0 : index
    %c0_3 = arith.constant 0 : index
    %3 = vector.load %arg3[%c0, %c0_1, %c0_2, %c0_3] : memref<1x8x4x8xf32, #tpu.memory_space<vmem>>, vector<1x8x4x8xf32>
    %4 = vector.shape_cast %3 : vector<1x8x4x8xf32> to vector<8x4x8xf32>
    %c0_4 = arith.constant 0 : index
    %c0_5 = arith.constant 0 : index
    %c0_6 = arith.constant 0 : index
    %c0_7 = arith.constant 0 : index
    %5 = vector.load %arg4[%c0_4, %c0_5, %c0_6, %c0_7] : memref<1x8x4x8xf32, #tpu.memory_space<vmem>>, vector<1x8x4x8xf32>
    %6 = vector.shape_cast %5 : vector<1x8x4x8xf32> to vector<8x4x8xf32>
    %c0_8 = arith.constant 0 : index
    %c0_9 = arith.constant 0 : index
    %c0_10 = arith.constant 0 : index
    %c0_11 = arith.constant 0 : index
    %7 = vector.load %arg5[%c0_8, %c0_9, %c0_10, %c0_11] : memref<1x8x4x8xf32, #tpu.memory_space<vmem>>, vector<1x8x4x8xf32>
    %8 = vector.shape_cast %7 : vector<1x8x4x8xf32> to vector<8x4x8xf32>
    %cst = arith.constant dense<0.000000e+00> : vector<4x8x8xf32>
    %9 = tpu.matmul %4, %6, %cst {dimension_numbers = #tpu.dot_dimension_numbers<[2], [2], [0], [0], [0, 1, 0, 0, 1, 0], [1], [1]>} : vector<8x4x8xf32>, vector<8x4x8xf32>, vector<4x8x8xf32> -> vector<4x8x8xf32>
    %cst_12 = arith.constant 0.353553385 : f32
    %10 = vector.broadcast %cst_12 : f32 to vector<4x8x8xf32>
    %11 = arith.mulf %9, %10 : vector<4x8x8xf32>
    %c0_13 = arith.constant 0 : index
    %c0_14 = arith.constant 0 : index
    %c0_15 = arith.constant 0 : index
    %12 = vector.load %arg7[%c0_13, %c0_14, %c0_15] : memref<4x8x1xf32, #tpu.memory_space<vmem>>, vector<4x8x1xf32>
    %cst_16 = arith.constant dense<0xFF800000> : vector<4x8xf32>
    %13 = vector.multi_reduction <maximumf>, %11, %cst_16 [2] : vector<4x8x8xf32> to vector<4x8xf32>
    %14 = vector.shape_cast %13 : vector<4x8xf32> to vector<4x8x1xf32>
    %15 = arith.maximumf %12, %14 : vector<4x8x1xf32>
    %16 = arith.subf %12, %15 : vector<4x8x1xf32>
    %17 = math.exp %16 : vector<4x8x1xf32>
    %18 = vector.broadcast %15 : vector<4x8x1xf32> to vector<4x8x8xf32>
    %19 = arith.subf %11, %18 : vector<4x8x8xf32>
    %20 = math.exp %19 : vector<4x8x8xf32>
    %c0_17 = arith.constant 0 : index
    %c0_18 = arith.constant 0 : index
    %c0_19 = arith.constant 0 : index
    %21 = vector.load %arg8[%c0_17, %c0_18, %c0_19] : memref<4x8x1xf32, #tpu.memory_space<vmem>>, vector<4x8x1xf32>
    %22 = arith.mulf %17, %21 : vector<4x8x1xf32>
    %cst_20 = arith.constant dense<0.000000e+00> : vector<4x8xf32>
    %23 = vector.multi_reduction <add>, %20, %cst_20 [2] : vector<4x8x8xf32> to vector<4x8xf32>
    %24 = vector.shape_cast %23 : vector<4x8xf32> to vector<4x8x1xf32>
    %25 = arith.addf %22, %24 : vector<4x8x1xf32>
    %c0_21 = arith.constant 0 : index
    %c0_22 = arith.constant 0 : index
    %c0_23 = arith.constant 0 : index
    %26 = vector.load %arg8[%c0_21, %c0_22, %c0_23] : memref<4x8x1xf32, #tpu.memory_space<vmem>>, vector<4x8x1xf32>
    tpu.vector_store %arg8[%c0_21, %c0_22, %c0_23], %25 {strides = array<i32>} : memref<4x8x1xf32, #tpu.memory_space<vmem>>, vector<4x8x1xf32>,
    %cst_24 = arith.constant dense<0.000000e+00> : vector<4x8x8xf32>
    %27 = tpu.matmul %20, %8, %cst_24 {dimension_numbers = #tpu.dot_dimension_numbers<[2], [0], [1], [2], [0, 0, 0, 1, 1, 2], [0], [1]>} : vector<4x8x8xf32>, vector<8x4x8xf32>, vector<4x8x8xf32> -> vector<4x8x8xf32>
    %c0_25 = arith.constant 0 : index
    %c0_26 = arith.constant 0 : index
    %c0_27 = arith.constant 0 : index
    %28 = vector.load %arg9[%c0_25, %c0_26, %c0_27] : memref<4x8x8xf32, #tpu.memory_space<vmem>>, vector<4x8x8xf32>
    %29 = vector.broadcast %17 : vector<4x8x1xf32> to vector<4x8x8xf32>
    %30 = arith.mulf %29, %28 : vector<4x8x8xf32>
    %31 = arith.addf %30, %27 : vector<4x8x8xf32>
    %c0_28 = arith.constant 0 : index
    %c0_29 = arith.constant 0 : index
    %c0_30 = arith.constant 0 : index
    %32 = vector.load %arg9[%c0_28, %c0_29, %c0_30] : memref<4x8x8xf32, #tpu.memory_space<vmem>>, vector<4x8x8xf32>
    tpu.vector_store %arg9[%c0_28, %c0_29, %c0_30], %31 {strides = array<i32>} : memref<4x8x8xf32, #tpu.memory_space<vmem>>, vector<4x8x8xf32>,
    %c0_31 = arith.constant 0 : index
    %c0_32 = arith.constant 0 : index
    %c0_33 = arith.constant 0 : index
    %33 = vector.load %arg7[%c0_31, %c0_32, %c0_33] : memref<4x8x1xf32, #tpu.memory_space<vmem>>, vector<4x8x1xf32>
    tpu.vector_store %arg7[%c0_31, %c0_32, %c0_33], %15 {strides = array<i32>} : memref<4x8x1xf32, #tpu.memory_space<vmem>>, vector<4x8x1xf32>,
    %c0_i32_34 = arith.constant 0 : i32
    %34 = arith.cmpi eq, %arg2, %c0_i32_34 : i32
    %35 = arith.extui %34 : i1 to i32
    %c0_i32_35 = arith.constant 0 : i32
    %36 = arith.cmpi ne, %35, %c0_i32_35 : i32
    scf.if %36 {
      %c0_36 = arith.constant 0 : index
      %c0_37 = arith.constant 0 : index
      %c0_38 = arith.constant 0 : index
      %37 = vector.load %arg9[%c0_36, %c0_37, %c0_38] : memref<4x8x8xf32, #tpu.memory_space<vmem>>, vector<4x8x8xf32>
      %c0_39 = arith.constant 0 : index
      %c0_40 = arith.constant 0 : index
      %c0_41 = arith.constant 0 : index
      %38 = vector.load %arg8[%c0_39, %c0_40, %c0_41] : memref<4x8x1xf32, #tpu.memory_space<vmem>>, vector<4x8x1xf32>
      %39 = tpu.reciprocal %38 {approx = true} : vector<4x8x1xf32> -> vector<4x8x1xf32>
      %40 = vector.broadcast %39 : vector<4x8x1xf32> to vector<4x8x8xf32>
      %41 = arith.mulf %37, %40 : vector<4x8x8xf32>
      %42 = vector.extract_strided_slice %41 {offsets = [0, 0, 0], sizes = [1, 8, 8], strides = [1, 1, 1]} : vector<4x8x8xf32> to vector<1x8x8xf32>
      %43 = vector.shape_cast %42 : vector<1x8x8xf32> to vector<8x8xf32>
      %c0_42 = arith.constant 0 : index
      %c0_43 = arith.constant 0 : index
      %c0_44 = arith.constant 0 : index
      %c0_45 = arith.constant 0 : index
      %44 = vector.load %arg6[%c0_42, %c0_43, %c0_44, %c0_45] : memref<1x8x4x8xf32, #tpu.memory_space<vmem>>, vector<1x8x1x8xf32>
      %45 = vector.shape_cast %44 : vector<1x8x1x8xf32> to vector<8x8xf32>
      %46 = vector.shape_cast %43 : vector<8x8xf32> to vector<1x8x1x8xf32>
      tpu.vector_store %arg6[%c0_42, %c0_43, %c0_44, %c0_45], %46 {strides = array<i32>} : memref<1x8x4x8xf32, #tpu.memory_space<vmem>>, vector<1x8x1x8xf32>,
      %47 = vector.extract_strided_slice %41 {offsets = [1, 0, 0], sizes = [1, 8, 8], strides = [1, 1, 1]} : vector<4x8x8xf32> to vector<1x8x8xf32>
      %48 = vector.shape_cast %47 : vector<1x8x8xf32> to vector<8x8xf32>
      %c0_46 = arith.constant 0 : index
      %c0_47 = arith.constant 0 : index
      %c1 = arith.constant 1 : index
      %c0_48 = arith.constant 0 : index
      %49 = vector.load %arg6[%c0_46, %c0_47, %c1, %c0_48] : memref<1x8x4x8xf32, #tpu.memory_space<vmem>>, vector<1x8x1x8xf32>
      %50 = vector.shape_cast %49 : vector<1x8x1x8xf32> to vector<8x8xf32>
      %51 = vector.shape_cast %48 : vector<8x8xf32> to vector<1x8x1x8xf32>
      tpu.vector_store %arg6[%c0_46, %c0_47, %c1, %c0_48], %51 {strides = array<i32>} : memref<1x8x4x8xf32, #tpu.memory_space<vmem>>, vector<1x8x1x8xf32>,
      %52 = vector.extract_strided_slice %41 {offsets = [2, 0, 0], sizes = [1, 8, 8], strides = [1, 1, 1]} : vector<4x8x8xf32> to vector<1x8x8xf32>
      %53 = vector.shape_cast %52 : vector<1x8x8xf32> to vector<8x8xf32>
      %c0_49 = arith.constant 0 : index
      %c0_50 = arith.constant 0 : index
      %c2 = arith.constant 2 : index
      %c0_51 = arith.constant 0 : index
      %54 = vector.load %arg6[%c0_49, %c0_50, %c2, %c0_51] : memref<1x8x4x8xf32, #tpu.memory_space<vmem>>, vector<1x8x1x8xf32>
      %55 = vector.shape_cast %54 : vector<1x8x1x8xf32> to vector<8x8xf32>
      %56 = vector.shape_cast %53 : vector<8x8xf32> to vector<1x8x1x8xf32>
      tpu.vector_store %arg6[%c0_49, %c0_50, %c2, %c0_51], %56 {strides = array<i32>} : memref<1x8x4x8xf32, #tpu.memory_space<vmem>>, vector<1x8x1x8xf32>,
      %57 = vector.extract_strided_slice %41 {offsets = [3, 0, 0], sizes = [1, 8, 8], strides = [1, 1, 1]} : vector<4x8x8xf32> to vector<1x8x8xf32>
      %58 = vector.shape_cast %57 : vector<1x8x8xf32> to vector<8x8xf32>
      %c0_52 = arith.constant 0 : index
      %c0_53 = arith.constant 0 : index
      %c3 = arith.constant 3 : index
      %c0_54 = arith.constant 0 : index
      %59 = vector.load %arg6[%c0_52, %c0_53, %c3, %c0_54] : memref<1x8x4x8xf32, #tpu.memory_space<vmem>>, vector<1x8x1x8xf32>
      %60 = vector.shape_cast %59 : vector<1x8x1x8xf32> to vector<8x8xf32>
      %61 = vector.shape_cast %58 : vector<8x8xf32> to vector<1x8x1x8xf32>
      tpu.vector_store %arg6[%c0_52, %c0_53, %c3, %c0_54], %61 {strides = array<i32>} : memref<1x8x4x8xf32, #tpu.memory_space<vmem>>, vector<1x8x1x8xf32>,
    } else {
    }
    return
  }
  func.func @transform_0(%arg0: i32, %arg1: i32, %arg2: i32) -> (i32, i32, i32, i32) {
    %c0_i32 = arith.constant 0 : i32
    %c0_i32_0 = arith.constant 0 : i32
    %c0_i32_1 = arith.constant 0 : i32
    return %arg0, %arg1, %c0_i32, %c0_i32_0 : i32, i32, i32, i32
  }
  func.func @transform_1(%arg0: i32, %arg1: i32, %arg2: i32) -> (i32, i32, i32, i32) {
    %c0_i32 = arith.constant 0 : i32
    %c0_i32_0 = arith.constant 0 : i32
    %c0_i32_1 = arith.constant 0 : i32
    return %arg0, %arg2, %c0_i32, %c0_i32_0 : i32, i32, i32, i32
  }
  func.func @transform_2(%arg0: i32, %arg1: i32, %arg2: i32) -> (i32, i32, i32, i32) {
    %c0_i32 = arith.constant 0 : i32
    %c0_i32_0 = arith.constant 0 : i32
    %c0_i32_1 = arith.constant 0 : i32
    return %arg0, %arg2, %c0_i32, %c0_i32_0 : i32, i32, i32, i32
  }
  func.func @transform_3(%arg0: i32, %arg1: i32, %arg2: i32) -> (i32, i32, i32, i32) {
    %c0_i32 = arith.constant 0 : i32
    %c0_i32_0 = arith.constant 0 : i32
    %c0_i32_1 = arith.constant 0 : i32
    return %arg0, %arg1, %c0_i32, %c0_i32_0 : i32, i32, i32, i32
  }
}

module attributes {stable_mosaic.version = 11 : i64} {
  func.func @_linear_kernel(%arg0: i32, %arg1: i32, %arg2: i32, %arg3: memref<16x32xf32, #tpu.memory_space<vmem>>, %arg4: memref<32x32xf32, #tpu.memory_space<vmem>>, %arg5: memref<1x32xf32, #tpu.memory_space<vmem>>, %arg6: memref<16x32xf32, #tpu.memory_space<vmem>>, %arg7: memref<16x32xf32, #tpu.memory_space<vmem>>) attributes {dimension_semantics = [#tpu.dimension_semantics<parallel>, #tpu.dimension_semantics<parallel>, #tpu.dimension_semantics<arbitrary>], iteration_bounds = array<i64: 1, 1, 1>, scalar_prefetch = 0 : i64, scratch_operands = 1 : i64, tpu.core_type = #tpu.core_type<tc>, window_params = [{transform_indices = @transform_0, window_bounds = array<i64: 16, 32>}, {transform_indices = @transform_1, window_bounds = array<i64: 32, 32>}, {transform_indices = @transform_2, window_bounds = array<i64: 1, 32>}, {transform_indices = @transform_3, window_bounds = array<i64: 16, 32>}]} {
    %c0_i32 = arith.constant 0 : i32
    %0 = arith.cmpi eq, %arg2, %c0_i32 : i32
    %1 = arith.extui %0 : i1 to i32
    %c0_i32_0 = arith.constant 0 : i32
    %2 = arith.cmpi ne, %1, %c0_i32_0 : i32
    scf.if %2 {
      %cst_10 = arith.constant 0.000000e+00 : f32
      %12 = vector.broadcast %cst_10 : f32 to vector<16x32xf32>
      %c0_11 = arith.constant 0 : index
      %c0_12 = arith.constant 0 : index
      %13 = vector.load %arg7[%c0_11, %c0_12] : memref<16x32xf32, #tpu.memory_space<vmem>>, vector<16x32xf32>
      tpu.vector_store %arg7[%c0_11, %c0_12], %12 {strides = array<i32>} : memref<16x32xf32, #tpu.memory_space<vmem>>, vector<16x32xf32>,
    } else {
    }
    %c0 = arith.constant 0 : index
    %c0_1 = arith.constant 0 : index
    %3 = vector.load %arg7[%c0, %c0_1] : memref<16x32xf32, #tpu.memory_space<vmem>>, vector<16x32xf32>
    %c0_2 = arith.constant 0 : index
    %c0_3 = arith.constant 0 : index
    %4 = vector.load %arg3[%c0_2, %c0_3] : memref<16x32xf32, #tpu.memory_space<vmem>>, vector<16x32xf32>
    %c0_4 = arith.constant 0 : index
    %c0_5 = arith.constant 0 : index
    %5 = vector.load %arg4[%c0_4, %c0_5] : memref<32x32xf32, #tpu.memory_space<vmem>>, vector<32x32xf32>
    %cst = arith.constant dense<0.000000e+00> : vector<16x32xf32>
    %6 = tpu.matmul %4, %5, %cst {dimension_numbers = #tpu.dot_dimension_numbers<[1], [0], [0], [1], [0, 0, 1, 1], [], []>} : vector<16x32xf32>, vector<32x32xf32>, vector<16x32xf32> -> vector<16x32xf32>
    %7 = arith.addf %3, %6 : vector<16x32xf32>
    %c0_6 = arith.constant 0 : index
    %c0_7 = arith.constant 0 : index
    %8 = vector.load %arg7[%c0_6, %c0_7] : memref<16x32xf32, #tpu.memory_space<vmem>>, vector<16x32xf32>
    tpu.vector_store %arg7[%c0_6, %c0_7], %7 {strides = array<i32>} : memref<16x32xf32, #tpu.memory_space<vmem>>, vector<16x32xf32>,
    %c0_i32_8 = arith.constant 0 : i32
    %9 = arith.cmpi eq, %arg2, %c0_i32_8 : i32
    %10 = arith.extui %9 : i1 to i32
    %c0_i32_9 = arith.constant 0 : i32
    %11 = arith.cmpi ne, %10, %c0_i32_9 : i32
    scf.if %11 {
      %c0_10 = arith.constant 0 : index
      %c0_11 = arith.constant 0 : index
      %12 = vector.load %arg7[%c0_10, %c0_11] : memref<16x32xf32, #tpu.memory_space<vmem>>, vector<16x32xf32>
      %c0_12 = arith.constant 0 : index
      %c0_13 = arith.constant 0 : index
      %13 = vector.load %arg5[%c0_12, %c0_13] : memref<1x32xf32, #tpu.memory_space<vmem>>, vector<1x32xf32>
      %14 = vector.broadcast %13 : vector<1x32xf32> to vector<16x32xf32>
      %15 = arith.addf %12, %14 : vector<16x32xf32>
      %c0_14 = arith.constant 0 : index
      %c0_15 = arith.constant 0 : index
      %16 = vector.load %arg6[%c0_14, %c0_15] : memref<16x32xf32, #tpu.memory_space<vmem>>, vector<16x32xf32>
      tpu.vector_store %arg6[%c0_14, %c0_15], %15 {strides = array<i32>} : memref<16x32xf32, #tpu.memory_space<vmem>>, vector<16x32xf32>,
    } else {
    }
    return
  }
  func.func @transform_0(%arg0: i32, %arg1: i32, %arg2: i32) -> (i32, i32) {
    %c0_i32 = arith.constant 0 : i32
    return %arg0, %arg2 : i32, i32
  }
  func.func @transform_1(%arg0: i32, %arg1: i32, %arg2: i32) -> (i32, i32) {
    %c0_i32 = arith.constant 0 : i32
    return %arg2, %arg1 : i32, i32
  }
  func.func @transform_2(%arg0: i32, %arg1: i32, %arg2: i32) -> (i32, i32) {
    %c0_i32 = arith.constant 0 : i32
    %c0_i32_0 = arith.constant 0 : i32
    return %c0_i32, %arg1 : i32, i32
  }
  func.func @transform_3(%arg0: i32, %arg1: i32, %arg2: i32) -> (i32, i32) {
    %c0_i32 = arith.constant 0 : i32
    return %arg0, %arg1 : i32, i32
  }
}

</mosaic_0001>

<llo_original>
// kernel: multi_head_cross_attention.5
$region0: #{multi_head_cross_attention.5}
  #allocation0 [shape = 'u32[]', space=smem, size = 0x4, offset = 0x4, fixed_abs, tag = 'smem constant byte address 0x4 - core index']
  #allocation1 [shape = 'u32[144,128]{1,0:T(1,128)}', space=vmem, size = 0x12000, scoped, tag = 'internal scratch']
  #allocation2 [shape = 'f32[16,32]{1,0:T(8,128)}', space=vmem, size = 0x2000, scoped, tag = 'scratch operand']
  %s0 = inlined_call_operand.vmem [shape: f32[16,32], index: 0, kind: input, shape index: {}]
  %s1 = inlined_call_operand.vmem [shape: f32[32,32], index: 1, kind: input, shape index: {}]
  %s2 = inlined_call_operand.vmem [shape: f32[1,32], index: 2, kind: input, shape index: {}]
  %s3 = inlined_call_operand.vmem [shape: f32[16,32], index: 3, kind: output, shape index: {}]
  %s4 = sld [smem:[#allocation0]]
  $region30: #{multi_head_cross_attention.5} parent=0
    _
  %s6 = ssub.s32 1, %s4
  %s7 = scalar_select 0, %s6, %s4
  // Predicated region
  $region2: #{multi_head_cross_attention.5} parent=0 // pred_check
    _
  $region3: #{multi_head_cross_attention.5} parent=0 // pred_check_branch
    %9 = sbr.rel (0) target = $region5
  $region4: #{multi_head_cross_attention.5} parent=0 // pred_region
    _
  $region5: #{multi_head_cross_attention.5} parent=0 // pred_fallthru
    _
  // Predicated region
  $region6: #{multi_head_cross_attention.5} parent=0 // pred_check
    _
  $region7: #{multi_head_cross_attention.5} parent=0 // pred_check_branch
    %11 = sbr.rel (0) target = $region9
  $region8: #{multi_head_cross_attention.5} parent=0 // pred_region
    _
  $region9: #{multi_head_cross_attention.5} parent=0 // pred_fallthru
    _
  // Predicated region
  $region10: #{multi_head_cross_attention.5} parent=0 // pred_check
    _
  $region11: #{multi_head_cross_attention.5} parent=0 // pred_check_branch
    %13 = sbr.rel (0) target = $region13
  $region12: #{multi_head_cross_attention.5} parent=0 // pred_region
    _
  $region13: #{multi_head_cross_attention.5} parent=0 // pred_fallthru
    _
  %p14 = scmp.eq.s32.totalorder 0, 0
  // Predicated region
  $region14: #{multi_head_cross_attention.5} parent=0 // pred_check
    %p15 = pneg %p14
  $region15: #{multi_head_cross_attention.5} parent=0 // pred_check_branch
    %17 = sbr.rel (%p15) target = $region17
  $region16: #{multi_head_cross_attention.5} parent=0 // pred_region
    %vm18 = vcmask 261120
    %19 = vst.msk [vmem:[#allocation2] sm:$0xff] %vm18, 0.0
    %20 = vst.msk [vmem:[#allocation2 + $0x8] sm:$0xff] %vm18, 0.0
  $region17: #{multi_head_cross_attention.5} parent=0 // pred_fallthru
    _
  %v21 = vld [vmem:[#allocation2] sm:$0xff]
  %v22 = vld [vmem:[#allocation2 + $0x8] sm:$0xff]
  %v23 = vld [vmem:[%s0] sm:$0xff]
  %v24 = vld [vmem:[%s0 + $0x8] sm:$0xff]
  %v25 = vld [vmem:[%s1] sm:$0xff]
  %v26 = vld [vmem:[%s1 + $0x8] sm:$0xff]
  %v27 = vld [vmem:[%s1 + $0x10] sm:$0xff]
  %v28 = vld [vmem:[%s1 + $0x18] sm:$0xff]
  %vm29 = vcmask 261120
  %v31 = vsel %vm29, %v23, 0
  %v34 = vsel %vm29, %v24, 0
  %36 = vmatprep.subr.mxu0 0.0
  %37 = vmatpush1.msra.mxu0 %v25
  %38 = vmatprep.subr.mxu0 0.0
  %39 = vmatpush1.msra.mxu0 %v26
  %40 = vmatprep.subr.mxu0 0.0
  %41 = vmatpush1.msra.mxu0 %v27
  %42 = vmatprep.subr.mxu0 0.0
  %43 = vmatpush1.msra.mxu0 %v28
  %44 = vmatprep.subr.mxu0 0.0
  %45 = vmatpush1.msra.mxu0 0.0
  %46 = vmatprep.subr.mxu0 0.0
  %47 = vmatpush1.msra.mxu0 0.0
  %48 = vmatprep.subr.mxu0 0.0
  %49 = vmatpush1.msra.mxu0 0.0
  %50 = vmatprep.subr.mxu0 0.0
  %51 = vmatpush1.msra.mxu0 0.0
  %52 = vmatprep.subr.mxu0 0.0
  %53 = vmatpush1.msra.mxu0 0.0
  %54 = vmatprep.subr.mxu0 0.0
  %55 = vmatpush1.msra.mxu0 0.0
  %56 = vmatprep.subr.mxu0 0.0
  %57 = vmatpush1.msra.mxu0 0.0
  %58 = vmatprep.subr.mxu0 0.0
  %59 = vmatpush1.msra.mxu0 0.0
  %60 = vmatprep.subr.mxu0 0.0
  %61 = vmatpush1.msra.mxu0 0.0
  %62 = vmatprep.subr.mxu0 0.0
  %63 = vmatpush1.msra.mxu0 0.0
  %64 = vmatprep.subr.mxu0 0.0
  %65 = vmatpush1.msra.mxu0 0.0
  %66 = vmatprep.subr.mxu0 0.0
  %67 = vmatpush1.msra.mxu0 0.0
  %68 = vmatprep.subr.mxu0 0.0
  %69 = vmatpush1.msra.mxu0 0.0
  %70 = vmatprep.subr.mxu0 0.0
  %71 = vmatpush1.msra.mxu0 0.0
  %72 = vmatprep.subr.mxu0 0.0
  %73 = vmatpush1.msra.mxu0 0.0
  %74 = vmatprep.subr.mxu0 0.0
  %75 = vmatpush1.msra.mxu0 0.0
  %76 = vmatprep.subr.mxu0 0.0
  %77 = vmatpush1.msra.mxu0 0.0
  %78 = vmatprep.subr.mxu0 0.0
  %79 = vmatpush1.msra.mxu0 0.0
  %80 = vmatprep.subr.mxu0 0.0
  %81 = vmatpush1.msra.mxu0 0.0
  %82 = vmatprep.subr.mxu0 0.0
  %83 = vmatpush1.msra.mxu0 0.0
  %84 = vmatprep.subr.mxu0 0.0
  %85 = vmatpush1.msra.mxu0 0.0
  %86 = vmatprep.subr.mxu0 0.0
  %87 = vmatpush1.msra.mxu0 0.0
  %88 = vmatprep.subr.mxu0 0.0
  %89 = vmatpush1.msra.mxu0 0.0
  %90 = vmatprep.subr.mxu0 0.0
  %91 = vmatpush1.msra.mxu0 0.0
  %92 = vmatprep.subr.mxu0 0.0
  %93 = vmatpush1.msra.mxu0 0.0
  %94 = vmatprep.subr.mxu0 0.0
  %95 = vmatpush1.msra.mxu0 0.0
  %96 = vmatprep.subr.mxu0 0.0
  %97 = vmatpush1.msra.mxu0 0.0
  %98 = vmatprep.subr.mxu0 0.0
  %99 = vmatpush1.msra.mxu0 0.0
  %100 = vmatprep.mubr.f32.mxu0 0.0
  %101 = vmatmul.mubr.f32.gmra.mrb[0].mxu0 %v31
  %v102 = vpop.f32.mrb[0].mxu0
  %v103 = vadd.f32 0.0, %v102
  %v104 = vpop.f32.mrb[0].mxu0
  %105 = vmatprep.mubr.f32.mxu0 0.0
  %106 = vmatmul.mubr.f32.gmra.mrb[0].mxu0 %v34
  %v107 = vpop.f32.mrb[0].mxu0
  %v108 = vadd.f32 0.0, %v107
  %v109 = vpop.f32.mrb[0].mxu0
  %110 = vdwg.mxu0
  %v111 = vadd.f32 %v21, %v103
  %v112 = vadd.f32 %v22, %v108
  %113 = vst.msk [vmem:[#allocation2] sm:$0xff] %vm29, %v111
  %114 = vst.msk [vmem:[#allocation2 + $0x8] sm:$0xff] %vm29, %v112
  // Predicated region
  $region18: #{multi_head_cross_attention.5} parent=0 // pred_check
    %p115 = pneg %p14
  $region19: #{multi_head_cross_attention.5} parent=0 // pred_check_branch
    %117 = sbr.rel (%p115) target = $region21
  $region20: #{multi_head_cross_attention.5} parent=0 // pred_region
    %v118 = vld [vmem:[#allocation2] sm:$0xff]
    %v119 = vld [vmem:[#allocation2 + $0x8] sm:$0xff]
    %v120 = vld [vmem:[%s2] sm:$0x1]
    %v122 = vlaneseq
    %v123 = vshrl.u32 %v122, 7
    %v124 = vsub.s32 0, %v123
    %v125 = vrot.slane %v120, %v124
    %v127 = vadd.f32 %v118, %v125
    %v128 = vadd.f32 %v119, %v125
    %129 = vst.msk [vmem:[%s3] sm:$0xff] %vm29, %v127
    %130 = vst.msk [vmem:[%s3 + $0x8] sm:$0xff] %vm29, %v128
  $region21: #{multi_head_cross_attention.5} parent=0 // pred_fallthru
    _
  // Predicated region
  $region22: #{multi_head_cross_attention.5} parent=0 // pred_check
    _
  $region23: #{multi_head_cross_attention.5} parent=0 // pred_check_branch
    %132 = sbr.rel (0) target = $region25
  $region24: #{multi_head_cross_attention.5} parent=0 // pred_region
    _
  $region25: #{multi_head_cross_attention.5} parent=0 // pred_fallthru
    _
  // Predicated region
  $region26: #{multi_head_cross_attention.5} parent=0 // pred_check
    _
  $region27: #{multi_head_cross_attention.5} parent=0 // pred_check_branch
    %134 = sbr.rel (0) target = $region29
  $region28: #{multi_head_cross_attention.5} parent=0 // pred_region
    _
  $region29: #{multi_head_cross_attention.5} parent=0 // pred_fallthru
    _

// kernel: multi_head_cross_attention.4
$region0: #{multi_head_cross_attention.4}
  #allocation0 [shape = 'u32[]', space=smem, size = 0x4, offset = 0x4, fixed_abs, tag = 'smem constant byte address 0x4 - core index']
  #allocation1 [shape = 'u32[144,128]{1,0:T(1,128)}', space=vmem, size = 0x12000, scoped, tag = 'internal scratch']
  #allocation2 [shape = 'f32[16,64]{1,0:T(8,128)}', space=vmem, size = 0x2000, scoped, tag = 'scratch operand']
  %s0 = inlined_call_operand.hbm [shape: f32[16,32], index: 0, kind: input, shape index: {}]
  %s1 = inlined_call_operand.hbm [shape: f32[32,64], index: 1, kind: input, shape index: {}]
  %s2 = inlined_call_operand.vmem [shape: f32[1,64], index: 2, kind: input, shape index: {}]
  %s3 = inlined_call_operand.vmem [shape: f32[16,64], index: 3, kind: output, shape index: {}]
  %s4 = sld [smem:[#allocation0]]
  $region38: #{multi_head_cross_attention.4} parent=0
    _
  %s6 = ssub.s32 1, %s4
  %s7 = scalar_select 0, %s6, %s4
  $region1: #{multi_head_cross_attention.4} parent=0
    #allocation3 [shape = 'u8[8192]{0}', space=vmem, size = 0x2000, scoped, tag = 'input window, operand 0, single buffered']
    #allocation4 [shape = 's32[1]{0}', space=sflag, size = 0x4, scoped, tag = 'scoped memory for multi_head_cross_attention.4']
    #allocation5 [shape = 'u8[16384]{0}', space=vmem, size = 0x4000, scoped, tag = 'input window, operand 1, single buffered']
    #allocation6 [shape = 's32[1]{0}', space=sflag, size = 0x4, scoped, tag = 'scoped memory for multi_head_cross_attention.4']
    %8 = vsyncpa [#allocation4], 0
    %9 = vsyncpa [#allocation6], 0
    // Predicated region
    $region2: #{multi_head_cross_attention.4} parent=1 // pred_check
      _
    $region3: #{multi_head_cross_attention.4} parent=1 // pred_check_branch
      %11 = sbr.rel (0) target = $region5
    $region4: #{multi_head_cross_attention.4} parent=1 // pred_region
      %s13 = ssub.s32 256, 256
      %14 = vsyncadd [#allocation4], %s13
      %s15 = sshll.u32 [#allocation3], 4
      %s16 = int_to_ptr.vmem [resolvable:$true] %s15
      %21 = dma.hbm_to_vmem [thread:$0]  %s0, 256, %s16, [#allocation4], 128, 128, 8
    $region5: #{multi_head_cross_attention.4} parent=1 // pred_fallthru
      _
    // Predicated region
    $region6: #{multi_head_cross_attention.4} parent=1 // pred_check
      _
    $region7: #{multi_head_cross_attention.4} parent=1 // pred_check_branch
      %23 = sbr.rel (0) target = $region9
    $region8: #{multi_head_cross_attention.4} parent=1 // pred_region
      %s25 = ssub.s32 512, 512
      %26 = vsyncadd [#allocation6], %s25
      %s27 = sshll.u32 [#allocation5], 4
      %s28 = int_to_ptr.vmem [resolvable:$true] %s27
      %33 = dma.hbm_to_vmem [thread:$0]  %s1, 512, %s28, [#allocation6], 128, 128, 8
    $region9: #{multi_head_cross_attention.4} parent=1 // pred_fallthru
      _
    // Predicated region
    $region10: #{multi_head_cross_attention.4} parent=1 // pred_check
      _
    $region11: #{multi_head_cross_attention.4} parent=1 // pred_check_branch
      %35 = sbr.rel (0) target = $region13
    $region12: #{multi_head_cross_attention.4} parent=1 // pred_region
      _
    $region13: #{multi_head_cross_attention.4} parent=1 // pred_fallthru
      _
    // Predicated region
    $region14: #{multi_head_cross_attention.4} parent=1 // pred_check
      _
    $region15: #{multi_head_cross_attention.4} parent=1 // pred_check_branch
      %37 = sbr.rel (0) target = $region17
    $region16: #{multi_head_cross_attention.4} parent=1 // pred_region
      %38 = dma.done [#allocation4], 256
    $region17: #{multi_head_cross_attention.4} parent=1 // pred_fallthru
      _
    // Predicated region
    $region18: #{multi_head_cross_attention.4} parent=1 // pred_check
      _
    $region19: #{multi_head_cross_attention.4} parent=1 // pred_check_branch
      %40 = sbr.rel (0) target = $region21
    $region20: #{multi_head_cross_attention.4} parent=1 // pred_region
      %41 = dma.done [#allocation6], 512
    $region21: #{multi_head_cross_attention.4} parent=1 // pred_fallthru
      _
    %p42 = scmp.eq.s32.totalorder 0, 0
    // Predicated region
    $region22: #{multi_head_cross_attention.4} parent=1 // pred_check
      %p43 = pneg %p42
    $region23: #{multi_head_cross_attention.4} parent=1 // pred_check_branch
      %45 = sbr.rel (%p43) target = $region25
    $region24: #{multi_head_cross_attention.4} parent=1 // pred_region
      %vm46 = vcmask 523264
      %47 = vst.msk [vmem:[#allocation2] sm:$0xff] %vm46, 0.0
      %48 = vst.msk [vmem:[#allocation2 + $0x8] sm:$0xff] %vm46, 0.0
    $region25: #{multi_head_cross_attention.4} parent=1 // pred_fallthru
      _
    %v49 = vld [vmem:[#allocation2] sm:$0xff]
    %v50 = vld [vmem:[#allocation2 + $0x8] sm:$0xff]
    %v51 = vld [vmem:[#allocation3] sm:$0xff]
    %v52 = vld [vmem:[#allocation3 + $0x8] sm:$0xff]
    %v53 = vld [vmem:[#allocation5] sm:$0xff]
    %v54 = vld [vmem:[#allocation5 + $0x8] sm:$0xff]
    %v55 = vld [vmem:[#allocation5 + $0x10] sm:$0xff]
    %v56 = vld [vmem:[#allocation5 + $0x18] sm:$0xff]
    %vm57 = vcmask 261120
    %v59 = vsel %vm57, %v51, 0
    %v62 = vsel %vm57, %v52, 0
    %64 = vmatprep.subr.mxu0 0.0
    %65 = vmatpush1.msra.mxu0 %v53
    %66 = vmatprep.subr.mxu0 0.0
    %67 = vmatpush1.msra.mxu0 %v54
    %68 = vmatprep.subr.mxu0 0.0
    %69 = vmatpush1.msra.mxu0 %v55
    %70 = vmatprep.subr.mxu0 0.0
    %71 = vmatpush1.msra.mxu0 %v56
    %72 = vmatprep.subr.mxu0 0.0
    %73 = vmatpush1.msra.mxu0 0.0
    %74 = vmatprep.subr.mxu0 0.0
    %75 = vmatpush1.msra.mxu0 0.0
    %76 = vmatprep.subr.mxu0 0.0
    %77 = vmatpush1.msra.mxu0 0.0
    %78 = vmatprep.subr.mxu0 0.0
    %79 = vmatpush1.msra.mxu0 0.0
    %80 = vmatprep.subr.mxu0 0.0
    %81 = vmatpush1.msra.mxu0 0.0
    %82 = vmatprep.subr.mxu0 0.0
    %83 = vmatpush1.msra.mxu0 0.0
    %84 = vmatprep.subr.mxu0 0.0
    %85 = vmatpush1.msra.mxu0 0.0
    %86 = vmatprep.subr.mxu0 0.0
    %87 = vmatpush1.msra.mxu0 0.0
    %88 = vmatprep.subr.mxu0 0.0
    %89 = vmatpush1.msra.mxu0 0.0
    %90 = vmatprep.subr.mxu0 0.0
    %91 = vmatpush1.msra.mxu0 0.0
    %92 = vmatprep.subr.mxu0 0.0
    %93 = vmatpush1.msra.mxu0 0.0
    %94 = vmatprep.subr.mxu0 0.0
    %95 = vmatpush1.msra.mxu0 0.0
    %96 = vmatprep.subr.mxu0 0.0
    %97 = vmatpush1.msra.mxu0 0.0
    %98 = vmatprep.subr.mxu0 0.0
    %99 = vmatpush1.msra.mxu0 0.0
    %100 = vmatprep.subr.mxu0 0.0
    %101 = vmatpush1.msra.mxu0 0.0
    %102 = vmatprep.subr.mxu0 0.0
    %103 = vmatpush1.msra.mxu0 0.0
    %104 = vmatprep.subr.mxu0 0.0
    %105 = vmatpush1.msra.mxu0 0.0
    %106 = vmatprep.subr.mxu0 0.0
    %107 = vmatpush1.msra.mxu0 0.0
    %108 = vmatprep.subr.mxu0 0.0
    %109 = vmatpush1.msra.mxu0 0.0
    %110 = vmatprep.subr.mxu0 0.0
    %111 = vmatpush1.msra.mxu0 0.0
    %112 = vmatprep.subr.mxu0 0.0
    %113 = vmatpush1.msra.mxu0 0.0
    %114 = vmatprep.subr.mxu0 0.0
    %115 = vmatpush1.msra.mxu0 0.0
    %116 = vmatprep.subr.mxu0 0.0
    %117 = vmatpush1.msra.mxu0 0.0
    %118 = vmatprep.subr.mxu0 0.0
    %119 = vmatpush1.msra.mxu0 0.0
    %120 = vmatprep.subr.mxu0 0.0
    %121 = vmatpush1.msra.mxu0 0.0
    %122 = vmatprep.subr.mxu0 0.0
    %123 = vmatpush1.msra.mxu0 0.0
    %124 = vmatprep.subr.mxu0 0.0
    %125 = vmatpush1.msra.mxu0 0.0
    %126 = vmatprep.subr.mxu0 0.0
    %127 = vmatpush1.msra.mxu0 0.0
    %128 = vmatprep.mubr.f32.mxu0 0.0
    %129 = vmatmul.mubr.f32.gmra.mrb[0].mxu0 %v59
    %v130 = vpop.f32.mrb[0].mxu0
    %v131 = vadd.f32 0.0, %v130
    %v132 = vpop.f32.mrb[0].mxu0
    %133 = vmatprep.mubr.f32.mxu0 0.0
    %134 = vmatmul.mubr.f32.gmra.mrb[0].mxu0 %v62
    %v135 = vpop.f32.mrb[0].mxu0
    %v136 = vadd.f32 0.0, %v135
    %v137 = vpop.f32.mrb[0].mxu0
    %138 = vdwg.mxu0
    %v139 = vadd.f32 %v49, %v131
    %v140 = vadd.f32 %v50, %v136
    %vm141 = vcmask 523264
    %142 = vst.msk [vmem:[#allocation2] sm:$0xff] %vm141, %v139
    %143 = vst.msk [vmem:[#allocation2 + $0x8] sm:$0xff] %vm141, %v140
    // Predicated region
    $region26: #{multi_head_cross_attention.4} parent=1 // pred_check
      %p144 = pneg %p42
    $region27: #{multi_head_cross_attention.4} parent=1 // pred_check_branch
      %146 = sbr.rel (%p144) target = $region29
    $region28: #{multi_head_cross_attention.4} parent=1 // pred_region
      %v147 = vld [vmem:[#allocation2] sm:$0xff]
      %v148 = vld [vmem:[#allocation2 + $0x8] sm:$0xff]
      %v149 = vld [vmem:[%s2] sm:$0x1]
      %v151 = vlaneseq
      %v152 = vshrl.u32 %v151, 7
      %v153 = vsub.s32 0, %v152
      %v154 = vrot.slane %v149, %v153
      %v156 = vadd.f32 %v147, %v154
      %v157 = vadd.f32 %v148, %v154
      %158 = vst.msk [vmem:[%s3] sm:$0xff] %vm141, %v156
      %159 = vst.msk [vmem:[%s3 + $0x8] sm:$0xff] %vm141, %v157
    $region29: #{multi_head_cross_attention.4} parent=1 // pred_fallthru
      _
    // Predicated region
    $region30: #{multi_head_cross_attention.4} parent=1 // pred_check
      _
    $region31: #{multi_head_cross_attention.4} parent=1 // pred_check_branch
      %161 = sbr.rel (0) target = $region33
    $region32: #{multi_head_cross_attention.4} parent=1 // pred_region
      _
    $region33: #{multi_head_cross_attention.4} parent=1 // pred_fallthru
      _
    // Predicated region
    $region34: #{multi_head_cross_attention.4} parent=1 // pred_check
      _
    $region35: #{multi_head_cross_attention.4} parent=1 // pred_check_branch
      %163 = sbr.rel (0) target = $region37
    $region36: #{multi_head_cross_attention.4} parent=1 // pred_region
      _
    $region37: #{multi_head_cross_attention.4} parent=1 // pred_fallthru
      _
    %164 = vsyncpa [#allocation4], 1
    %165 = vsyncpa [#allocation6], 1

// kernel: multi_head_cross_attention.7
$region0: #{multi_head_cross_attention.7}
  #allocation0 [shape = 'u32[]', space=smem, size = 0x4, offset = 0x4, fixed_abs, tag = 'smem constant byte address 0x4 - core index']
  #allocation1 [shape = 'u32[144,128]{1,0:T(1,128)}', space=vmem, size = 0x12000, scoped, tag = 'internal scratch']
  #allocation2 [shape = 'f32[16,32]{1,0:T(8,128)}', space=vmem, size = 0x2000, scoped, tag = 'scratch operand']
  %s0 = inlined_call_operand.vmem [shape: f32[16,32], index: 0, kind: input, shape index: {}]
  %s1 = inlined_call_operand.vmem [shape: f32[32,32], index: 1, kind: input, shape index: {}]
  %s2 = inlined_call_operand.vmem [shape: f32[1,32], index: 2, kind: input, shape index: {}]
  %s3 = inlined_call_operand.hbm [shape: f32[16,32], index: 3, kind: output, shape index: {}]
  %s4 = sld [smem:[#allocation0]]
  $region30: #{multi_head_cross_attention.7} parent=0
    _
  %s6 = ssub.s32 1, %s4
  %s7 = scalar_select 0, %s6, %s4
  $region1: #{multi_head_cross_attention.7} parent=0
    #allocation3 [shape = 'u8[8192]{0}', space=vmem, size = 0x2000, scoped, tag = 'output window, operand 0, single buffered']
    #allocation4 [shape = 's32[1]{0}', space=sflag, size = 0x4, scoped, tag = 'scoped memory for multi_head_cross_attention.7']
    %8 = vsyncpa [#allocation4], 0
    // Predicated region
    $region2: #{multi_head_cross_attention.7} parent=1 // pred_check
      _
    $region3: #{multi_head_cross_attention.7} parent=1 // pred_check_branch
      %10 = sbr.rel (0) target = $region5
    $region4: #{multi_head_cross_attention.7} parent=1 // pred_region
      _
    $region5: #{multi_head_cross_attention.7} parent=1 // pred_fallthru
      _
    // Predicated region
    $region6: #{multi_head_cross_attention.7} parent=1 // pred_check
      _
    $region7: #{multi_head_cross_attention.7} parent=1 // pred_check_branch
      %12 = sbr.rel (0) target = $region9
    $region8: #{multi_head_cross_attention.7} parent=1 // pred_region
      _
    $region9: #{multi_head_cross_attention.7} parent=1 // pred_fallthru
      _
    // Predicated region
    $region10: #{multi_head_cross_attention.7} parent=1 // pred_check
      _
    $region11: #{multi_head_cross_attention.7} parent=1 // pred_check_branch
      %14 = sbr.rel (0) target = $region13
    $region12: #{multi_head_cross_attention.7} parent=1 // pred_region
      _
    $region13: #{multi_head_cross_attention.7} parent=1 // pred_fallthru
      _
    %p15 = scmp.eq.s32.totalorder 0, 0
    // Predicated region
    $region14: #{multi_head_cross_attention.7} parent=1 // pred_check
      %p16 = pneg %p15
    $region15: #{multi_head_cross_attention.7} parent=1 // pred_check_branch
      %18 = sbr.rel (%p16) target = $region17
    $region16: #{multi_head_cross_attention.7} parent=1 // pred_region
      %vm19 = vcmask 261120
      %20 = vst.msk [vmem:[#allocation2] sm:$0xff] %vm19, 0.0
      %21 = vst.msk [vmem:[#allocation2 + $0x8] sm:$0xff] %vm19, 0.0
    $region17: #{multi_head_cross_attention.7} parent=1 // pred_fallthru
      _
    %v22 = vld [vmem:[#allocation2] sm:$0xff]
    %v23 = vld [vmem:[#allocation2 + $0x8] sm:$0xff]
    %v24 = vld [vmem:[%s0] sm:$0xff]
    %v25 = vld [vmem:[%s0 + $0x8] sm:$0xff]
    %v26 = vld [vmem:[%s1] sm:$0xff]
    %v27 = vld [vmem:[%s1 + $0x8] sm:$0xff]
    %v28 = vld [vmem:[%s1 + $0x10] sm:$0xff]
    %v29 = vld [vmem:[%s1 + $0x18] sm:$0xff]
    %vm30 = vcmask 261120
    %v32 = vsel %vm30, %v24, 0
    %v35 = vsel %vm30, %v25, 0
    %37 = vmatprep.subr.mxu0 0.0
    %38 = vmatpush1.msra.mxu0 %v26
    %39 = vmatprep.subr.mxu0 0.0
    %40 = vmatpush1.msra.mxu0 %v27
    %41 = vmatprep.subr.mxu0 0.0
    %42 = vmatpush1.msra.mxu0 %v28
    %43 = vmatprep.subr.mxu0 0.0
    %44 = vmatpush1.msra.mxu0 %v29
    %45 = vmatprep.subr.mxu0 0.0
    %46 = vmatpush1.msra.mxu0 0.0
    %47 = vmatprep.subr.mxu0 0.0
    %48 = vmatpush1.msra.mxu0 0.0
    %49 = vmatprep.subr.mxu0 0.0
    %50 = vmatpush1.msra.mxu0 0.0
    %51 = vmatprep.subr.mxu0 0.0
    %52 = vmatpush1.msra.mxu0 0.0
    %53 = vmatprep.subr.mxu0 0.0
    %54 = vmatpush1.msra.mxu0 0.0
    %55 = vmatprep.subr.mxu0 0.0
    %56 = vmatpush1.msra.mxu0 0.0
    %57 = vmatprep.subr.mxu0 0.0
    %58 = vmatpush1.msra.mxu0 0.0
    %59 = vmatprep.subr.mxu0 0.0
    %60 = vmatpush1.msra.mxu0 0.0
    %61 = vmatprep.subr.mxu0 0.0
    %62 = vmatpush1.msra.mxu0 0.0
    %63 = vmatprep.subr.mxu0 0.0
    %64 = vmatpush1.msra.mxu0 0.0
    %65 = vmatprep.subr.mxu0 0.0
    %66 = vmatpush1.msra.mxu0 0.0
    %67 = vmatprep.subr.mxu0 0.0
    %68 = vmatpush1.msra.mxu0 0.0
    %69 = vmatprep.subr.mxu0 0.0
    %70 = vmatpush1.msra.mxu0 0.0
    %71 = vmatprep.subr.mxu0 0.0
    %72 = vmatpush1.msra.mxu0 0.0
    %73 = vmatprep.subr.mxu0 0.0
    %74 = vmatpush1.msra.mxu0 0.0
    %75 = vmatprep.subr.mxu0 0.0
    %76 = vmatpush1.msra.mxu0 0.0
    %77 = vmatprep.subr.mxu0 0.0
    %78 = vmatpush1.msra.mxu0 0.0
    %79 = vmatprep.subr.mxu0 0.0
    %80 = vmatpush1.msra.mxu0 0.0
    %81 = vmatprep.subr.mxu0 0.0
    %82 = vmatpush1.msra.mxu0 0.0
    %83 = vmatprep.subr.mxu0 0.0
    %84 = vmatpush1.msra.mxu0 0.0
    %85 = vmatprep.subr.mxu0 0.0
    %86 = vmatpush1.msra.mxu0 0.0
    %87 = vmatprep.subr.mxu0 0.0
    %88 = vmatpush1.msra.mxu0 0.0
    %89 = vmatprep.subr.mxu0 0.0
    %90 = vmatpush1.msra.mxu0 0.0
    %91 = vmatprep.subr.mxu0 0.0
    %92 = vmatpush1.msra.mxu0 0.0
    %93 = vmatprep.subr.mxu0 0.0
    %94 = vmatpush1.msra.mxu0 0.0
    %95 = vmatprep.subr.mxu0 0.0
    %96 = vmatpush1.msra.mxu0 0.0
    %97 = vmatprep.subr.mxu0 0.0
    %98 = vmatpush1.msra.mxu0 0.0
    %99 = vmatprep.subr.mxu0 0.0
    %100 = vmatpush1.msra.mxu0 0.0
    %101 = vmatprep.mubr.f32.mxu0 0.0
    %102 = vmatmul.mubr.f32.gmra.mrb[0].mxu0 %v32
    %v103 = vpop.f32.mrb[0].mxu0
    %v104 = vadd.f32 0.0, %v103
    %v105 = vpop.f32.mrb[0].mxu0
    %106 = vmatprep.mubr.f32.mxu0 0.0
    %107 = vmatmul.mubr.f32.gmra.mrb[0].mxu0 %v35
    %v108 = vpop.f32.mrb[0].mxu0
    %v109 = vadd.f32 0.0, %v108
    %v110 = vpop.f32.mrb[0].mxu0
    %111 = vdwg.mxu0
    %v112 = vadd.f32 %v22, %v104
    %v113 = vadd.f32 %v23, %v109
    %114 = vst.msk [vmem:[#allocation2] sm:$0xff] %vm30, %v112
    %115 = vst.msk [vmem:[#allocation2 + $0x8] sm:$0xff] %vm30, %v113
    // Predicated region
    $region18: #{multi_head_cross_attention.7} parent=1 // pred_check
      %p116 = pneg %p15
    $region19: #{multi_head_cross_attention.7} parent=1 // pred_check_branch
      %118 = sbr.rel (%p116) target = $region21
    $region20: #{multi_head_cross_attention.7} parent=1 // pred_region
      %v119 = vld [vmem:[#allocation2] sm:$0xff]
      %v120 = vld [vmem:[#allocation2 + $0x8] sm:$0xff]
      %v121 = vld [vmem:[%s2] sm:$0x1]
      %v123 = vlaneseq
      %v124 = vshrl.u32 %v123, 7
      %v125 = vsub.s32 0, %v124
      %v126 = vrot.slane %v121, %v125
      %v128 = vadd.f32 %v119, %v126
      %v129 = vadd.f32 %v120, %v126
      %130 = vst.msk [vmem:[#allocation3] sm:$0xff] %vm30, %v128
      %131 = vst.msk [vmem:[#allocation3 + $0x8] sm:$0xff] %vm30, %v129
    $region21: #{multi_head_cross_attention.7} parent=1 // pred_fallthru
      _
    // Predicated region
    $region22: #{multi_head_cross_attention.7} parent=1 // pred_check
      _
    $region23: #{multi_head_cross_attention.7} parent=1 // pred_check_branch
      %133 = sbr.rel (0) target = $region25
    $region24: #{multi_head_cross_attention.7} parent=1 // pred_region
      %s135 = ssub.s32 256, 256
      %136 = vsyncadd [#allocation4], %s135
      %s137 = sshll.u32 [#allocation3], 4
      %s138 = int_to_ptr.vmem [resolvable:$true] %s137
      %143 = dma.vmem_to_hbm [thread:$0]  %s138, 256, %s3, [#allocation4], 128, 128, 8
    $region25: #{multi_head_cross_attention.7} parent=1 // pred_fallthru
      _
    // Predicated region
    $region26: #{multi_head_cross_attention.7} parent=1 // pred_check
      _
    $region27: #{multi_head_cross_attention.7} parent=1 // pred_check_branch
      %145 = sbr.rel (0) target = $region29
    $region28: #{multi_head_cross_attention.7} parent=1 // pred_region
      %146 = dma.done [#allocation4], 256
    $region29: #{multi_head_cross_attention.7} parent=1 // pred_fallthru
      _
    %147 = vsyncpa [#allocation4], 1

// kernel: multi_head_cross_attention.6
$region0: #{multi_head_cross_attention.6}
  #allocation0 [shape = 'u32[]', space=smem, size = 0x4, offset = 0x4, fixed_abs, tag = 'smem constant byte address 0x4 - core index']
  #allocation1 [shape = 'u32[144,128]{1,0:T(1,128)}', space=vmem, size = 0x12000, scoped, tag = 'internal scratch']
  #allocation2 [shape = 'f32[4,8,1]{2,1,0:T(8,128)}', space=vmem, size = 0x4000, scoped, tag = 'scratch operand']
  #allocation3 [shape = 'f32[4,8,1]{2,1,0:T(8,128)}', space=vmem, size = 0x4000, scoped, tag = 'scratch operand']
  #allocation4 [shape = 'f32[4,8,8]{2,1,0:T(8,128)}', space=vmem, size = 0x4000, scoped, tag = 'scratch operand']
  %s0 = inlined_call_operand.vmem [shape: f32[2,8,4,8], index: 0, kind: input, shape index: {}]
  %s1 = inlined_call_operand.vmem [shape: f32[2,8,4,8], index: 1, kind: input, shape index: {}]
  %s2 = inlined_call_operand.vmem [shape: f32[2,8,4,8], index: 2, kind: input, shape index: {}]
  %s3 = inlined_call_operand.vmem [shape: f32[2,8,4,8], index: 3, kind: output, shape index: {}]
  %s4 = sld [smem:[#allocation0]]
  $region53: #{multi_head_cross_attention.6} parent=0
    _
  %s6 = ssub.s32 1, %s4
  %s7 = scalar_select 0, %s6, %s4
  loop: start=0, step=1, limit=4
  $region2: #{multi_head_cross_attention.6} parent=0 // loop_pre_header
    _
  $region3: #{multi_head_cross_attention.6} parent=0 // loop_header
    %s9 = sphi 0, %s13
    %p10 = scmp.ge.s32.totalorder %s9, 4
    %s16 = sphi 0, %s35
    %s17 = sphi 0, %s31
    %s18 = sphi 0, %s27
    %s19 = sphi 0, %s16
    %s20 = sphi 0, %s17
    %s21 = sphi 0, %s18
    %s22 = sphi 0, %s19
    %s23 = sphi 0, %s20
    %s24 = sphi 0, %s21
    %s40 = sphi 0, %s42
    %s43 = sphi 0, %s40
    %s44 = sphi 0, %s43
    %s60 = sphi 0, %s44
    %s68 = sphi 0, %s70
    %s71 = sphi 0, %s68
    %s72 = sphi 0, %s71
    %s88 = sphi 0, %s72
    %s96 = sphi 0, %s98
    %s99 = sphi 0, %s96
    %s100 = sphi 0, %s99
    %s116 = sphi 0, %s100
    %s124 = sphi 0, %s126
    %s127 = sphi 0, %s124
    %s128 = sphi 0, %s127
    %s144 = sphi 0, %s128
  $region4: #{multi_head_cross_attention.6} parent=0 // loop_header_branch
    %12 = sbr.rel (%p10) target = $region8
  $region5: #{multi_head_cross_attention.6} parent=0 // loop_body
    %s14 = ssub.s32 %s9, 1
    %s15 = ssub.s32 %s9, 2
    %s25 = sadd.s32 1, %s18
    %p26 = scmp.ge.s32.totalorder %s25, 1
    %s27 = scalar_select %p26, 0, %s25
    %s28 = sadd.s32 1, %s17
    %s29 = scalar_select %p26, %s28, %s17
    %p30 = scmp.ge.s32.totalorder %s29, 1
    %s31 = scalar_select %p30, 0, %s29
    %s32 = sadd.s32 1, %s16
    %s33 = scalar_select %p30, %s32, %s16
    %p34 = scmp.ge.s32.totalorder %s33, 2
    %s35 = scalar_select %p34, 0, %s33
    %s36 = ssub.s32 %s16, %s35
    %s37 = ssub.s32 %s17, %s31
    %s38 = sor.u32 %s36, %s37
    %p39 = scmp.eq.s32.totalorder %s38, 0
    %s41 = sadd.s32 %s40, 1
    %s42 = scalar_select %p39, %s40, %s41
    %p45 = pneg %p39
    %p46 = scmp.eq.s32.totalorder %s9, 1
    %p47 = por %p45, %p46
    %p48 = scmp.ne.s32.totalorder %s40, %s43
    %p49 = scmp.eq.s32.totalorder %s9, 0
    %p50 = por %p48, %p49
    %p51 = scmp.ne.s32.totalorder %s40, %s43
    %p52 = scmp.eq.s32.totalorder %s14, 1
    %p53 = por %p51, %p52
    %p54 = scmp.ne.s32.totalorder %s43, %s44
    %p55 = scmp.eq.s32.totalorder %s14, 0
    %p56 = por %p54, %p55
    %p57 = scmp.ne.s32.totalorder %s43, %s44
    %p58 = scmp.eq.s32.totalorder %s15, 1
    %p59 = por %p57, %p58
    %p61 = scmp.ne.s32.totalorder %s44, %s60
    %p62 = scmp.eq.s32.totalorder %s15, 0
    %p63 = por %p61, %p62
    %s64 = ssub.s32 %s16, %s35
    %s65 = ssub.s32 %s18, %s27
    %s66 = sor.u32 %s64, %s65
    %p67 = scmp.eq.s32.totalorder %s66, 0
    %s69 = sadd.s32 %s68, 1
    %s70 = scalar_select %p67, %s68, %s69
    %p73 = pneg %p67
    %p74 = scmp.eq.s32.totalorder %s9, 1
    %p75 = por %p73, %p74
    %p76 = scmp.ne.s32.totalorder %s68, %s71
    %p77 = scmp.eq.s32.totalorder %s9, 0
    %p78 = por %p76, %p77
    %p79 = scmp.ne.s32.totalorder %s68, %s71
    %p80 = scmp.eq.s32.totalorder %s14, 1
    %p81 = por %p79, %p80
    %p82 = scmp.ne.s32.totalorder %s71, %s72
    %p83 = scmp.eq.s32.totalorder %s14, 0
    %p84 = por %p82, %p83
    %p85 = scmp.ne.s32.totalorder %s71, %s72
    %p86 = scmp.eq.s32.totalorder %s15, 1
    %p87 = por %p85, %p86
    %p89 = scmp.ne.s32.totalorder %s72, %s88
    %p90 = scmp.eq.s32.totalorder %s15, 0
    %p91 = por %p89, %p90
    %s92 = ssub.s32 %s16, %s35
    %s93 = ssub.s32 %s18, %s27
    %s94 = sor.u32 %s92, %s93
    %p95 = scmp.eq.s32.totalorder %s94, 0
    %s97 = sadd.s32 %s96, 1
    %s98 = scalar_select %p95, %s96, %s97
    %p101 = pneg %p95
    %p102 = scmp.eq.s32.totalorder %s9, 1
    %p103 = por %p101, %p102
    %p104 = scmp.ne.s32.totalorder %s96, %s99
    %p105 = scmp.eq.s32.totalorder %s9, 0
    %p106 = por %p104, %p105
    %p107 = scmp.ne.s32.totalorder %s96, %s99
    %p108 = scmp.eq.s32.totalorder %s14, 1
    %p109 = por %p107, %p108
    %p110 = scmp.ne.s32.totalorder %s99, %s100
    %p111 = scmp.eq.s32.totalorder %s14, 0
    %p112 = por %p110, %p111
    %p113 = scmp.ne.s32.totalorder %s99, %s100
    %p114 = scmp.eq.s32.totalorder %s15, 1
    %p115 = por %p113, %p114
    %p117 = scmp.ne.s32.totalorder %s100, %s116
    %p118 = scmp.eq.s32.totalorder %s15, 0
    %p119 = por %p117, %p118
    %s120 = ssub.s32 %s16, %s35
    %s121 = ssub.s32 %s17, %s31
    %s122 = sor.u32 %s120, %s121
    %p123 = scmp.eq.s32.totalorder %s122, 0
    %s125 = sadd.s32 %s124, 1
    %s126 = scalar_select %p123, %s124, %s125
    %p129 = pneg %p123
    %p130 = scmp.eq.s32.totalorder %s9, 1
    %p131 = por %p129, %p130
    %p132 = scmp.ne.s32.totalorder %s124, %s127
    %p133 = scmp.eq.s32.totalorder %s9, 0
    %p134 = por %p132, %p133
    %p135 = scmp.ne.s32.totalorder %s124, %s127
    %p136 = scmp.eq.s32.totalorder %s14, 1
    %p137 = por %p135, %p136
    %p138 = scmp.ne.s32.totalorder %s127, %s128
    %p139 = scmp.eq.s32.totalorder %s14, 0
    %p140 = por %p138, %p139
    %p141 = scmp.ne.s32.totalorder %s127, %s128
    %p142 = scmp.eq.s32.totalorder %s15, 1
    %p143 = por %p141, %p142
    %p145 = scmp.ne.s32.totalorder %s128, %s144
    %p146 = scmp.eq.s32.totalorder %s15, 0
    %p147 = por %p145, %p146
    %p148 = scmp.le.s32.totalorder 1, %s9
    %p149 = scmp.lt.s32.totalorder %s9, 3
    %p150 = pnand %p148, %p149
    %p151 = pneg %p150
    // Predicated region
    $region9: #{multi_head_cross_attention.6} parent=5 // pred_check
      _
    $region10: #{multi_head_cross_attention.6} parent=5 // pred_check_branch
      %153 = sbr.rel (%p150) target = $region12
    $region11: #{multi_head_cross_attention.6} parent=5 // pred_region
      %s154 = ssub.s32 %s9, 1
    $region12: #{multi_head_cross_attention.6} parent=5 // pred_fallthru
      _
    %p155 = scmp.lt.s32.totalorder %s9, 2
    // Predicated region
    $region13: #{multi_head_cross_attention.6} parent=5 // pred_check
      %p156 = pneg %p155
    $region14: #{multi_head_cross_attention.6} parent=5 // pred_check_branch
      %158 = sbr.rel (%p156) target = $region16
    $region15: #{multi_head_cross_attention.6} parent=5 // pred_region
      // Predicated region
      $region17: #{multi_head_cross_attention.6} parent=15 // pred_check
        %p159 = pneg %p50
      $region18: #{multi_head_cross_attention.6} parent=15 // pred_check_branch
        %161 = sbr.rel (%p159) target = $region20
      $region19: #{multi_head_cross_attention.6} parent=15 // pred_region
        %s162 = smul.u32 8, %s17
        %p163 = scmp.lt.s32.totalorder %s16, 1
        %s164 = scalar_select %p163, %s16, 1
        %p165 = scmp.lt.s32.totalorder %s162, 7
        %s166 = scalar_select %p165, %s162, 7
        %s167 = smul.addr %s164, 8
        %s168 = sadd.s32 %s166, %s167
        %s169 = smul.addr %s168, 4
        %s170 = scalar_lea.vmem %s0, %s169
        %s171 = smul.u32 8, %s17
      $region20: #{multi_head_cross_attention.6} parent=15 // pred_fallthru
        _
      // Predicated region
      $region21: #{multi_head_cross_attention.6} parent=15 // pred_check
        %p172 = pneg %p78
      $region22: #{multi_head_cross_attention.6} parent=15 // pred_check_branch
        %174 = sbr.rel (%p172) target = $region24
      $region23: #{multi_head_cross_attention.6} parent=15 // pred_region
        %s175 = smul.u32 8, %s18
        %p176 = scmp.lt.s32.totalorder %s16, 1
        %s177 = scalar_select %p176, %s16, 1
        %p178 = scmp.lt.s32.totalorder %s175, 7
        %s179 = scalar_select %p178, %s175, 7
        %s180 = smul.addr %s177, 8
        %s181 = sadd.s32 %s179, %s180
        %s182 = smul.addr %s181, 4
        %s183 = scalar_lea.vmem %s1, %s182
        %s184 = smul.u32 8, %s18
      $region24: #{multi_head_cross_attention.6} parent=15 // pred_fallthru
        _
      // Predicated region
      $region25: #{multi_head_cross_attention.6} parent=15 // pred_check
        %p185 = pneg %p106
      $region26: #{multi_head_cross_attention.6} parent=15 // pred_check_branch
        %187 = sbr.rel (%p185) target = $region28
      $region27: #{multi_head_cross_attention.6} parent=15 // pred_region
        %s188 = smul.u32 8, %s18
        %p189 = scmp.lt.s32.totalorder %s16, 1
        %s190 = scalar_select %p189, %s16, 1
        %p191 = scmp.lt.s32.totalorder %s188, 7
        %s192 = scalar_select %p191, %s188, 7
        %s193 = smul.addr %s190, 8
        %s194 = sadd.s32 %s192, %s193
        %s195 = smul.addr %s194, 4
        %s196 = scalar_lea.vmem %s2, %s195
        %s197 = smul.u32 8, %s18
      $region28: #{multi_head_cross_attention.6} parent=15 // pred_fallthru
        _
    $region16: #{multi_head_cross_attention.6} parent=5 // pred_fallthru
      _
    %p198 = scmp.le.s32.totalorder 1, %s9
    %p199 = scmp.lt.s32.totalorder %s9, 3
    %p200 = pnand %p198, %p199
    %p201 = pneg %p200
    // Predicated region
    $region29: #{multi_head_cross_attention.6} parent=5 // pred_check
      _
    $region30: #{multi_head_cross_attention.6} parent=5 // pred_check_branch
      %203 = sbr.rel (%p200) target = $region32
    $region31: #{multi_head_cross_attention.6} parent=5 // pred_region
      %s204 = ssub.s32 %s9, 1
      %s205 = smul.u32 8, %s20
      %p206 = scmp.lt.s32.totalorder %s19, 1
      %s207 = scalar_select %p206, %s19, 1
      %p208 = scmp.lt.s32.totalorder %s205, 7
      %s209 = scalar_select %p208, %s205, 7
      %s210 = smul.addr %s207, 8
      %s211 = sadd.s32 %s209, %s210
      %s212 = smul.addr %s211, 4
      %s213 = scalar_lea.vmem %s0, %s212
      %p214 = pneg %p56
      %p215 = pneg %p53
      %s216 = smul.u32 8, %s21
      %p217 = scmp.lt.s32.totalorder %s19, 1
      %s218 = scalar_select %p217, %s19, 1
      %p219 = scmp.lt.s32.totalorder %s216, 7
      %s220 = scalar_select %p219, %s216, 7
      %s221 = smul.addr %s218, 8
      %s222 = sadd.s32 %s220, %s221
      %s223 = smul.addr %s222, 4
      %s224 = scalar_lea.vmem %s1, %s223
      %p225 = pneg %p84
      %p226 = pneg %p81
      %s227 = smul.u32 8, %s21
      %p228 = scmp.lt.s32.totalorder %s19, 1
      %s229 = scalar_select %p228, %s19, 1
      %p230 = scmp.lt.s32.totalorder %s227, 7
      %s231 = scalar_select %p230, %s227, 7
      %s232 = smul.addr %s229, 8
      %s233 = sadd.s32 %s231, %s232
      %s234 = smul.addr %s233, 4
      %s235 = scalar_lea.vmem %s2, %s234
      %p236 = pneg %p112
      %p237 = pneg %p109
      %p238 = pneg %p140
      %p239 = pneg %p137
      %s240 = smul.u32 8, %s20
      %p241 = scmp.lt.s32.totalorder %s19, 1
      %s242 = scalar_select %p241, %s19, 1
      %p243 = scmp.lt.s32.totalorder %s240, 7
      %s244 = scalar_select %p243, %s240, 7
      %s245 = smul.addr %s242, 8
      %s246 = sadd.s32 %s244, %s245
      %s247 = smul.addr %s246, 4
      %s248 = scalar_lea.vmem %s3, %s247
      %s249 = smul.u32 8, %s20
      %p250 = scmp.lt.s32.totalorder %s19, 1
      %s251 = scalar_select %p250, %s19, 1
      %p252 = scmp.lt.s32.totalorder %s249, 7
      %s253 = scalar_select %p252, %s249, 7
      %s254 = smul.addr %s251, 8
      %s255 = sadd.s32 %s253, %s254
      %s256 = smul.addr %s255, 4
      %s257 = scalar_lea.vmem %s0, %s256
      %s258 = smul.u32 8, %s20
      %s259 = smul.u32 8, %s21
      %p260 = scmp.lt.s32.totalorder %s19, 1
      %s261 = scalar_select %p260, %s19, 1
      %p262 = scmp.lt.s32.totalorder %s259, 7
      %s263 = scalar_select %p262, %s259, 7
      %s264 = smul.addr %s261, 8
      %s265 = sadd.s32 %s263, %s264
      %s266 = smul.addr %s265, 4
      %s267 = scalar_lea.vmem %s1, %s266
      %s268 = smul.u32 8, %s21
      %s269 = smul.u32 8, %s21
      %p270 = scmp.lt.s32.totalorder %s19, 1
      %s271 = scalar_select %p270, %s19, 1
      %p272 = scmp.lt.s32.totalorder %s269, 7
      %s273 = scalar_select %p272, %s269, 7
      %s274 = smul.addr %s271, 8
      %s275 = sadd.s32 %s273, %s274
      %s276 = smul.addr %s275, 4
      %s277 = scalar_lea.vmem %s2, %s276
      %s278 = smul.u32 8, %s21
      %s279 = smul.u32 8, %s20
      %p280 = scmp.lt.s32.totalorder %s19, 1
      %s281 = scalar_select %p280, %s19, 1
      %p282 = scmp.lt.s32.totalorder %s279, 7
      %s283 = scalar_select %p282, %s279, 7
      %s284 = smul.addr %s281, 8
      %s285 = sadd.s32 %s283, %s284
      %s286 = smul.addr %s285, 4
      %s287 = scalar_lea.vmem %s3, %s286
      %s288 = smul.u32 8, %s20
      %p289 = scmp.eq.s32.totalorder %s21, 0
      // Predicated region
      $region33: #{multi_head_cross_attention.6} parent=31 // pred_check
        %p290 = pneg %p289
      $region34: #{multi_head_cross_attention.6} parent=31 // pred_check_branch
        %292 = sbr.rel (%p290) target = $region36
      $region35: #{multi_head_cross_attention.6} parent=31 // pred_region
        %vm293 = vcmask 7168
        %294 = vst.msk [vmem:[#allocation2] sm:$0xff] %vm293, -inf
        %295 = vst.msk [vmem:[#allocation2 + $0x8] sm:$0xff] %vm293, -inf
        %296 = vst.msk [vmem:[#allocation2 + $0x10] sm:$0xff] %vm293, -inf
        %297 = vst.msk [vmem:[#allocation2 + $0x18] sm:$0xff] %vm293, -inf
        %298 = vst.msk [vmem:[#allocation3] sm:$0xff] %vm293, 0.0
        %299 = vst.msk [vmem:[#allocation3 + $0x8] sm:$0xff] %vm293, 0.0
        %300 = vst.msk [vmem:[#allocation3 + $0x10] sm:$0xff] %vm293, 0.0
        %301 = vst.msk [vmem:[#allocation3 + $0x18] sm:$0xff] %vm293, 0.0
        %vm302 = vcmask 64512
        %303 = vst.msk [vmem:[#allocation4] sm:$0xff] %vm302, 0.0
        %304 = vst.msk [vmem:[#allocation4 + $0x8] sm:$0xff] %vm302, 0.0
        %305 = vst.msk [vmem:[#allocation4 + $0x10] sm:$0xff] %vm302, 0.0
        %306 = vst.msk [vmem:[#allocation4 + $0x18] sm:$0xff] %vm302, 0.0
      $region36: #{multi_head_cross_attention.6} parent=31 // pred_fallthru
        _
      %v307 = vld [vmem:[%s257] sm:$0xf]
      %v308 = vld [vmem:[%s257 + $0x4] sm:$0xf]
      %v309 = vld [vmem:[%s257 + $0x8] sm:$0xf]
      %v310 = vld [vmem:[%s257 + $0xc] sm:$0xf]
      %v311 = vld [vmem:[%s257 + $0x10] sm:$0xf]
      %v312 = vld [vmem:[%s257 + $0x14] sm:$0xf]
      %v313 = vld [vmem:[%s257 + $0x18] sm:$0xf]
      %v314 = vld [vmem:[%s257 + $0x1c] sm:$0xf]
      %v315 = vld [vmem:[%s267] sm:$0xf]
      %v316 = vld [vmem:[%s267 + $0x4] sm:$0xf]
      %v317 = vld [vmem:[%s267 + $0x8] sm:$0xf]
      %v318 = vld [vmem:[%s267 + $0xc] sm:$0xf]
      %v319 = vld [vmem:[%s267 + $0x10] sm:$0xf]
      %v320 = vld [vmem:[%s267 + $0x14] sm:$0xf]
      %v321 = vld [vmem:[%s267 + $0x18] sm:$0xf]
      %v322 = vld [vmem:[%s267 + $0x1c] sm:$0xf]
      %v323 = vld [vmem:[%s277] sm:$0xf]
      %v324 = vld [vmem:[%s277 + $0x4] sm:$0xf]
      %v325 = vld [vmem:[%s277 + $0x8] sm:$0xf]
      %v326 = vld [vmem:[%s277 + $0xc] sm:$0xf]
      %v327 = vld [vmem:[%s277 + $0x10] sm:$0xf]
      %v328 = vld [vmem:[%s277 + $0x14] sm:$0xf]
      %v329 = vld [vmem:[%s277 + $0x18] sm:$0xf]
      %v330 = vld [vmem:[%s277 + $0x1c] sm:$0xf]
      %v331 = vcombine.low %v307, %v309
      %v333 = vunpack.c.l.s4 1983009808
      %v334 = vunpack.c.0.s8 %v333
      %v335 = vlaneseq
      %v336 = vshrl.u32 %v335, 7
      %v337 = vsub.s32 %v334, %v336
      %v338 = vrot.slane %v331, %v337
      %v339 = vcombine.low %v308, %v310
      %v341 = vunpack.c.l.s4 1983009808
      %v342 = vunpack.c.0.s8 %v341
      %v343 = vlaneseq
      %v344 = vshrl.u32 %v343, 7
      %v345 = vsub.s32 %v342, %v344
      %v346 = vrot.slane %v339, %v345
      %v347 = vcombine.low %v311, %v313
      %v349 = vunpack.c.l.s4 1983009808
      %v350 = vunpack.c.0.s8 %v349
      %v351 = vlaneseq
      %v352 = vshrl.u32 %v351, 7
      %v353 = vsub.s32 %v350, %v352
      %v354 = vrot.slane %v347, %v353
      %v355 = vcombine.low %v312, %v314
      %v357 = vunpack.c.l.s4 1983009808
      %v358 = vunpack.c.0.s8 %v357
      %v359 = vlaneseq
      %v360 = vshrl.u32 %v359, 7
      %v361 = vsub.s32 %v358, %v360
      %v362 = vrot.slane %v355, %v361
      %v363 = vcombine.low %v338, %v346
      %v364 = vcombine.high %v338, %v346
      %v366 = vunpack.c.l.s4 1934713408
      %v367 = vunpack.c.0.s8 %v366
      %v368 = vlaneseq
      %v369 = vshrl.u32 %v368, 7
      %v370 = vsub.s32 %v367, %v369
      %v371 = vrot.slane %v363, %v370
      %v373 = vunpack.c.l.s4 1934713408
      %v374 = vunpack.c.0.s8 %v373
      %v375 = vlaneseq
      %v376 = vshrl.u32 %v375, 7
      %v377 = vsub.s32 %v374, %v376
      %v378 = vrot.slane %v364, %v377
      %v379 = vcombine.low %v354, %v362
      %v380 = vcombine.high %v354, %v362
      %v382 = vunpack.c.l.s4 1934713408
      %v383 = vunpack.c.0.s8 %v382
      %v384 = vlaneseq
      %v385 = vshrl.u32 %v384, 7
      %v386 = vsub.s32 %v383, %v385
      %v387 = vrot.slane %v379, %v386
      %v389 = vunpack.c.l.s4 1934713408
      %v390 = vunpack.c.0.s8 %v389
      %v391 = vlaneseq
      %v392 = vshrl.u32 %v391, 7
      %v393 = vsub.s32 %v390, %v392
      %v394 = vrot.slane %v380, %v393
      %v395 = vcombine.low %v371, %v387
      %v396 = vcombine.high %v371, %v387
      %v397 = vcombine.low %v378, %v394
      %v398 = vcombine.high %v378, %v394
      %399 = vxpose.xlu0.b32.start [1/16] %v315, 128
      %400 = vxpose.xlu0.b32.cont [2/16] 0.0, 128
      %401 = vxpose.xlu0.b32.cont [3/16] 0.0, 128
      %402 = vxpose.xlu0.b32.cont [4/16] 0.0, 128
      %403 = vxpose.xlu0.b32.cont [5/16] 0.0, 128
      %404 = vxpose.xlu0.b32.cont [6/16] 0.0, 128
      %405 = vxpose.xlu0.b32.cont [7/16] 0.0, 128
      %406 = vxpose.xlu0.b32.cont [8/16] 0.0, 128
      %407 = vxpose.xlu0.b32.cont [9/16] 0.0, 128
      %408 = vxpose.xlu0.b32.cont [10/16] 0.0, 128
      %409 = vxpose.xlu0.b32.cont [11/16] 0.0, 128
      %410 = vxpose.xlu0.b32.cont [12/16] 0.0, 128
      %411 = vxpose.xlu0.b32.cont [13/16] 0.0, 128
      %412 = vxpose.xlu0.b32.cont [14/16] 0.0, 128
      %413 = vxpose.xlu0.b32.cont [15/16] 0.0, 128
      %414 = vxpose.xlu0.b32.end [16/16] 0.0, 128
      %v415 = vpop.trf.xlu0
      %v416 = vpop.trf.xlu0
      %v417 = vpop.trf.xlu0
      %v418 = vpop.trf.xlu0
      %v419 = vpop.trf.xlu0
      %v420 = vpop.trf.xlu0
      %v421 = vpop.trf.xlu0
      %v422 = vpop.trf.xlu0
      %v423 = vpop.trf.xlu0
      %v424 = vpop.trf.xlu0
      %v425 = vpop.trf.xlu0
      %v426 = vpop.trf.xlu0
      %v427 = vpop.trf.xlu0
      %v428 = vpop.trf.xlu0
      %v429 = vpop.trf.xlu0
      %v430 = vpop.trf.xlu0
      %431 = vxpose.xlu0.b32.start [1/16] %v316, 128
      %432 = vxpose.xlu0.b32.cont [2/16] 0.0, 128
      %433 = vxpose.xlu0.b32.cont [3/16] 0.0, 128
      %434 = vxpose.xlu0.b32.cont [4/16] 0.0, 128
      %435 = vxpose.xlu0.b32.cont [5/16] 0.0, 128
      %436 = vxpose.xlu0.b32.cont [6/16] 0.0, 128
      %437 = vxpose.xlu0.b32.cont [7/16] 0.0, 128
      %438 = vxpose.xlu0.b32.cont [8/16] 0.0, 128
      %439 = vxpose.xlu0.b32.cont [9/16] 0.0, 128
      %440 = vxpose.xlu0.b32.cont [10/16] 0.0, 128
      %441 = vxpose.xlu0.b32.cont [11/16] 0.0, 128
      %442 = vxpose.xlu0.b32.cont [12/16] 0.0, 128
      %443 = vxpose.xlu0.b32.cont [13/16] 0.0, 128
      %444 = vxpose.xlu0.b32.cont [14/16] 0.0, 128
      %445 = vxpose.xlu0.b32.cont [15/16] 0.0, 128
      %446 = vxpose.xlu0.b32.end [16/16] 0.0, 128
      %v447 = vpop.trf.xlu0
      %v448 = vpop.trf.xlu0
      %v449 = vpop.trf.xlu0
      %v450 = vpop.trf.xlu0
      %v451 = vpop.trf.xlu0
      %v452 = vpop.trf.xlu0
      %v453 = vpop.trf.xlu0
      %v454 = vpop.trf.xlu0
      %v455 = vpop.trf.xlu0
      %v456 = vpop.trf.xlu0
      %v457 = vpop.trf.xlu0
      %v458 = vpop.trf.xlu0
      %v459 = vpop.trf.xlu0
      %v460 = vpop.trf.xlu0
      %v461 = vpop.trf.xlu0
      %v462 = vpop.trf.xlu0
      %463 = vxpose.xlu0.b32.start [1/16] %v317, 128
      %464 = vxpose.xlu0.b32.cont [2/16] 0.0, 128
      %465 = vxpose.xlu0.b32.cont [3/16] 0.0, 128
      %466 = vxpose.xlu0.b32.cont [4/16] 0.0, 128
      %467 = vxpose.xlu0.b32.cont [5/16] 0.0, 128
      %468 = vxpose.xlu0.b32.cont [6/16] 0.0, 128
      %469 = vxpose.xlu0.b32.cont [7/16] 0.0, 128
      %470 = vxpose.xlu0.b32.cont [8/16] 0.0, 128
      %471 = vxpose.xlu0.b32.cont [9/16] 0.0, 128
      %472 = vxpose.xlu0.b32.cont [10/16] 0.0, 128
      %473 = vxpose.xlu0.b32.cont [11/16] 0.0, 128
      %474 = vxpose.xlu0.b32.cont [12/16] 0.0, 128
      %475 = vxpose.xlu0.b32.cont [13/16] 0.0, 128
      %476 = vxpose.xlu0.b32.cont [14/16] 0.0, 128
      %477 = vxpose.xlu0.b32.cont [15/16] 0.0, 128
      %478 = vxpose.xlu0.b32.end [16/16] 0.0, 128
      %v479 = vpop.trf.xlu0
      %v480 = vpop.trf.xlu0
      %v481 = vpop.trf.xlu0
      %v482 = vpop.trf.xlu0
      %v483 = vpop.trf.xlu0
      %v484 = vpop.trf.xlu0
      %v485 = vpop.trf.xlu0
      %v486 = vpop.trf.xlu0
      %v487 = vpop.trf.xlu0
      %v488 = vpop.trf.xlu0
      %v489 = vpop.trf.xlu0
      %v490 = vpop.trf.xlu0
      %v491 = vpop.trf.xlu0
      %v492 = vpop.trf.xlu0
      %v493 = vpop.trf.xlu0
      %v494 = vpop.trf.xlu0
      %495 = vxpose.xlu0.b32.start [1/16] %v318, 128
      %496 = vxpose.xlu0.b32.cont [2/16] 0.0, 128
      %497 = vxpose.xlu0.b32.cont [3/16] 0.0, 128
      %498 = vxpose.xlu0.b32.cont [4/16] 0.0, 128
      %499 = vxpose.xlu0.b32.cont [5/16] 0.0, 128
      %500 = vxpose.xlu0.b32.cont [6/16] 0.0, 128
      %501 = vxpose.xlu0.b32.cont [7/16] 0.0, 128
      %502 = vxpose.xlu0.b32.cont [8/16] 0.0, 128
      %503 = vxpose.xlu0.b32.cont [9/16] 0.0, 128
      %504 = vxpose.xlu0.b32.cont [10/16] 0.0, 128
      %505 = vxpose.xlu0.b32.cont [11/16] 0.0, 128
      %506 = vxpose.xlu0.b32.cont [12/16] 0.0, 128
      %507 = vxpose.xlu0.b32.cont [13/16] 0.0, 128
      %508 = vxpose.xlu0.b32.cont [14/16] 0.0, 128
      %509 = vxpose.xlu0.b32.cont [15/16] 0.0, 128
      %510 = vxpose.xlu0.b32.end [16/16] 0.0, 128
      %v511 = vpop.trf.xlu0
      %v512 = vpop.trf.xlu0
      %v513 = vpop.trf.xlu0
      %v514 = vpop.trf.xlu0
      %v515 = vpop.trf.xlu0
      %v516 = vpop.trf.xlu0
      %v517 = vpop.trf.xlu0
      %v518 = vpop.trf.xlu0
      %v519 = vpop.trf.xlu0
      %v520 = vpop.trf.xlu0
      %v521 = vpop.trf.xlu0
      %v522 = vpop.trf.xlu0
      %v523 = vpop.trf.xlu0
      %v524 = vpop.trf.xlu0
      %v525 = vpop.trf.xlu0
      %v526 = vpop.trf.xlu0
      %527 = vxpose.xlu0.b32.start [1/16] %v319, 128
      %528 = vxpose.xlu0.b32.cont [2/16] 0.0, 128
      %529 = vxpose.xlu0.b32.cont [3/16] 0.0, 128
      %530 = vxpose.xlu0.b32.cont [4/16] 0.0, 128
      %531 = vxpose.xlu0.b32.cont [5/16] 0.0, 128
      %532 = vxpose.xlu0.b32.cont [6/16] 0.0, 128
      %533 = vxpose.xlu0.b32.cont [7/16] 0.0, 128
      %534 = vxpose.xlu0.b32.cont [8/16] 0.0, 128
      %535 = vxpose.xlu0.b32.cont [9/16] 0.0, 128
      %536 = vxpose.xlu0.b32.cont [10/16] 0.0, 128
      %537 = vxpose.xlu0.b32.cont [11/16] 0.0, 128
      %538 = vxpose.xlu0.b32.cont [12/16] 0.0, 128
      %539 = vxpose.xlu0.b32.cont [13/16] 0.0, 128
      %540 = vxpose.xlu0.b32.cont [14/16] 0.0, 128
      %541 = vxpose.xlu0.b32.cont [15/16] 0.0, 128
      %542 = vxpose.xlu0.b32.end [16/16] 0.0, 128
      %v543 = vpop.trf.xlu0
      %v544 = vpop.trf.xlu0
      %v545 = vpop.trf.xlu0
      %v546 = vpop.trf.xlu0
      %v547 = vpop.trf.xlu0
      %v548 = vpop.trf.xlu0
      %v549 = vpop.trf.xlu0
      %v550 = vpop.trf.xlu0
      %v551 = vpop.trf.xlu0
      %v552 = vpop.trf.xlu0
      %v553 = vpop.trf.xlu0
      %v554 = vpop.trf.xlu0
      %v555 = vpop.trf.xlu0
      %v556 = vpop.trf.xlu0
      %v557 = vpop.trf.xlu0
      %v558 = vpop.trf.xlu0
      %559 = vxpose.xlu0.b32.start [1/16] %v320, 128
      %560 = vxpose.xlu0.b32.cont [2/16] 0.0, 128
      %561 = vxpose.xlu0.b32.cont [3/16] 0.0, 128
      %562 = vxpose.xlu0.b32.cont [4/16] 0.0, 128
      %563 = vxpose.xlu0.b32.cont [5/16] 0.0, 128
      %564 = vxpose.xlu0.b32.cont [6/16] 0.0, 128
      %565 = vxpose.xlu0.b32.cont [7/16] 0.0, 128
      %566 = vxpose.xlu0.b32.cont [8/16] 0.0, 128
      %567 = vxpose.xlu0.b32.cont [9/16] 0.0, 128
      %568 = vxpose.xlu0.b32.cont [10/16] 0.0, 128
      %569 = vxpose.xlu0.b32.cont [11/16] 0.0, 128
      %570 = vxpose.xlu0.b32.cont [12/16] 0.0, 128
      %571 = vxpose.xlu0.b32.cont [13/16] 0.0, 128
      %572 = vxpose.xlu0.b32.cont [14/16] 0.0, 128
      %573 = vxpose.xlu0.b32.cont [15/16] 0.0, 128
      %574 = vxpose.xlu0.b32.end [16/16] 0.0, 128
      %v575 = vpop.trf.xlu0
      %v576 = vpop.trf.xlu0
      %v577 = vpop.trf.xlu0
      %v578 = vpop.trf.xlu0
      %v579 = vpop.trf.xlu0
      %v580 = vpop.trf.xlu0
      %v581 = vpop.trf.xlu0
      %v582 = vpop.trf.xlu0
      %v583 = vpop.trf.xlu0
      %v584 = vpop.trf.xlu0
      %v585 = vpop.trf.xlu0
      %v586 = vpop.trf.xlu0
      %v587 = vpop.trf.xlu0
      %v588 = vpop.trf.xlu0
      %v589 = vpop.trf.xlu0
      %v590 = vpop.trf.xlu0
      %591 = vxpose.xlu0.b32.start [1/16] %v321, 128
      %592 = vxpose.xlu0.b32.cont [2/16] 0.0, 128
      %593 = vxpose.xlu0.b32.cont [3/16] 0.0, 128
      %594 = vxpose.xlu0.b32.cont [4/16] 0.0, 128
      %595 = vxpose.xlu0.b32.cont [5/16] 0.0, 128
      %596 = vxpose.xlu0.b32.cont [6/16] 0.0, 128
      %597 = vxpose.xlu0.b32.cont [7/16] 0.0, 128
      %598 = vxpose.xlu0.b32.cont [8/16] 0.0, 128
      %599 = vxpose.xlu0.b32.cont [9/16] 0.0, 128
      %600 = vxpose.xlu0.b32.cont [10/16] 0.0, 128
      %601 = vxpose.xlu0.b32.cont [11/16] 0.0, 128
      %602 = vxpose.xlu0.b32.cont [12/16] 0.0, 128
      %603 = vxpose.xlu0.b32.cont [13/16] 0.0, 128
      %604 = vxpose.xlu0.b32.cont [14/16] 0.0, 128
      %605 = vxpose.xlu0.b32.cont [15/16] 0.0, 128
      %606 = vxpose.xlu0.b32.end [16/16] 0.0, 128
      %v607 = vpop.trf.xlu0
      %v608 = vpop.trf.xlu0
      %v609 = vpop.trf.xlu0
      %v610 = vpop.trf.xlu0
      %v611 = vpop.trf.xlu0
      %v612 = vpop.trf.xlu0
      %v613 = vpop.trf.xlu0
      %v614 = vpop.trf.xlu0
      %v615 = vpop.trf.xlu0
      %v616 = vpop.trf.xlu0
      %v617 = vpop.trf.xlu0
      %v618 = vpop.trf.xlu0
      %v619 = vpop.trf.xlu0
      %v620 = vpop.trf.xlu0
      %v621 = vpop.trf.xlu0
      %v622 = vpop.trf.xlu0
      %623 = vxpose.xlu0.b32.start [1/16] %v322, 128
      %624 = vxpose.xlu0.b32.cont [2/16] 0.0, 128
      %625 = vxpose.xlu0.b32.cont [3/16] 0.0, 128
      %626 = vxpose.xlu0.b32.cont [4/16] 0.0, 128
      %627 = vxpose.xlu0.b32.cont [5/16] 0.0, 128
      %628 = vxpose.xlu0.b32.cont [6/16] 0.0, 128
      %629 = vxpose.xlu0.b32.cont [7/16] 0.0, 128
      %630 = vxpose.xlu0.b32.cont [8/16] 0.0, 128
      %631 = vxpose.xlu0.b32.cont [9/16] 0.0, 128
      %632 = vxpose.xlu0.b32.cont [10/16] 0.0, 128
      %633 = vxpose.xlu0.b32.cont [11/16] 0.0, 128
      %634 = vxpose.xlu0.b32.cont [12/16] 0.0, 128
      %635 = vxpose.xlu0.b32.cont [13/16] 0.0, 128
      %636 = vxpose.xlu0.b32.cont [14/16] 0.0, 128
      %637 = vxpose.xlu0.b32.cont [15/16] 0.0, 128
      %638 = vxpose.xlu0.b32.end [16/16] 0.0, 128
      %v639 = vpop.trf.xlu0
      %v640 = vpop.trf.xlu0
      %v641 = vpop.trf.xlu0
      %v642 = vpop.trf.xlu0
      %v643 = vpop.trf.xlu0
      %v644 = vpop.trf.xlu0
      %v645 = vpop.trf.xlu0
      %v646 = vpop.trf.xlu0
      %v647 = vpop.trf.xlu0
      %v648 = vpop.trf.xlu0
      %v649 = vpop.trf.xlu0
      %v650 = vpop.trf.xlu0
      %v651 = vpop.trf.xlu0
      %v652 = vpop.trf.xlu0
      %v653 = vpop.trf.xlu0
      %v654 = vpop.trf.xlu0
      %v655 = vcombine.low %v415, %v479
      %v656 = vcombine.high %v415, %v479
      %v658 = vunpack.c.l.s4 1983009808
      %v659 = vunpack.c.0.s8 %v658
      %v660 = vlaneseq
      %v661 = vshrl.u32 %v660, 7
      %v662 = vsub.s32 %v659, %v661
      %v663 = vrot.slane %v655, %v662
      %v665 = vunpack.c.l.s4 1983009808
      %v666 = vunpack.c.0.s8 %v665
      %v667 = vlaneseq
      %v668 = vshrl.u32 %v667, 7
      %v669 = vsub.s32 %v666, %v668
      %v670 = vrot.slane %v656, %v669
      %v671 = vcombine.low %v447, %v511
      %v672 = vcombine.high %v447, %v511
      %v674 = vunpack.c.l.s4 1983009808
      %v675 = vunpack.c.0.s8 %v674
      %v676 = vlaneseq
      %v677 = vshrl.u32 %v676, 7
      %v678 = vsub.s32 %v675, %v677
      %v679 = vrot.slane %v671, %v678
      %v681 = vunpack.c.l.s4 1983009808
      %v682 = vunpack.c.0.s8 %v681
      %v683 = vlaneseq
      %v684 = vshrl.u32 %v683, 7
      %v685 = vsub.s32 %v682, %v684
      %v686 = vrot.slane %v672, %v685
      %v687 = vcombine.low %v543, %v607
      %v688 = vcombine.high %v543, %v607
      %v690 = vunpack.c.l.s4 1983009808
      %v691 = vunpack.c.0.s8 %v690
      %v692 = vlaneseq
      %v693 = vshrl.u32 %v692, 7
      %v694 = vsub.s32 %v691, %v693
      %v695 = vrot.slane %v687, %v694
      %v697 = vunpack.c.l.s4 1983009808
      %v698 = vunpack.c.0.s8 %v697
      %v699 = vlaneseq
      %v700 = vshrl.u32 %v699, 7
      %v701 = vsub.s32 %v698, %v700
      %v702 = vrot.slane %v688, %v701
      %v703 = vcombine.low %v575, %v639
      %v704 = vcombine.high %v575, %v639
      %v706 = vunpack.c.l.s4 1983009808
      %v707 = vunpack.c.0.s8 %v706
      %v708 = vlaneseq
      %v709 = vshrl.u32 %v708, 7
      %v710 = vsub.s32 %v707, %v709
      %v711 = vrot.slane %v703, %v710
      %v713 = vunpack.c.l.s4 1983009808
      %v714 = vunpack.c.0.s8 %v713
      %v715 = vlaneseq
      %v716 = vshrl.u32 %v715, 7
      %v717 = vsub.s32 %v714, %v716
      %v718 = vrot.slane %v704, %v717
      %v719 = vcombine.low %v663, %v679
      %v720 = vcombine.high %v663, %v679
      %v722 = vunpack.c.l.s4 1934713408
      %v723 = vunpack.c.0.s8 %v722
      %v724 = vlaneseq
      %v725 = vshrl.u32 %v724, 7
      %v726 = vsub.s32 %v723, %v725
      %v727 = vrot.slane %v719, %v726
      %v729 = vunpack.c.l.s4 1934713408
      %v730 = vunpack.c.0.s8 %v729
      %v731 = vlaneseq
      %v732 = vshrl.u32 %v731, 7
      %v733 = vsub.s32 %v730, %v732
      %v734 = vrot.slane %v720, %v733
      %v735 = vcombine.low %v670, %v686
      %v736 = vcombine.high %v670, %v686
      %v738 = vunpack.c.l.s4 1934713408
      %v739 = vunpack.c.0.s8 %v738
      %v740 = vlaneseq
      %v741 = vshrl.u32 %v740, 7
      %v742 = vsub.s32 %v739, %v741
      %v743 = vrot.slane %v735, %v742
      %v745 = vunpack.c.l.s4 1934713408
      %v746 = vunpack.c.0.s8 %v745
      %v747 = vlaneseq
      %v748 = vshrl.u32 %v747, 7
      %v749 = vsub.s32 %v746, %v748
      %v750 = vrot.slane %v736, %v749
      %v751 = vcombine.low %v695, %v711
      %v752 = vcombine.high %v695, %v711
      %v754 = vunpack.c.l.s4 1934713408
      %v755 = vunpack.c.0.s8 %v754
      %v756 = vlaneseq
      %v757 = vshrl.u32 %v756, 7
      %v758 = vsub.s32 %v755, %v757
      %v759 = vrot.slane %v751, %v758
      %v761 = vunpack.c.l.s4 1934713408
      %v762 = vunpack.c.0.s8 %v761
      %v763 = vlaneseq
      %v764 = vshrl.u32 %v763, 7
      %v765 = vsub.s32 %v762, %v764
      %v766 = vrot.slane %v752, %v765
      %v767 = vcombine.low %v702, %v718
      %v768 = vcombine.high %v702, %v718
      %v770 = vunpack.c.l.s4 1934713408
      %v771 = vunpack.c.0.s8 %v770
      %v772 = vlaneseq
      %v773 = vshrl.u32 %v772, 7
      %v774 = vsub.s32 %v771, %v773
      %v775 = vrot.slane %v767, %v774
      %v777 = vunpack.c.l.s4 1934713408
      %v778 = vunpack.c.0.s8 %v777
      %v779 = vlaneseq
      %v780 = vshrl.u32 %v779, 7
      %v781 = vsub.s32 %v778, %v780
      %v782 = vrot.slane %v768, %v781
      %v783 = vcombine.low %v727, %v759
      %v784 = vcombine.high %v727, %v759
      %v785 = vcombine.low %v734, %v766
      %v786 = vcombine.high %v734, %v766
      %v787 = vcombine.low %v743, %v775
      %v788 = vcombine.high %v743, %v775
      %v789 = vcombine.low %v750, %v782
      %v790 = vcombine.high %v750, %v782
      %791 = vxpose.xlu0.b32.start [1/16] %v783, 128
      %792 = vxpose.xlu0.b32.cont [2/16] 0.0, 128
      %793 = vxpose.xlu0.b32.cont [3/16] 0.0, 128
      %794 = vxpose.xlu0.b32.cont [4/16] 0.0, 128
      %795 = vxpose.xlu0.b32.cont [5/16] 0.0, 128
      %796 = vxpose.xlu0.b32.cont [6/16] 0.0, 128
      %797 = vxpose.xlu0.b32.cont [7/16] 0.0, 128
      %798 = vxpose.xlu0.b32.cont [8/16] 0.0, 128
      %799 = vxpose.xlu0.b32.cont [9/16] 0.0, 128
      %800 = vxpose.xlu0.b32.cont [10/16] 0.0, 128
      %801 = vxpose.xlu0.b32.cont [11/16] 0.0, 128
      %802 = vxpose.xlu0.b32.cont [12/16] 0.0, 128
      %803 = vxpose.xlu0.b32.cont [13/16] 0.0, 128
      %804 = vxpose.xlu0.b32.cont [14/16] 0.0, 128
      %805 = vxpose.xlu0.b32.cont [15/16] 0.0, 128
      %806 = vxpose.xlu0.b32.end [16/16] 0.0, 128
      %v807 = vpop.trf.xlu0
      %v808 = vpop.trf.xlu0
      %v809 = vpop.trf.xlu0
      %v810 = vpop.trf.xlu0
      %v811 = vpop.trf.xlu0
      %v812 = vpop.trf.xlu0
      %v813 = vpop.trf.xlu0
      %v814 = vpop.trf.xlu0
      %v815 = vpop.trf.xlu0
      %v816 = vpop.trf.xlu0
      %v817 = vpop.trf.xlu0
      %v818 = vpop.trf.xlu0
      %v819 = vpop.trf.xlu0
      %v820 = vpop.trf.xlu0
      %v821 = vpop.trf.xlu0
      %v822 = vpop.trf.xlu0
      %823 = vxpose.xlu0.b32.start [1/16] %v784, 128
      %824 = vxpose.xlu0.b32.cont [2/16] 0.0, 128
      %825 = vxpose.xlu0.b32.cont [3/16] 0.0, 128
      %826 = vxpose.xlu0.b32.cont [4/16] 0.0, 128
      %827 = vxpose.xlu0.b32.cont [5/16] 0.0, 128
      %828 = vxpose.xlu0.b32.cont [6/16] 0.0, 128
      %829 = vxpose.xlu0.b32.cont [7/16] 0.0, 128
      %830 = vxpose.xlu0.b32.cont [8/16] 0.0, 128
      %831 = vxpose.xlu0.b32.cont [9/16] 0.0, 128
      %832 = vxpose.xlu0.b32.cont [10/16] 0.0, 128
      %833 = vxpose.xlu0.b32.cont [11/16] 0.0, 128
      %834 = vxpose.xlu0.b32.cont [12/16] 0.0, 128
      %835 = vxpose.xlu0.b32.cont [13/16] 0.0, 128
      %836 = vxpose.xlu0.b32.cont [14/16] 0.0, 128
      %837 = vxpose.xlu0.b32.cont [15/16] 0.0, 128
      %838 = vxpose.xlu0.b32.end [16/16] 0.0, 128
      %v839 = vpop.trf.xlu0
      %v840 = vpop.trf.xlu0
      %v841 = vpop.trf.xlu0
      %v842 = vpop.trf.xlu0
      %v843 = vpop.trf.xlu0
      %v844 = vpop.trf.xlu0
      %v845 = vpop.trf.xlu0
      %v846 = vpop.trf.xlu0
      %v847 = vpop.trf.xlu0
      %v848 = vpop.trf.xlu0
      %v849 = vpop.trf.xlu0
      %v850 = vpop.trf.xlu0
      %v851 = vpop.trf.xlu0
      %v852 = vpop.trf.xlu0
      %v853 = vpop.trf.xlu0
      %v854 = vpop.trf.xlu0
      %855 = vxpose.xlu0.b32.start [1/16] %v785, 128
      %856 = vxpose.xlu0.b32.cont [2/16] 0.0, 128
      %857 = vxpose.xlu0.b32.cont [3/16] 0.0, 128
      %858 = vxpose.xlu0.b32.cont [4/16] 0.0, 128
      %859 = vxpose.xlu0.b32.cont [5/16] 0.0, 128
      %860 = vxpose.xlu0.b32.cont [6/16] 0.0, 128
      %861 = vxpose.xlu0.b32.cont [7/16] 0.0, 128
      %862 = vxpose.xlu0.b32.cont [8/16] 0.0, 128
      %863 = vxpose.xlu0.b32.cont [9/16] 0.0, 128
      %864 = vxpose.xlu0.b32.cont [10/16] 0.0, 128
      %865 = vxpose.xlu0.b32.cont [11/16] 0.0, 128
      %866 = vxpose.xlu0.b32.cont [12/16] 0.0, 128
      %867 = vxpose.xlu0.b32.cont [13/16] 0.0, 128
      %868 = vxpose.xlu0.b32.cont [14/16] 0.0, 128
      %869 = vxpose.xlu0.b32.cont [15/16] 0.0, 128
      %870 = vxpose.xlu0.b32.end [16/16] 0.0, 128
      %v871 = vpop.trf.xlu0
      %v872 = vpop.trf.xlu0
      %v873 = vpop.trf.xlu0
      %v874 = vpop.trf.xlu0
      %v875 = vpop.trf.xlu0
      %v876 = vpop.trf.xlu0
      %v877 = vpop.trf.xlu0
      %v878 = vpop.trf.xlu0
      %v879 = vpop.trf.xlu0
      %v880 = vpop.trf.xlu0
      %v881 = vpop.trf.xlu0
      %v882 = vpop.trf.xlu0
      %v883 = vpop.trf.xlu0
      %v884 = vpop.trf.xlu0
      %v885 = vpop.trf.xlu0
      %v886 = vpop.trf.xlu0
      %887 = vxpose.xlu0.b32.start [1/16] %v786, 128
      %888 = vxpose.xlu0.b32.cont [2/16] 0.0, 128
      %889 = vxpose.xlu0.b32.cont [3/16] 0.0, 128
      %890 = vxpose.xlu0.b32.cont [4/16] 0.0, 128
      %891 = vxpose.xlu0.b32.cont [5/16] 0.0, 128
      %892 = vxpose.xlu0.b32.cont [6/16] 0.0, 128
      %893 = vxpose.xlu0.b32.cont [7/16] 0.0, 128
      %894 = vxpose.xlu0.b32.cont [8/16] 0.0, 128
      %895 = vxpose.xlu0.b32.cont [9/16] 0.0, 128
      %896 = vxpose.xlu0.b32.cont [10/16] 0.0, 128
      %897 = vxpose.xlu0.b32.cont [11/16] 0.0, 128
      %898 = vxpose.xlu0.b32.cont [12/16] 0.0, 128
      %899 = vxpose.xlu0.b32.cont [13/16] 0.0, 128
      %900 = vxpose.xlu0.b32.cont [14/16] 0.0, 128
      %901 = vxpose.xlu0.b32.cont [15/16] 0.0, 128
      %902 = vxpose.xlu0.b32.end [16/16] 0.0, 128
      %v903 = vpop.trf.xlu0
      %v904 = vpop.trf.xlu0
      %v905 = vpop.trf.xlu0
      %v906 = vpop.trf.xlu0
      %v907 = vpop.trf.xlu0
      %v908 = vpop.trf.xlu0
      %v909 = vpop.trf.xlu0
      %v910 = vpop.trf.xlu0
      %v911 = vpop.trf.xlu0
      %v912 = vpop.trf.xlu0
      %v913 = vpop.trf.xlu0
      %v914 = vpop.trf.xlu0
      %v915 = vpop.trf.xlu0
      %v916 = vpop.trf.xlu0
      %v917 = vpop.trf.xlu0
      %v918 = vpop.trf.xlu0
      %919 = vxpose.xlu0.b32.start [1/16] %v787, 128
      %920 = vxpose.xlu0.b32.cont [2/16] 0.0, 128
      %921 = vxpose.xlu0.b32.cont [3/16] 0.0, 128
      %922 = vxpose.xlu0.b32.cont [4/16] 0.0, 128
      %923 = vxpose.xlu0.b32.cont [5/16] 0.0, 128
      %924 = vxpose.xlu0.b32.cont [6/16] 0.0, 128
      %925 = vxpose.xlu0.b32.cont [7/16] 0.0, 128
      %926 = vxpose.xlu0.b32.cont [8/16] 0.0, 128
      %927 = vxpose.xlu0.b32.cont [9/16] 0.0, 128
      %928 = vxpose.xlu0.b32.cont [10/16] 0.0, 128
      %929 = vxpose.xlu0.b32.cont [11/16] 0.0, 128
      %930 = vxpose.xlu0.b32.cont [12/16] 0.0, 128
      %931 = vxpose.xlu0.b32.cont [13/16] 0.0, 128
      %932 = vxpose.xlu0.b32.cont [14/16] 0.0, 128
      %933 = vxpose.xlu0.b32.cont [15/16] 0.0, 128
      %934 = vxpose.xlu0.b32.end [16/16] 0.0, 128
      %v935 = vpop.trf.xlu0
      %v936 = vpop.trf.xlu0
      %v937 = vpop.trf.xlu0
      %v938 = vpop.trf.xlu0
      %v939 = vpop.trf.xlu0
      %v940 = vpop.trf.xlu0
      %v941 = vpop.trf.xlu0
      %v942 = vpop.trf.xlu0
      %v943 = vpop.trf.xlu0
      %v944 = vpop.trf.xlu0
      %v945 = vpop.trf.xlu0
      %v946 = vpop.trf.xlu0
      %v947 = vpop.trf.xlu0
      %v948 = vpop.trf.xlu0
      %v949 = vpop.trf.xlu0
      %v950 = vpop.trf.xlu0
      %951 = vxpose.xlu0.b32.start [1/16] %v788, 128
      %952 = vxpose.xlu0.b32.cont [2/16] 0.0, 128
      %953 = vxpose.xlu0.b32.cont [3/16] 0.0, 128
      %954 = vxpose.xlu0.b32.cont [4/16] 0.0, 128
      %955 = vxpose.xlu0.b32.cont [5/16] 0.0, 128
      %956 = vxpose.xlu0.b32.cont [6/16] 0.0, 128
      %957 = vxpose.xlu0.b32.cont [7/16] 0.0, 128
      %958 = vxpose.xlu0.b32.cont [8/16] 0.0, 128
      %959 = vxpose.xlu0.b32.cont [9/16] 0.0, 128
      %960 = vxpose.xlu0.b32.cont [10/16] 0.0, 128
      %961 = vxpose.xlu0.b32.cont [11/16] 0.0, 128
      %962 = vxpose.xlu0.b32.cont [12/16] 0.0, 128
      %963 = vxpose.xlu0.b32.cont [13/16] 0.0, 128
      %964 = vxpose.xlu0.b32.cont [14/16] 0.0, 128
      %965 = vxpose.xlu0.b32.cont [15/16] 0.0, 128
      %966 = vxpose.xlu0.b32.end [16/16] 0.0, 128
      %v967 = vpop.trf.xlu0
      %v968 = vpop.trf.xlu0
      %v969 = vpop.trf.xlu0
      %v970 = vpop.trf.xlu0
      %v971 = vpop.trf.xlu0
      %v972 = vpop.trf.xlu0
      %v973 = vpop.trf.xlu0
      %v974 = vpop.trf.xlu0
      %v975 = vpop.trf.xlu0
      %v976 = vpop.trf.xlu0
      %v977 = vpop.trf.xlu0
      %v978 = vpop.trf.xlu0
      %v979 = vpop.trf.xlu0
      %v980 = vpop.trf.xlu0
      %v981 = vpop.trf.xlu0
      %v982 = vpop.trf.xlu0
      %983 = vxpose.xlu0.b32.start [1/16] %v789, 128
      %984 = vxpose.xlu0.b32.cont [2/16] 0.0, 128
      %985 = vxpose.xlu0.b32.cont [3/16] 0.0, 128
      %986 = vxpose.xlu0.b32.cont [4/16] 0.0, 128
      %987 = vxpose.xlu0.b32.cont [5/16] 0.0, 128
      %988 = vxpose.xlu0.b32.cont [6/16] 0.0, 128
      %989 = vxpose.xlu0.b32.cont [7/16] 0.0, 128
      %990 = vxpose.xlu0.b32.cont [8/16] 0.0, 128
      %991 = vxpose.xlu0.b32.cont [9/16] 0.0, 128
      %992 = vxpose.xlu0.b32.cont [10/16] 0.0, 128
      %993 = vxpose.xlu0.b32.cont [11/16] 0.0, 128
      %994 = vxpose.xlu0.b32.cont [12/16] 0.0, 128
      %995 = vxpose.xlu0.b32.cont [13/16] 0.0, 128
      %996 = vxpose.xlu0.b32.cont [14/16] 0.0, 128
      %997 = vxpose.xlu0.b32.cont [15/16] 0.0, 128
      %998 = vxpose.xlu0.b32.end [16/16] 0.0, 128
      %v999 = vpop.trf.xlu0
      %v1000 = vpop.trf.xlu0
      %v1001 = vpop.trf.xlu0
      %v1002 = vpop.trf.xlu0
      %v1003 = vpop.trf.xlu0
      %v1004 = vpop.trf.xlu0
      %v1005 = vpop.trf.xlu0
      %v1006 = vpop.trf.xlu0
      %v1007 = vpop.trf.xlu0
      %v1008 = vpop.trf.xlu0
      %v1009 = vpop.trf.xlu0
      %v1010 = vpop.trf.xlu0
      %v1011 = vpop.trf.xlu0
      %v1012 = vpop.trf.xlu0
      %v1013 = vpop.trf.xlu0
      %v1014 = vpop.trf.xlu0
      %1015 = vxpose.xlu0.b32.start [1/16] %v790, 128
      %1016 = vxpose.xlu0.b32.cont [2/16] 0.0, 128
      %1017 = vxpose.xlu0.b32.cont [3/16] 0.0, 128
      %1018 = vxpose.xlu0.b32.cont [4/16] 0.0, 128
      %1019 = vxpose.xlu0.b32.cont [5/16] 0.0, 128
      %1020 = vxpose.xlu0.b32.cont [6/16] 0.0, 128
      %1021 = vxpose.xlu0.b32.cont [7/16] 0.0, 128
      %1022 = vxpose.xlu0.b32.cont [8/16] 0.0, 128
      %1023 = vxpose.xlu0.b32.cont [9/16] 0.0, 128
      %1024 = vxpose.xlu0.b32.cont [10/16] 0.0, 128
      %1025 = vxpose.xlu0.b32.cont [11/16] 0.0, 128
      %1026 = vxpose.xlu0.b32.cont [12/16] 0.0, 128
      %1027 = vxpose.xlu0.b32.cont [13/16] 0.0, 128
      %1028 = vxpose.xlu0.b32.cont [14/16] 0.0, 128
      %1029 = vxpose.xlu0.b32.cont [15/16] 0.0, 128
      %1030 = vxpose.xlu0.b32.end [16/16] 0.0, 128
      %v1031 = vpop.trf.xlu0
      %v1032 = vpop.trf.xlu0
      %v1033 = vpop.trf.xlu0
      %v1034 = vpop.trf.xlu0
      %v1035 = vpop.trf.xlu0
      %v1036 = vpop.trf.xlu0
      %v1037 = vpop.trf.xlu0
      %v1038 = vpop.trf.xlu0
      %v1039 = vpop.trf.xlu0
      %v1040 = vpop.trf.xlu0
      %v1041 = vpop.trf.xlu0
      %v1042 = vpop.trf.xlu0
      %v1043 = vpop.trf.xlu0
      %v1044 = vpop.trf.xlu0
      %v1045 = vpop.trf.xlu0
      %v1046 = vpop.trf.xlu0
      %v1047 = vcombine.low %v807, %v871
      %v1049 = vunpack.c.l.s4 1983009808
      %v1050 = vunpack.c.0.s8 %v1049
      %v1051 = vlaneseq
      %v1052 = vshrl.u32 %v1051, 7
      %v1053 = vsub.s32 %v1050, %v1052
      %v1054 = vrot.slane %v1047, %v1053
      %v1055 = vcombine.low %v839, %v903
      %v1057 = vunpack.c.l.s4 1983009808
      %v1058 = vunpack.c.0.s8 %v1057
      %v1059 = vlaneseq
      %v1060 = vshrl.u32 %v1059, 7
      %v1061 = vsub.s32 %v1058, %v1060
      %v1062 = vrot.slane %v1055, %v1061
      %v1063 = vcombine.low %v935, %v999
      %v1065 = vunpack.c.l.s4 1983009808
      %v1066 = vunpack.c.0.s8 %v1065
      %v1067 = vlaneseq
      %v1068 = vshrl.u32 %v1067, 7
      %v1069 = vsub.s32 %v1066, %v1068
      %v1070 = vrot.slane %v1063, %v1069
      %v1071 = vcombine.low %v967, %v1031
      %v1073 = vunpack.c.l.s4 1983009808
      %v1074 = vunpack.c.0.s8 %v1073
      %v1075 = vlaneseq
      %v1076 = vshrl.u32 %v1075, 7
      %v1077 = vsub.s32 %v1074, %v1076
      %v1078 = vrot.slane %v1071, %v1077
      %v1079 = vcombine.low %v1054, %v1062
      %v1080 = vcombine.high %v1054, %v1062
      %v1082 = vunpack.c.l.s4 1934713408
      %v1083 = vunpack.c.0.s8 %v1082
      %v1084 = vlaneseq
      %v1085 = vshrl.u32 %v1084, 7
      %v1086 = vsub.s32 %v1083, %v1085
      %v1087 = vrot.slane %v1079, %v1086
      %v1089 = vunpack.c.l.s4 1934713408
      %v1090 = vunpack.c.0.s8 %v1089
      %v1091 = vlaneseq
      %v1092 = vshrl.u32 %v1091, 7
      %v1093 = vsub.s32 %v1090, %v1092
      %v1094 = vrot.slane %v1080, %v1093
      %v1095 = vcombine.low %v1070, %v1078
      %v1096 = vcombine.high %v1070, %v1078
      %v1098 = vunpack.c.l.s4 1934713408
      %v1099 = vunpack.c.0.s8 %v1098
      %v1100 = vlaneseq
      %v1101 = vshrl.u32 %v1100, 7
      %v1102 = vsub.s32 %v1099, %v1101
      %v1103 = vrot.slane %v1095, %v1102
      %v1105 = vunpack.c.l.s4 1934713408
      %v1106 = vunpack.c.0.s8 %v1105
      %v1107 = vlaneseq
      %v1108 = vshrl.u32 %v1107, 7
      %v1109 = vsub.s32 %v1106, %v1108
      %v1110 = vrot.slane %v1096, %v1109
      %v1111 = vcombine.low %v1087, %v1103
      %v1112 = vcombine.high %v1087, %v1103
      %v1113 = vcombine.low %v1094, %v1110
      %v1114 = vcombine.high %v1094, %v1110
      %vm1115 = vcmask 64512
      %v1117 = vsel %vm1115, %v395, 0
      %1119 = vmatprep.subr.mxu0 0.0
      %1120 = vmatpush1.msra.mxu0 %v1111
      %1121 = vmatprep.subr.mxu0 0.0
      %1122 = vmatpush1.msra.mxu0 0.0
      %1123 = vmatprep.subr.mxu0 0.0
      %1124 = vmatpush1.msra.mxu0 0.0
      %1125 = vmatprep.subr.mxu0 0.0
      %1126 = vmatpush1.msra.mxu0 0.0
      %1127 = vmatprep.subr.mxu0 0.0
      %1128 = vmatpush1.msra.mxu0 0.0
      %1129 = vmatprep.subr.mxu0 0.0
      %1130 = vmatpush1.msra.mxu0 0.0
      %1131 = vmatprep.subr.mxu0 0.0
      %1132 = vmatpush1.msra.mxu0 0.0
      %1133 = vmatprep.subr.mxu0 0.0
      %1134 = vmatpush1.msra.mxu0 0.0
      %1135 = vmatprep.subr.mxu0 0.0
      %1136 = vmatpush1.msra.mxu0 0.0
      %1137 = vmatprep.subr.mxu0 0.0
      %1138 = vmatpush1.msra.mxu0 0.0
      %1139 = vmatprep.subr.mxu0 0.0
      %1140 = vmatpush1.msra.mxu0 0.0
      %1141 = vmatprep.subr.mxu0 0.0
      %1142 = vmatpush1.msra.mxu0 0.0
      %1143 = vmatprep.subr.mxu0 0.0
      %1144 = vmatpush1.msra.mxu0 0.0
      %1145 = vmatprep.subr.mxu0 0.0
      %1146 = vmatpush1.msra.mxu0 0.0
      %1147 = vmatprep.subr.mxu0 0.0
      %1148 = vmatpush1.msra.mxu0 0.0
      %1149 = vmatprep.subr.mxu0 0.0
      %1150 = vmatpush1.msra.mxu0 0.0
      %1151 = vmatprep.subr.mxu0 0.0
      %1152 = vmatpush1.msra.mxu0 0.0
      %1153 = vmatprep.subr.mxu0 0.0
      %1154 = vmatpush1.msra.mxu0 0.0
      %1155 = vmatprep.subr.mxu0 0.0
      %1156 = vmatpush1.msra.mxu0 0.0
      %1157 = vmatprep.subr.mxu0 0.0
      %1158 = vmatpush1.msra.mxu0 0.0
      %1159 = vmatprep.subr.mxu0 0.0
      %1160 = vmatpush1.msra.mxu0 0.0
      %1161 = vmatprep.subr.mxu0 0.0
      %1162 = vmatpush1.msra.mxu0 0.0
      %1163 = vmatprep.subr.mxu0 0.0
      %1164 = vmatpush1.msra.mxu0 0.0
      %1165 = vmatprep.subr.mxu0 0.0
      %1166 = vmatpush1.msra.mxu0 0.0
      %1167 = vmatprep.subr.mxu0 0.0
      %1168 = vmatpush1.msra.mxu0 0.0
      %1169 = vmatprep.subr.mxu0 0.0
      %1170 = vmatpush1.msra.mxu0 0.0
      %1171 = vmatprep.subr.mxu0 0.0
      %1172 = vmatpush1.msra.mxu0 0.0
      %1173 = vmatprep.subr.mxu0 0.0
      %1174 = vmatpush1.msra.mxu0 0.0
      %1175 = vmatprep.subr.mxu0 0.0
      %1176 = vmatpush1.msra.mxu0 0.0
      %1177 = vmatprep.subr.mxu0 0.0
      %1178 = vmatpush1.msra.mxu0 0.0
      %1179 = vmatprep.subr.mxu0 0.0
      %1180 = vmatpush1.msra.mxu0 0.0
      %1181 = vmatprep.subr.mxu0 0.0
      %1182 = vmatpush1.msra.mxu0 0.0
      %1183 = vmatprep.mubr.f32.mxu0 0.0
      %1184 = vmatmul.mubr.f32.gmra.mrb[0].mxu0 %v1117
      %v1185 = vpop.f32.mrb[0].mxu0
      %v1186 = vadd.f32 0.0, %v1185
      %v1187 = vpop.f32.mrb[0].mxu0
      %1188 = vdwg.mxu0
      %v1190 = vsel %vm1115, %v396, 0
      %1192 = vmatprep.subr.mxu0 0.0
      %1193 = vmatpush1.msra.mxu0 %v1112
      %1194 = vmatprep.subr.mxu0 0.0
      %1195 = vmatpush1.msra.mxu0 0.0
      %1196 = vmatprep.subr.mxu0 0.0
      %1197 = vmatpush1.msra.mxu0 0.0
      %1198 = vmatprep.subr.mxu0 0.0
      %1199 = vmatpush1.msra.mxu0 0.0
      %1200 = vmatprep.subr.mxu0 0.0
      %1201 = vmatpush1.msra.mxu0 0.0
      %1202 = vmatprep.subr.mxu0 0.0
      %1203 = vmatpush1.msra.mxu0 0.0
      %1204 = vmatprep.subr.mxu0 0.0
      %1205 = vmatpush1.msra.mxu0 0.0
      %1206 = vmatprep.subr.mxu0 0.0
      %1207 = vmatpush1.msra.mxu0 0.0
      %1208 = vmatprep.subr.mxu0 0.0
      %1209 = vmatpush1.msra.mxu0 0.0
      %1210 = vmatprep.subr.mxu0 0.0
      %1211 = vmatpush1.msra.mxu0 0.0
      %1212 = vmatprep.subr.mxu0 0.0
      %1213 = vmatpush1.msra.mxu0 0.0
      %1214 = vmatprep.subr.mxu0 0.0
      %1215 = vmatpush1.msra.mxu0 0.0
      %1216 = vmatprep.subr.mxu0 0.0
      %1217 = vmatpush1.msra.mxu0 0.0
      %1218 = vmatprep.subr.mxu0 0.0
      %1219 = vmatpush1.msra.mxu0 0.0
      %1220 = vmatprep.subr.mxu0 0.0
      %1221 = vmatpush1.msra.mxu0 0.0
      %1222 = vmatprep.subr.mxu0 0.0
      %1223 = vmatpush1.msra.mxu0 0.0
      %1224 = vmatprep.subr.mxu0 0.0
      %1225 = vmatpush1.msra.mxu0 0.0
      %1226 = vmatprep.subr.mxu0 0.0
      %1227 = vmatpush1.msra.mxu0 0.0
      %1228 = vmatprep.subr.mxu0 0.0
      %1229 = vmatpush1.msra.mxu0 0.0
      %1230 = vmatprep.subr.mxu0 0.0
      %1231 = vmatpush1.msra.mxu0 0.0
      %1232 = vmatprep.subr.mxu0 0.0
      %1233 = vmatpush1.msra.mxu0 0.0
      %1234 = vmatprep.subr.mxu0 0.0
      %1235 = vmatpush1.msra.mxu0 0.0
      %1236 = vmatprep.subr.mxu0 0.0
      %1237 = vmatpush1.msra.mxu0 0.0
      %1238 = vmatprep.subr.mxu0 0.0
      %1239 = vmatpush1.msra.mxu0 0.0
      %1240 = vmatprep.subr.mxu0 0.0
      %1241 = vmatpush1.msra.mxu0 0.0
      %1242 = vmatprep.subr.mxu0 0.0
      %1243 = vmatpush1.msra.mxu0 0.0
      %1244 = vmatprep.subr.mxu0 0.0
      %1245 = vmatpush1.msra.mxu0 0.0
      %1246 = vmatprep.subr.mxu0 0.0
      %1247 = vmatpush1.msra.mxu0 0.0
      %1248 = vmatprep.subr.mxu0 0.0
      %1249 = vmatpush1.msra.mxu0 0.0
      %1250 = vmatprep.subr.mxu0 0.0
      %1251 = vmatpush1.msra.mxu0 0.0
      %1252 = vmatprep.subr.mxu0 0.0
      %1253 = vmatpush1.msra.mxu0 0.0
      %1254 = vmatprep.subr.mxu0 0.0
      %1255 = vmatpush1.msra.mxu0 0.0
      %1256 = vmatprep.mubr.f32.mxu0 0.0
      %1257 = vmatmul.mubr.f32.gmra.mrb[0].mxu0 %v1190
      %v1258 = vpop.f32.mrb[0].mxu0
      %v1259 = vadd.f32 0.0, %v1258
      %v1260 = vpop.f32.mrb[0].mxu0
      %1261 = vdwg.mxu0
      %v1263 = vsel %vm1115, %v397, 0
      %1265 = vmatprep.subr.mxu0 0.0
      %1266 = vmatpush1.msra.mxu0 %v1113
      %1267 = vmatprep.subr.mxu0 0.0
      %1268 = vmatpush1.msra.mxu0 0.0
      %1269 = vmatprep.subr.mxu0 0.0
      %1270 = vmatpush1.msra.mxu0 0.0
      %1271 = vmatprep.subr.mxu0 0.0
      %1272 = vmatpush1.msra.mxu0 0.0
      %1273 = vmatprep.subr.mxu0 0.0
      %1274 = vmatpush1.msra.mxu0 0.0
      %1275 = vmatprep.subr.mxu0 0.0
      %1276 = vmatpush1.msra.mxu0 0.0
      %1277 = vmatprep.subr.mxu0 0.0
      %1278 = vmatpush1.msra.mxu0 0.0
      %1279 = vmatprep.subr.mxu0 0.0
      %1280 = vmatpush1.msra.mxu0 0.0
      %1281 = vmatprep.subr.mxu0 0.0
      %1282 = vmatpush1.msra.mxu0 0.0
      %1283 = vmatprep.subr.mxu0 0.0
      %1284 = vmatpush1.msra.mxu0 0.0
      %1285 = vmatprep.subr.mxu0 0.0
      %1286 = vmatpush1.msra.mxu0 0.0
      %1287 = vmatprep.subr.mxu0 0.0
      %1288 = vmatpush1.msra.mxu0 0.0
      %1289 = vmatprep.subr.mxu0 0.0
      %1290 = vmatpush1.msra.mxu0 0.0
      %1291 = vmatprep.subr.mxu0 0.0
      %1292 = vmatpush1.msra.mxu0 0.0
      %1293 = vmatprep.subr.mxu0 0.0
      %1294 = vmatpush1.msra.mxu0 0.0
      %1295 = vmatprep.subr.mxu0 0.0
      %1296 = vmatpush1.msra.mxu0 0.0
      %1297 = vmatprep.subr.mxu0 0.0
      %1298 = vmatpush1.msra.mxu0 0.0
      %1299 = vmatprep.subr.mxu0 0.0
      %1300 = vmatpush1.msra.mxu0 0.0
      %1301 = vmatprep.subr.mxu0 0.0
      %1302 = vmatpush1.msra.mxu0 0.0
      %1303 = vmatprep.subr.mxu0 0.0
      %1304 = vmatpush1.msra.mxu0 0.0
      %1305 = vmatprep.subr.mxu0 0.0
      %1306 = vmatpush1.msra.mxu0 0.0
      %1307 = vmatprep.subr.mxu0 0.0
      %1308 = vmatpush1.msra.mxu0 0.0
      %1309 = vmatprep.subr.mxu0 0.0
      %1310 = vmatpush1.msra.mxu0 0.0
      %1311 = vmatprep.subr.mxu0 0.0
      %1312 = vmatpush1.msra.mxu0 0.0
      %1313 = vmatprep.subr.mxu0 0.0
      %1314 = vmatpush1.msra.mxu0 0.0
      %1315 = vmatprep.subr.mxu0 0.0
      %1316 = vmatpush1.msra.mxu0 0.0
      %1317 = vmatprep.subr.mxu0 0.0
      %1318 = vmatpush1.msra.mxu0 0.0
      %1319 = vmatprep.subr.mxu0 0.0
      %1320 = vmatpush1.msra.mxu0 0.0
      %1321 = vmatprep.subr.mxu0 0.0
      %1322 = vmatpush1.msra.mxu0 0.0
      %1323 = vmatprep.subr.mxu0 0.0
      %1324 = vmatpush1.msra.mxu0 0.0
      %1325 = vmatprep.subr.mxu0 0.0
      %1326 = vmatpush1.msra.mxu0 0.0
      %1327 = vmatprep.subr.mxu0 0.0
      %1328 = vmatpush1.msra.mxu0 0.0
      %1329 = vmatprep.mubr.f32.mxu0 0.0
      %1330 = vmatmul.mubr.f32.gmra.mrb[0].mxu0 %v1263
      %v1331 = vpop.f32.mrb[0].mxu0
      %v1332 = vadd.f32 0.0, %v1331
      %v1333 = vpop.f32.mrb[0].mxu0
      %1334 = vdwg.mxu0
      %v1336 = vsel %vm1115, %v398, 0
      %1338 = vmatprep.subr.mxu0 0.0
      %1339 = vmatpush1.msra.mxu0 %v1114
      %1340 = vmatprep.subr.mxu0 0.0
      %1341 = vmatpush1.msra.mxu0 0.0
      %1342 = vmatprep.subr.mxu0 0.0
      %1343 = vmatpush1.msra.mxu0 0.0
      %1344 = vmatprep.subr.mxu0 0.0
      %1345 = vmatpush1.msra.mxu0 0.0
      %1346 = vmatprep.subr.mxu0 0.0
      %1347 = vmatpush1.msra.mxu0 0.0
      %1348 = vmatprep.subr.mxu0 0.0
      %1349 = vmatpush1.msra.mxu0 0.0
      %1350 = vmatprep.subr.mxu0 0.0
      %1351 = vmatpush1.msra.mxu0 0.0
      %1352 = vmatprep.subr.mxu0 0.0
      %1353 = vmatpush1.msra.mxu0 0.0
      %1354 = vmatprep.subr.mxu0 0.0
      %1355 = vmatpush1.msra.mxu0 0.0
      %1356 = vmatprep.subr.mxu0 0.0
      %1357 = vmatpush1.msra.mxu0 0.0
      %1358 = vmatprep.subr.mxu0 0.0
      %1359 = vmatpush1.msra.mxu0 0.0
      %1360 = vmatprep.subr.mxu0 0.0
      %1361 = vmatpush1.msra.mxu0 0.0
      %1362 = vmatprep.subr.mxu0 0.0
      %1363 = vmatpush1.msra.mxu0 0.0
      %1364 = vmatprep.subr.mxu0 0.0
      %1365 = vmatpush1.msra.mxu0 0.0
      %1366 = vmatprep.subr.mxu0 0.0
      %1367 = vmatpush1.msra.mxu0 0.0
      %1368 = vmatprep.subr.mxu0 0.0
      %1369 = vmatpush1.msra.mxu0 0.0
      %1370 = vmatprep.subr.mxu0 0.0
      %1371 = vmatpush1.msra.mxu0 0.0
      %1372 = vmatprep.subr.mxu0 0.0
      %1373 = vmatpush1.msra.mxu0 0.0
      %1374 = vmatprep.subr.mxu0 0.0
      %1375 = vmatpush1.msra.mxu0 0.0
      %1376 = vmatprep.subr.mxu0 0.0
      %1377 = vmatpush1.msra.mxu0 0.0
      %1378 = vmatprep.subr.mxu0 0.0
      %1379 = vmatpush1.msra.mxu0 0.0
      %1380 = vmatprep.subr.mxu0 0.0
      %1381 = vmatpush1.msra.mxu0 0.0
      %1382 = vmatprep.subr.mxu0 0.0
      %1383 = vmatpush1.msra.mxu0 0.0
      %1384 = vmatprep.subr.mxu0 0.0
      %1385 = vmatpush1.msra.mxu0 0.0
      %1386 = vmatprep.subr.mxu0 0.0
      %1387 = vmatpush1.msra.mxu0 0.0
      %1388 = vmatprep.subr.mxu0 0.0
      %1389 = vmatpush1.msra.mxu0 0.0
      %1390 = vmatprep.subr.mxu0 0.0
      %1391 = vmatpush1.msra.mxu0 0.0
      %1392 = vmatprep.subr.mxu0 0.0
      %1393 = vmatpush1.msra.mxu0 0.0
      %1394 = vmatprep.subr.mxu0 0.0
      %1395 = vmatpush1.msra.mxu0 0.0
      %1396 = vmatprep.subr.mxu0 0.0
      %1397 = vmatpush1.msra.mxu0 0.0
      %1398 = vmatprep.subr.mxu0 0.0
      %1399 = vmatpush1.msra.mxu0 0.0
      %1400 = vmatprep.subr.mxu0 0.0
      %1401 = vmatpush1.msra.mxu0 0.0
      %1402 = vmatprep.mubr.f32.mxu0 0.0
      %1403 = vmatmul.mubr.f32.gmra.mrb[0].mxu0 %v1336
      %v1404 = vpop.f32.mrb[0].mxu0
      %v1405 = vadd.f32 0.0, %v1404
      %v1406 = vpop.f32.mrb[0].mxu0
      %1407 = vdwg.mxu0
      %v1408 = vmul.f32 %v1186, 0.35355338
      %v1409 = vmul.f32 %v1259, 0.35355338
      %v1410 = vmul.f32 %v1332, 0.35355338
      %v1411 = vmul.f32 %v1405, 0.35355338
      %v1412 = vld [vmem:[#allocation2] sm:$0xff]
      %v1413 = vld [vmem:[#allocation2 + $0x8] sm:$0xff]
      %v1414 = vld [vmem:[#allocation2 + $0x10] sm:$0xff]
      %v1415 = vld [vmem:[#allocation2 + $0x18] sm:$0xff]
      %v1416 = vsel %vm1115, %v1408, -inf
      %1417 = vmax.xlane.f32.xlu0 %v1416
      %v1418 = vpop.xlane.xlu0 %1417
      %v1419 = vsel %vm1115, %v1409, -inf
      %1420 = vmax.xlane.f32.xlu0 %v1419
      %v1421 = vpop.xlane.xlu0 %1420
      %v1422 = vsel %vm1115, %v1410, -inf
      %1423 = vmax.xlane.f32.xlu0 %v1422
      %v1424 = vpop.xlane.xlu0 %1423
      %v1425 = vsel %vm1115, %v1411, -inf
      %1426 = vmax.xlane.f32.xlu0 %v1425
      %v1427 = vpop.xlane.xlu0 %1426
      %v1428 = vmax.f32 %v1412, %v1418
      %v1429 = vmax.f32 %v1413, %v1421
      %v1430 = vmax.f32 %v1414, %v1424
      %v1431 = vmax.f32 %v1415, %v1427
      %v1432 = vsub.f32 %v1412, %v1428
      %v1433 = vsub.f32 %v1413, %v1429
      %v1434 = vsub.f32 %v1414, %v1430
      %v1435 = vsub.f32 %v1415, %v1431
      %v1436 = vmul.f32 %v1432, 1.442695
      %v1437 = vpow.pop %v1436
      %v1438 = vmul.f32 %v1433, 1.442695
      %v1439 = vpow.pop %v1438
      %v1440 = vmul.f32 %v1434, 1.442695
      %v1441 = vpow.pop %v1440
      %v1442 = vmul.f32 %v1435, 1.442695
      %v1443 = vpow.pop %v1442
      %1445 = vset.pattern.permute.xlu0 0
      %1446 = vperm.xlu0 %1445, %v1428
      %v1447 = vpop.permute.xlu0 %1446
      %1450 = vset.pattern.permute.xlu0 0
      %1451 = vperm.xlu0 %1450, %v1429
      %v1452 = vpop.permute.xlu0 %1451
      %1455 = vset.pattern.permute.xlu0 0
      %1456 = vperm.xlu0 %1455, %v1430
      %v1457 = vpop.permute.xlu0 %1456
      %1460 = vset.pattern.permute.xlu0 0
      %1461 = vperm.xlu0 %1460, %v1431
      %v1462 = vpop.permute.xlu0 %1461
      %v1464 = vsub.f32 %v1408, %v1447
      %v1465 = vsub.f32 %v1409, %v1452
      %v1466 = vsub.f32 %v1410, %v1457
      %v1467 = vsub.f32 %v1411, %v1462
      %v1468 = vmul.f32 %v1464, 1.442695
      %v1469 = vpow.pop %v1468
      %v1470 = vmul.f32 %v1465, 1.442695
      %v1471 = vpow.pop %v1470
      %v1472 = vmul.f32 %v1466, 1.442695
      %v1473 = vpow.pop %v1472
      %v1474 = vmul.f32 %v1467, 1.442695
      %v1475 = vpow.pop %v1474
      %v1476 = vld [vmem:[#allocation3] sm:$0xff]
      %v1477 = vld [vmem:[#allocation3 + $0x8] sm:$0xff]
      %v1478 = vld [vmem:[#allocation3 + $0x10] sm:$0xff]
      %v1479 = vld [vmem:[#allocation3 + $0x18] sm:$0xff]
      %v1480 = vmul.f32 %v1437, %v1476
      %v1481 = vmul.f32 %v1439, %v1477
      %v1482 = vmul.f32 %v1441, %v1478
      %v1483 = vmul.f32 %v1443, %v1479
      %v1484 = vsel %vm1115, %v1469, 0.0
      %1485 = vadd.xlane.f32.xlu0 %v1484
      %v1486 = vpop.xlane.xlu0 %1485
      %v1487 = vsel %vm1115, %v1471, 0.0
      %1488 = vadd.xlane.f32.xlu0 %v1487
      %v1489 = vpop.xlane.xlu0 %1488
      %v1490 = vsel %vm1115, %v1473, 0.0
      %1491 = vadd.xlane.f32.xlu0 %v1490
      %v1492 = vpop.xlane.xlu0 %1491
      %v1493 = vsel %vm1115, %v1475, 0.0
      %1494 = vadd.xlane.f32.xlu0 %v1493
      %v1495 = vpop.xlane.xlu0 %1494
      %v1496 = vadd.f32 %v1480, %v1486
      %v1497 = vadd.f32 %v1481, %v1489
      %v1498 = vadd.f32 %v1482, %v1492
      %v1499 = vadd.f32 %v1483, %v1495
      %vm1500 = vcmask 7168
      %1501 = vst.msk [vmem:[#allocation3] sm:$0xff] %vm1500, %v1496
      %1502 = vst.msk [vmem:[#allocation3 + $0x8] sm:$0xff] %vm1500, %v1497
      %1503 = vst.msk [vmem:[#allocation3 + $0x10] sm:$0xff] %vm1500, %v1498
      %1504 = vst.msk [vmem:[#allocation3 + $0x18] sm:$0xff] %vm1500, %v1499
      %v1505 = vcombine.low %v323, %v325
      %v1507 = vunpack.c.l.s4 1983009808
      %v1508 = vunpack.c.0.s8 %v1507
      %v1509 = vlaneseq
      %v1510 = vshrl.u32 %v1509, 7
      %v1511 = vsub.s32 %v1508, %v1510
      %v1512 = vrot.slane %v1505, %v1511
      %v1513 = vcombine.low %v324, %v326
      %v1515 = vunpack.c.l.s4 1983009808
      %v1516 = vunpack.c.0.s8 %v1515
      %v1517 = vlaneseq
      %v1518 = vshrl.u32 %v1517, 7
      %v1519 = vsub.s32 %v1516, %v1518
      %v1520 = vrot.slane %v1513, %v1519
      %v1521 = vcombine.low %v327, %v329
      %v1523 = vunpack.c.l.s4 1983009808
      %v1524 = vunpack.c.0.s8 %v1523
      %v1525 = vlaneseq
      %v1526 = vshrl.u32 %v1525, 7
      %v1527 = vsub.s32 %v1524, %v1526
      %v1528 = vrot.slane %v1521, %v1527
      %v1529 = vcombine.low %v328, %v330
      %v1531 = vunpack.c.l.s4 1983009808
      %v1532 = vunpack.c.0.s8 %v1531
      %v1533 = vlaneseq
      %v1534 = vshrl.u32 %v1533, 7
      %v1535 = vsub.s32 %v1532, %v1534
      %v1536 = vrot.slane %v1529, %v1535
      %v1537 = vcombine.low %v1512, %v1520
      %v1538 = vcombine.high %v1512, %v1520
      %v1540 = vunpack.c.l.s4 1934713408
      %v1541 = vunpack.c.0.s8 %v1540
      %v1542 = vlaneseq
      %v1543 = vshrl.u32 %v1542, 7
      %v1544 = vsub.s32 %v1541, %v1543
      %v1545 = vrot.slane %v1537, %v1544
      %v1547 = vunpack.c.l.s4 1934713408
      %v1548 = vunpack.c.0.s8 %v1547
      %v1549 = vlaneseq
      %v1550 = vshrl.u32 %v1549, 7
      %v1551 = vsub.s32 %v1548, %v1550
      %v1552 = vrot.slane %v1538, %v1551
      %v1553 = vcombine.low %v1528, %v1536
      %v1554 = vcombine.high %v1528, %v1536
      %v1556 = vunpack.c.l.s4 1934713408
      %v1557 = vunpack.c.0.s8 %v1556
      %v1558 = vlaneseq
      %v1559 = vshrl.u32 %v1558, 7
      %v1560 = vsub.s32 %v1557, %v1559
      %v1561 = vrot.slane %v1553, %v1560
      %v1563 = vunpack.c.l.s4 1934713408
      %v1564 = vunpack.c.0.s8 %v1563
      %v1565 = vlaneseq
      %v1566 = vshrl.u32 %v1565, 7
      %v1567 = vsub.s32 %v1564, %v1566
      %v1568 = vrot.slane %v1554, %v1567
      %v1569 = vcombine.low %v1545, %v1561
      %v1570 = vcombine.high %v1545, %v1561
      %v1571 = vcombine.low %v1552, %v1568
      %v1572 = vcombine.high %v1552, %v1568
      %v1574 = vsel %vm1115, %v1469, 0
      %1576 = vmatprep.subr.mxu0 0.0
      %1577 = vmatpush1.msra.mxu0 %v1569
      %1578 = vmatprep.subr.mxu0 0.0
      %1579 = vmatpush1.msra.mxu0 0.0
      %1580 = vmatprep.subr.mxu0 0.0
      %1581 = vmatpush1.msra.mxu0 0.0
      %1582 = vmatprep.subr.mxu0 0.0
      %1583 = vmatpush1.msra.mxu0 0.0
      %1584 = vmatprep.subr.mxu0 0.0
      %1585 = vmatpush1.msra.mxu0 0.0
      %1586 = vmatprep.subr.mxu0 0.0
      %1587 = vmatpush1.msra.mxu0 0.0
      %1588 = vmatprep.subr.mxu0 0.0
      %1589 = vmatpush1.msra.mxu0 0.0
      %1590 = vmatprep.subr.mxu0 0.0
      %1591 = vmatpush1.msra.mxu0 0.0
      %1592 = vmatprep.subr.mxu0 0.0
      %1593 = vmatpush1.msra.mxu0 0.0
      %1594 = vmatprep.subr.mxu0 0.0
      %1595 = vmatpush1.msra.mxu0 0.0
      %1596 = vmatprep.subr.mxu0 0.0
      %1597 = vmatpush1.msra.mxu0 0.0
      %1598 = vmatprep.subr.mxu0 0.0
      %1599 = vmatpush1.msra.mxu0 0.0
      %1600 = vmatprep.subr.mxu0 0.0
      %1601 = vmatpush1.msra.mxu0 0.0
      %1602 = vmatprep.subr.mxu0 0.0
      %1603 = vmatpush1.msra.mxu0 0.0
      %1604 = vmatprep.subr.mxu0 0.0
      %1605 = vmatpush1.msra.mxu0 0.0
      %1606 = vmatprep.subr.mxu0 0.0
      %1607 = vmatpush1.msra.mxu0 0.0
      %1608 = vmatprep.subr.mxu0 0.0
      %1609 = vmatpush1.msra.mxu0 0.0
      %1610 = vmatprep.subr.mxu0 0.0
      %1611 = vmatpush1.msra.mxu0 0.0
      %1612 = vmatprep.subr.mxu0 0.0
      %1613 = vmatpush1.msra.mxu0 0.0
      %1614 = vmatprep.subr.mxu0 0.0
      %1615 = vmatpush1.msra.mxu0 0.0
      %1616 = vmatprep.subr.mxu0 0.0
      %1617 = vmatpush1.msra.mxu0 0.0
      %1618 = vmatprep.subr.mxu0 0.0
      %1619 = vmatpush1.msra.mxu0 0.0
      %1620 = vmatprep.subr.mxu0 0.0
      %1621 = vmatpush1.msra.mxu0 0.0
      %1622 = vmatprep.subr.mxu0 0.0
      %1623 = vmatpush1.msra.mxu0 0.0
      %1624 = vmatprep.subr.mxu0 0.0
      %1625 = vmatpush1.msra.mxu0 0.0
      %1626 = vmatprep.subr.mxu0 0.0
      %1627 = vmatpush1.msra.mxu0 0.0
      %1628 = vmatprep.subr.mxu0 0.0
      %1629 = vmatpush1.msra.mxu0 0.0
      %1630 = vmatprep.subr.mxu0 0.0
      %1631 = vmatpush1.msra.mxu0 0.0
      %1632 = vmatprep.subr.mxu0 0.0
      %1633 = vmatpush1.msra.mxu0 0.0
      %1634 = vmatprep.subr.mxu0 0.0
      %1635 = vmatpush1.msra.mxu0 0.0
      %1636 = vmatprep.subr.mxu0 0.0
      %1637 = vmatpush1.msra.mxu0 0.0
      %1638 = vmatprep.subr.mxu0 0.0
      %1639 = vmatpush1.msra.mxu0 0.0
      %1640 = vmatprep.mubr.f32.mxu0 0.0
      %1641 = vmatmul.mubr.f32.gmra.mrb[0].mxu0 %v1574
      %v1642 = vpop.f32.mrb[0].mxu0
      %v1643 = vadd.f32 0.0, %v1642
      %v1644 = vpop.f32.mrb[0].mxu0
      %1645 = vdwg.mxu0
      %v1647 = vsel %vm1115, %v1471, 0
      %1649 = vmatprep.subr.mxu0 0.0
      %1650 = vmatpush1.msra.mxu0 %v1570
      %1651 = vmatprep.subr.mxu0 0.0
      %1652 = vmatpush1.msra.mxu0 0.0
      %1653 = vmatprep.subr.mxu0 0.0
      %1654 = vmatpush1.msra.mxu0 0.0
      %1655 = vmatprep.subr.mxu0 0.0
      %1656 = vmatpush1.msra.mxu0 0.0
      %1657 = vmatprep.subr.mxu0 0.0
      %1658 = vmatpush1.msra.mxu0 0.0
      %1659 = vmatprep.subr.mxu0 0.0
      %1660 = vmatpush1.msra.mxu0 0.0
      %1661 = vmatprep.subr.mxu0 0.0
      %1662 = vmatpush1.msra.mxu0 0.0
      %1663 = vmatprep.subr.mxu0 0.0
      %1664 = vmatpush1.msra.mxu0 0.0
      %1665 = vmatprep.subr.mxu0 0.0
      %1666 = vmatpush1.msra.mxu0 0.0
      %1667 = vmatprep.subr.mxu0 0.0
      %1668 = vmatpush1.msra.mxu0 0.0
      %1669 = vmatprep.subr.mxu0 0.0
      %1670 = vmatpush1.msra.mxu0 0.0
      %1671 = vmatprep.subr.mxu0 0.0
      %1672 = vmatpush1.msra.mxu0 0.0
      %1673 = vmatprep.subr.mxu0 0.0
      %1674 = vmatpush1.msra.mxu0 0.0
      %1675 = vmatprep.subr.mxu0 0.0
      %1676 = vmatpush1.msra.mxu0 0.0
      %1677 = vmatprep.subr.mxu0 0.0
      %1678 = vmatpush1.msra.mxu0 0.0
      %1679 = vmatprep.subr.mxu0 0.0
      %1680 = vmatpush1.msra.mxu0 0.0
      %1681 = vmatprep.subr.mxu0 0.0
      %1682 = vmatpush1.msra.mxu0 0.0
      %1683 = vmatprep.subr.mxu0 0.0
      %1684 = vmatpush1.msra.mxu0 0.0
      %1685 = vmatprep.subr.mxu0 0.0
      %1686 = vmatpush1.msra.mxu0 0.0
      %1687 = vmatprep.subr.mxu0 0.0
      %1688 = vmatpush1.msra.mxu0 0.0
      %1689 = vmatprep.subr.mxu0 0.0
      %1690 = vmatpush1.msra.mxu0 0.0
      %1691 = vmatprep.subr.mxu0 0.0
      %1692 = vmatpush1.msra.mxu0 0.0
      %1693 = vmatprep.subr.mxu0 0.0
      %1694 = vmatpush1.msra.mxu0 0.0
      %1695 = vmatprep.subr.mxu0 0.0
      %1696 = vmatpush1.msra.mxu0 0.0
      %1697 = vmatprep.subr.mxu0 0.0
      %1698 = vmatpush1.msra.mxu0 0.0
      %1699 = vmatprep.subr.mxu0 0.0
      %1700 = vmatpush1.msra.mxu0 0.0
      %1701 = vmatprep.subr.mxu0 0.0
      %1702 = vmatpush1.msra.mxu0 0.0
      %1703 = vmatprep.subr.mxu0 0.0
      %1704 = vmatpush1.msra.mxu0 0.0
      %1705 = vmatprep.subr.mxu0 0.0
      %1706 = vmatpush1.msra.mxu0 0.0
      %1707 = vmatprep.subr.mxu0 0.0
      %1708 = vmatpush1.msra.mxu0 0.0
      %1709 = vmatprep.subr.mxu0 0.0
      %1710 = vmatpush1.msra.mxu0 0.0
      %1711 = vmatprep.subr.mxu0 0.0
      %1712 = vmatpush1.msra.mxu0 0.0
      %1713 = vmatprep.mubr.f32.mxu0 0.0
      %1714 = vmatmul.mubr.f32.gmra.mrb[0].mxu0 %v1647
      %v1715 = vpop.f32.mrb[0].mxu0
      %v1716 = vadd.f32 0.0, %v1715
      %v1717 = vpop.f32.mrb[0].mxu0
      %1718 = vdwg.mxu0
      %v1720 = vsel %vm1115, %v1473, 0
      %1722 = vmatprep.subr.mxu0 0.0
      %1723 = vmatpush1.msra.mxu0 %v1571
      %1724 = vmatprep.subr.mxu0 0.0
      %1725 = vmatpush1.msra.mxu0 0.0
      %1726 = vmatprep.subr.mxu0 0.0
      %1727 = vmatpush1.msra.mxu0 0.0
      %1728 = vmatprep.subr.mxu0 0.0
      %1729 = vmatpush1.msra.mxu0 0.0
      %1730 = vmatprep.subr.mxu0 0.0
      %1731 = vmatpush1.msra.mxu0 0.0
      %1732 = vmatprep.subr.mxu0 0.0
      %1733 = vmatpush1.msra.mxu0 0.0
      %1734 = vmatprep.subr.mxu0 0.0
      %1735 = vmatpush1.msra.mxu0 0.0
      %1736 = vmatprep.subr.mxu0 0.0
      %1737 = vmatpush1.msra.mxu0 0.0
      %1738 = vmatprep.subr.mxu0 0.0
      %1739 = vmatpush1.msra.mxu0 0.0
      %1740 = vmatprep.subr.mxu0 0.0
      %1741 = vmatpush1.msra.mxu0 0.0
      %1742 = vmatprep.subr.mxu0 0.0
      %1743 = vmatpush1.msra.mxu0 0.0
      %1744 = vmatprep.subr.mxu0 0.0
      %1745 = vmatpush1.msra.mxu0 0.0
      %1746 = vmatprep.subr.mxu0 0.0
      %1747 = vmatpush1.msra.mxu0 0.0
      %1748 = vmatprep.subr.mxu0 0.0
      %1749 = vmatpush1.msra.mxu0 0.0
      %1750 = vmatprep.subr.mxu0 0.0
      %1751 = vmatpush1.msra.mxu0 0.0
      %1752 = vmatprep.subr.mxu0 0.0
      %1753 = vmatpush1.msra.mxu0 0.0
      %1754 = vmatprep.subr.mxu0 0.0
      %1755 = vmatpush1.msra.mxu0 0.0
      %1756 = vmatprep.subr.mxu0 0.0
      %1757 = vmatpush1.msra.mxu0 0.0
      %1758 = vmatprep.subr.mxu0 0.0
      %1759 = vmatpush1.msra.mxu0 0.0
      %1760 = vmatprep.subr.mxu0 0.0
      %1761 = vmatpush1.msra.mxu0 0.0
      %1762 = vmatprep.subr.mxu0 0.0
      %1763 = vmatpush1.msra.mxu0 0.0
      %1764 = vmatprep.subr.mxu0 0.0
      %1765 = vmatpush1.msra.mxu0 0.0
      %1766 = vmatprep.subr.mxu0 0.0
      %1767 = vmatpush1.msra.mxu0 0.0
      %1768 = vmatprep.subr.mxu0 0.0
      %1769 = vmatpush1.msra.mxu0 0.0
      %1770 = vmatprep.subr.mxu0 0.0
      %1771 = vmatpush1.msra.mxu0 0.0
      %1772 = vmatprep.subr.mxu0 0.0
      %1773 = vmatpush1.msra.mxu0 0.0
      %1774 = vmatprep.subr.mxu0 0.0
      %1775 = vmatpush1.msra.mxu0 0.0
      %1776 = vmatprep.subr.mxu0 0.0
      %1777 = vmatpush1.msra.mxu0 0.0
      %1778 = vmatprep.subr.mxu0 0.0
      %1779 = vmatpush1.msra.mxu0 0.0
      %1780 = vmatprep.subr.mxu0 0.0
      %1781 = vmatpush1.msra.mxu0 0.0
      %1782 = vmatprep.subr.mxu0 0.0
      %1783 = vmatpush1.msra.mxu0 0.0
      %1784 = vmatprep.subr.mxu0 0.0
      %1785 = vmatpush1.msra.mxu0 0.0
      %1786 = vmatprep.mubr.f32.mxu0 0.0
      %1787 = vmatmul.mubr.f32.gmra.mrb[0].mxu0 %v1720
      %v1788 = vpop.f32.mrb[0].mxu0
      %v1789 = vadd.f32 0.0, %v1788
      %v1790 = vpop.f32.mrb[0].mxu0
      %1791 = vdwg.mxu0
      %v1793 = vsel %vm1115, %v1475, 0
      %1795 = vmatprep.subr.mxu0 0.0
      %1796 = vmatpush1.msra.mxu0 %v1572
      %1797 = vmatprep.subr.mxu0 0.0
      %1798 = vmatpush1.msra.mxu0 0.0
      %1799 = vmatprep.subr.mxu0 0.0
      %1800 = vmatpush1.msra.mxu0 0.0
      %1801 = vmatprep.subr.mxu0 0.0
      %1802 = vmatpush1.msra.mxu0 0.0
      %1803 = vmatprep.subr.mxu0 0.0
      %1804 = vmatpush1.msra.mxu0 0.0
      %1805 = vmatprep.subr.mxu0 0.0
      %1806 = vmatpush1.msra.mxu0 0.0
      %1807 = vmatprep.subr.mxu0 0.0
      %1808 = vmatpush1.msra.mxu0 0.0
      %1809 = vmatprep.subr.mxu0 0.0
      %1810 = vmatpush1.msra.mxu0 0.0
      %1811 = vmatprep.subr.mxu0 0.0
      %1812 = vmatpush1.msra.mxu0 0.0
      %1813 = vmatprep.subr.mxu0 0.0
      %1814 = vmatpush1.msra.mxu0 0.0
      %1815 = vmatprep.subr.mxu0 0.0
      %1816 = vmatpush1.msra.mxu0 0.0
      %1817 = vmatprep.subr.mxu0 0.0
      %1818 = vmatpush1.msra.mxu0 0.0
      %1819 = vmatprep.subr.mxu0 0.0
      %1820 = vmatpush1.msra.mxu0 0.0
      %1821 = vmatprep.subr.mxu0 0.0
      %1822 = vmatpush1.msra.mxu0 0.0
      %1823 = vmatprep.subr.mxu0 0.0
      %1824 = vmatpush1.msra.mxu0 0.0
      %1825 = vmatprep.subr.mxu0 0.0
      %1826 = vmatpush1.msra.mxu0 0.0
      %1827 = vmatprep.subr.mxu0 0.0
      %1828 = vmatpush1.msra.mxu0 0.0
      %1829 = vmatprep.subr.mxu0 0.0
      %1830 = vmatpush1.msra.mxu0 0.0
      %1831 = vmatprep.subr.mxu0 0.0
      %1832 = vmatpush1.msra.mxu0 0.0
      %1833 = vmatprep.subr.mxu0 0.0
      %1834 = vmatpush1.msra.mxu0 0.0
      %1835 = vmatprep.subr.mxu0 0.0
      %1836 = vmatpush1.msra.mxu0 0.0
      %1837 = vmatprep.subr.mxu0 0.0
      %1838 = vmatpush1.msra.mxu0 0.0
      %1839 = vmatprep.subr.mxu0 0.0
      %1840 = vmatpush1.msra.mxu0 0.0
      %1841 = vmatprep.subr.mxu0 0.0
      %1842 = vmatpush1.msra.mxu0 0.0
      %1843 = vmatprep.subr.mxu0 0.0
      %1844 = vmatpush1.msra.mxu0 0.0
      %1845 = vmatprep.subr.mxu0 0.0
      %1846 = vmatpush1.msra.mxu0 0.0
      %1847 = vmatprep.subr.mxu0 0.0
      %1848 = vmatpush1.msra.mxu0 0.0
      %1849 = vmatprep.subr.mxu0 0.0
      %1850 = vmatpush1.msra.mxu0 0.0
      %1851 = vmatprep.subr.mxu0 0.0
      %1852 = vmatpush1.msra.mxu0 0.0
      %1853 = vmatprep.subr.mxu0 0.0
      %1854 = vmatpush1.msra.mxu0 0.0
      %1855 = vmatprep.subr.mxu0 0.0
      %1856 = vmatpush1.msra.mxu0 0.0
      %1857 = vmatprep.subr.mxu0 0.0
      %1858 = vmatpush1.msra.mxu0 0.0
      %1859 = vmatprep.mubr.f32.mxu0 0.0
      %1860 = vmatmul.mubr.f32.gmra.mrb[0].mxu0 %v1793
      %v1861 = vpop.f32.mrb[0].mxu0
      %v1862 = vadd.f32 0.0, %v1861
      %v1863 = vpop.f32.mrb[0].mxu0
      %1864 = vdwg.mxu0
      %v1865 = vld [vmem:[#allocation4] sm:$0xff]
      %v1866 = vld [vmem:[#allocation4 + $0x8] sm:$0xff]
      %v1867 = vld [vmem:[#allocation4 + $0x10] sm:$0xff]
      %v1868 = vld [vmem:[#allocation4 + $0x18] sm:$0xff]
      %1870 = vset.pattern.permute.xlu0 0
      %1871 = vperm.xlu0 %1870, %v1437
      %v1872 = vpop.permute.xlu0 %1871
      %1875 = vset.pattern.permute.xlu0 0
      %1876 = vperm.xlu0 %1875, %v1439
      %v1877 = vpop.permute.xlu0 %1876
      %1880 = vset.pattern.permute.xlu0 0
      %1881 = vperm.xlu0 %1880, %v1441
      %v1882 = vpop.permute.xlu0 %1881
      %1885 = vset.pattern.permute.xlu0 0
      %1886 = vperm.xlu0 %1885, %v1443
      %v1887 = vpop.permute.xlu0 %1886
      %v1889 = vmul.f32 %v1872, %v1865
      %v1890 = vmul.f32 %v1877, %v1866
      %v1891 = vmul.f32 %v1882, %v1867
      %v1892 = vmul.f32 %v1887, %v1868
      %v1893 = vadd.f32 %v1889, %v1643
      %v1894 = vadd.f32 %v1890, %v1716
      %v1895 = vadd.f32 %v1891, %v1789
      %v1896 = vadd.f32 %v1892, %v1862
      %1897 = vst.msk [vmem:[#allocation4] sm:$0xff] %vm1115, %v1893
      %1898 = vst.msk [vmem:[#allocation4 + $0x8] sm:$0xff] %vm1115, %v1894
      %1899 = vst.msk [vmem:[#allocation4 + $0x10] sm:$0xff] %vm1115, %v1895
      %1900 = vst.msk [vmem:[#allocation4 + $0x18] sm:$0xff] %vm1115, %v1896
      %1901 = vst.msk [vmem:[#allocation2] sm:$0xff] %vm1500, %v1428
      %1902 = vst.msk [vmem:[#allocation2 + $0x8] sm:$0xff] %vm1500, %v1429
      %1903 = vst.msk [vmem:[#allocation2 + $0x10] sm:$0xff] %vm1500, %v1430
      %1904 = vst.msk [vmem:[#allocation2 + $0x18] sm:$0xff] %vm1500, %v1431
      // Predicated region
      $region37: #{multi_head_cross_attention.6} parent=31 // pred_check
        %p1905 = pneg %p289
      $region38: #{multi_head_cross_attention.6} parent=31 // pred_check_branch
        %1907 = sbr.rel (%p1905) target = $region40
      $region39: #{multi_head_cross_attention.6} parent=31 // pred_region
        %v1908 = vld [vmem:[#allocation4] sm:$0xff]
        %v1909 = vld [vmem:[#allocation4 + $0x8] sm:$0xff]
        %v1910 = vld [vmem:[#allocation4 + $0x10] sm:$0xff]
        %v1911 = vld [vmem:[#allocation4 + $0x18] sm:$0xff]
        %v1912 = vld [vmem:[#allocation3] sm:$0xff]
        %v1913 = vld [vmem:[#allocation3 + $0x8] sm:$0xff]
        %v1914 = vld [vmem:[#allocation3 + $0x10] sm:$0xff]
        %v1915 = vld [vmem:[#allocation3 + $0x18] sm:$0xff]
        %v1916 = vrcp.pop %v1912
        %v1917 = vrcp.pop %v1913
        %v1918 = vrcp.pop %v1914
        %v1919 = vrcp.pop %v1915
        %1921 = vset.pattern.permute.xlu0 0
        %1922 = vperm.xlu0 %1921, %v1916
        %v1923 = vpop.permute.xlu0 %1922
        %1926 = vset.pattern.permute.xlu0 0
        %1927 = vperm.xlu0 %1926, %v1917
        %v1928 = vpop.permute.xlu0 %1927
        %1931 = vset.pattern.permute.xlu0 0
        %1932 = vperm.xlu0 %1931, %v1918
        %v1933 = vpop.permute.xlu0 %1932
        %1936 = vset.pattern.permute.xlu0 0
        %1937 = vperm.xlu0 %1936, %v1919
        %v1938 = vpop.permute.xlu0 %1937
        %v1940 = vmul.f32 %v1908, %v1923
        %v1941 = vmul.f32 %v1909, %v1928
        %v1942 = vmul.f32 %v1910, %v1933
        %v1943 = vmul.f32 %v1911, %v1938
        %v1945 = vcombine.high %v1940, %v1940
        %v1947 = vunpack.c.l.s4 1966171168
        %v1948 = vunpack.c.0.s8 %v1947
        %v1949 = vlaneseq
        %v1950 = vshrl.u32 %v1949, 7
        %v1951 = vsub.s32 %v1948, %v1950
        %v1952 = vrot.slane %v1940, %v1951
        %v1954 = vunpack.c.l.s4 1966171168
        %v1955 = vunpack.c.0.s8 %v1954
        %v1956 = vlaneseq
        %v1957 = vshrl.u32 %v1956, 7
        %v1958 = vsub.s32 %v1955, %v1957
        %v1959 = vrot.slane %v1945, %v1958
        %v1960 = vcombine.high %v1952, %v1952
        %v1961 = vcombine.high %v1959, %v1959
        %v1963 = vunpack.c.l.s4 1966171168
        %v1964 = vunpack.c.0.s8 %v1963
        %v1965 = vlaneseq
        %v1966 = vshrl.u32 %v1965, 7
        %v1967 = vsub.s32 %v1964, %v1966
        %v1968 = vrot.slane %v1952, %v1967
        %v1970 = vunpack.c.l.s4 1966171168
        %v1971 = vunpack.c.0.s8 %v1970
        %v1972 = vlaneseq
        %v1973 = vshrl.u32 %v1972, 7
        %v1974 = vsub.s32 %v1971, %v1973
        %v1975 = vrot.slane %v1959, %v1974
        %v1977 = vunpack.c.l.s4 1966171168
        %v1978 = vunpack.c.0.s8 %v1977
        %v1979 = vlaneseq
        %v1980 = vshrl.u32 %v1979, 7
        %v1981 = vsub.s32 %v1978, %v1980
        %v1982 = vrot.slane %v1960, %v1981
        %v1984 = vunpack.c.l.s4 1966171168
        %v1985 = vunpack.c.0.s8 %v1984
        %v1986 = vlaneseq
        %v1987 = vshrl.u32 %v1986, 7
        %v1988 = vsub.s32 %v1985, %v1987
        %v1989 = vrot.slane %v1961, %v1988
        %v1990 = vcombine.high %v1968, %v1968
        %v1991 = vcombine.high %v1975, %v1975
        %v1992 = vcombine.high %v1982, %v1982
        %v1993 = vcombine.high %v1989, %v1989
        %vm2002 = vcmask 57344
        %2003 = vst.msk [vmem:[%s287] sm:$0x1] %vm2002, %v1968
        %2004 = vst.msk [vmem:[%s287 + $0x4] sm:$0x1] %vm2002, %v1982
        %2005 = vst.msk [vmem:[%s287 + $0x8] sm:$0x1] %vm2002, %v1990
        %2006 = vst.msk [vmem:[%s287 + $0xc] sm:$0x1] %vm2002, %v1992
        %2007 = vst.msk [vmem:[%s287 + $0x10] sm:$0x1] %vm2002, %v1975
        %2008 = vst.msk [vmem:[%s287 + $0x14] sm:$0x1] %vm2002, %v1989
        %2009 = vst.msk [vmem:[%s287 + $0x18] sm:$0x1] %vm2002, %v1991
        %2010 = vst.msk [vmem:[%s287 + $0x1c] sm:$0x1] %vm2002, %v1993
        %v2012 = vcombine.high %v1941, %v1941
        %v2014 = vunpack.c.l.s4 1966171168
        %v2015 = vunpack.c.0.s8 %v2014
        %v2016 = vlaneseq
        %v2017 = vshrl.u32 %v2016, 7
        %v2018 = vsub.s32 %v2015, %v2017
        %v2019 = vrot.slane %v1941, %v2018
        %v2021 = vunpack.c.l.s4 1966171168
        %v2022 = vunpack.c.0.s8 %v2021
        %v2023 = vlaneseq
        %v2024 = vshrl.u32 %v2023, 7
        %v2025 = vsub.s32 %v2022, %v2024
        %v2026 = vrot.slane %v2012, %v2025
        %v2027 = vcombine.high %v2019, %v2019
        %v2028 = vcombine.high %v2026, %v2026
        %v2030 = vunpack.c.l.s4 1966171168
        %v2031 = vunpack.c.0.s8 %v2030
        %v2032 = vlaneseq
        %v2033 = vshrl.u32 %v2032, 7
        %v2034 = vsub.s32 %v2031, %v2033
        %v2035 = vrot.slane %v2019, %v2034
        %v2037 = vunpack.c.l.s4 1966171168
        %v2038 = vunpack.c.0.s8 %v2037
        %v2039 = vlaneseq
        %v2040 = vshrl.u32 %v2039, 7
        %v2041 = vsub.s32 %v2038, %v2040
        %v2042 = vrot.slane %v2026, %v2041
        %v2044 = vunpack.c.l.s4 1966171168
        %v2045 = vunpack.c.0.s8 %v2044
        %v2046 = vlaneseq
        %v2047 = vshrl.u32 %v2046, 7
        %v2048 = vsub.s32 %v2045, %v2047
        %v2049 = vrot.slane %v2027, %v2048
        %v2051 = vunpack.c.l.s4 1966171168
        %v2052 = vunpack.c.0.s8 %v2051
        %v2053 = vlaneseq
        %v2054 = vshrl.u32 %v2053, 7
        %v2055 = vsub.s32 %v2052, %v2054
        %v2056 = vrot.slane %v2028, %v2055
        %v2057 = vcombine.high %v2035, %v2035
        %v2058 = vcombine.high %v2042, %v2042
        %v2059 = vcombine.high %v2049, %v2049
        %v2060 = vcombine.high %v2056, %v2056
        %2069 = vst.msk [vmem:[%s287 + $0x1] sm:$0x1] %vm2002, %v2035
        %2070 = vst.msk [vmem:[%s287 + $0x5] sm:$0x1] %vm2002, %v2049
        %2071 = vst.msk [vmem:[%s287 + $0x9] sm:$0x1] %vm2002, %v2057
        %2072 = vst.msk [vmem:[%s287 + $0xd] sm:$0x1] %vm2002, %v2059
        %2073 = vst.msk [vmem:[%s287 + $0x11] sm:$0x1] %vm2002, %v2042
        %2074 = vst.msk [vmem:[%s287 + $0x15] sm:$0x1] %vm2002, %v2056
        %2075 = vst.msk [vmem:[%s287 + $0x19] sm:$0x1] %vm2002, %v2058
        %2076 = vst.msk [vmem:[%s287 + $0x1d] sm:$0x1] %vm2002, %v2060
        %v2078 = vcombine.high %v1942, %v1942
        %v2080 = vunpack.c.l.s4 1966171168
        %v2081 = vunpack.c.0.s8 %v2080
        %v2082 = vlaneseq
        %v2083 = vshrl.u32 %v2082, 7
        %v2084 = vsub.s32 %v2081, %v2083
        %v2085 = vrot.slane %v1942, %v2084
        %v2087 = vunpack.c.l.s4 1966171168
        %v2088 = vunpack.c.0.s8 %v2087
        %v2089 = vlaneseq
        %v2090 = vshrl.u32 %v2089, 7
        %v2091 = vsub.s32 %v2088, %v2090
        %v2092 = vrot.slane %v2078, %v2091
        %v2093 = vcombine.high %v2085, %v2085
        %v2094 = vcombine.high %v2092, %v2092
        %v2096 = vunpack.c.l.s4 1966171168
        %v2097 = vunpack.c.0.s8 %v2096
        %v2098 = vlaneseq
        %v2099 = vshrl.u32 %v2098, 7
        %v2100 = vsub.s32 %v2097, %v2099
        %v2101 = vrot.slane %v2085, %v2100
        %v2103 = vunpack.c.l.s4 1966171168
        %v2104 = vunpack.c.0.s8 %v2103
        %v2105 = vlaneseq
        %v2106 = vshrl.u32 %v2105, 7
        %v2107 = vsub.s32 %v2104, %v2106
        %v2108 = vrot.slane %v2092, %v2107
        %v2110 = vunpack.c.l.s4 1966171168
        %v2111 = vunpack.c.0.s8 %v2110
        %v2112 = vlaneseq
        %v2113 = vshrl.u32 %v2112, 7
        %v2114 = vsub.s32 %v2111, %v2113
        %v2115 = vrot.slane %v2093, %v2114
        %v2117 = vunpack.c.l.s4 1966171168
        %v2118 = vunpack.c.0.s8 %v2117
        %v2119 = vlaneseq
        %v2120 = vshrl.u32 %v2119, 7
        %v2121 = vsub.s32 %v2118, %v2120
        %v2122 = vrot.slane %v2094, %v2121
        %v2123 = vcombine.high %v2101, %v2101
        %v2124 = vcombine.high %v2108, %v2108
        %v2125 = vcombine.high %v2115, %v2115
        %v2126 = vcombine.high %v2122, %v2122
        %2135 = vst.msk [vmem:[%s287 + $0x2] sm:$0x1] %vm2002, %v2101
        %2136 = vst.msk [vmem:[%s287 + $0x6] sm:$0x1] %vm2002, %v2115
        %2137 = vst.msk [vmem:[%s287 + $0xa] sm:$0x1] %vm2002, %v2123
        %2138 = vst.msk [vmem:[%s287 + $0xe] sm:$0x1] %vm2002, %v2125
        %2139 = vst.msk [vmem:[%s287 + $0x12] sm:$0x1] %vm2002, %v2108
        %2140 = vst.msk [vmem:[%s287 + $0x16] sm:$0x1] %vm2002, %v2122
        %2141 = vst.msk [vmem:[%s287 + $0x1a] sm:$0x1] %vm2002, %v2124
        %2142 = vst.msk [vmem:[%s287 + $0x1e] sm:$0x1] %vm2002, %v2126
        %v2144 = vcombine.high %v1943, %v1943
        %v2146 = vunpack.c.l.s4 1966171168
        %v2147 = vunpack.c.0.s8 %v2146
        %v2148 = vlaneseq
        %v2149 = vshrl.u32 %v2148, 7
        %v2150 = vsub.s32 %v2147, %v2149
        %v2151 = vrot.slane %v1943, %v2150
        %v2153 = vunpack.c.l.s4 1966171168
        %v2154 = vunpack.c.0.s8 %v2153
        %v2155 = vlaneseq
        %v2156 = vshrl.u32 %v2155, 7
        %v2157 = vsub.s32 %v2154, %v2156
        %v2158 = vrot.slane %v2144, %v2157
        %v2159 = vcombine.high %v2151, %v2151
        %v2160 = vcombine.high %v2158, %v2158
        %v2162 = vunpack.c.l.s4 1966171168
        %v2163 = vunpack.c.0.s8 %v2162
        %v2164 = vlaneseq
        %v2165 = vshrl.u32 %v2164, 7
        %v2166 = vsub.s32 %v2163, %v2165
        %v2167 = vrot.slane %v2151, %v2166
        %v2169 = vunpack.c.l.s4 1966171168
        %v2170 = vunpack.c.0.s8 %v2169
        %v2171 = vlaneseq
        %v2172 = vshrl.u32 %v2171, 7
        %v2173 = vsub.s32 %v2170, %v2172
        %v2174 = vrot.slane %v2158, %v2173
        %v2176 = vunpack.c.l.s4 1966171168
        %v2177 = vunpack.c.0.s8 %v2176
        %v2178 = vlaneseq
        %v2179 = vshrl.u32 %v2178, 7
        %v2180 = vsub.s32 %v2177, %v2179
        %v2181 = vrot.slane %v2159, %v2180
        %v2183 = vunpack.c.l.s4 1966171168
        %v2184 = vunpack.c.0.s8 %v2183
        %v2185 = vlaneseq
        %v2186 = vshrl.u32 %v2185, 7
        %v2187 = vsub.s32 %v2184, %v2186
        %v2188 = vrot.slane %v2160, %v2187
        %v2189 = vcombine.high %v2167, %v2167
        %v2190 = vcombine.high %v2174, %v2174
        %v2191 = vcombine.high %v2181, %v2181
        %v2192 = vcombine.high %v2188, %v2188
        %2201 = vst.msk [vmem:[%s287 + $0x3] sm:$0x1] %vm2002, %v2167
        %2202 = vst.msk [vmem:[%s287 + $0x7] sm:$0x1] %vm2002, %v2181
        %2203 = vst.msk [vmem:[%s287 + $0xb] sm:$0x1] %vm2002, %v2189
        %2204 = vst.msk [vmem:[%s287 + $0xf] sm:$0x1] %vm2002, %v2191
        %2205 = vst.msk [vmem:[%s287 + $0x13] sm:$0x1] %vm2002, %v2174
        %2206 = vst.msk [vmem:[%s287 + $0x17] sm:$0x1] %vm2002, %v2188
        %2207 = vst.msk [vmem:[%s287 + $0x1b] sm:$0x1] %vm2002, %v2190
        %2208 = vst.msk [vmem:[%s287 + $0x1f] sm:$0x1] %vm2002, %v2192
      $region40: #{multi_head_cross_attention.6} parent=31 // pred_fallthru
        _
      %s2209 = smul.u32 8, %s20
      %p2210 = scmp.lt.s32.totalorder %s19, 1
      %s2211 = scalar_select %p2210, %s19, 1
      %p2212 = scmp.lt.s32.totalorder %s2209, 7
      %s2213 = scalar_select %p2212, %s2209, 7
      %s2214 = smul.addr %s2211, 8
      %s2215 = sadd.s32 %s2213, %s2214
      %s2216 = smul.addr %s2215, 4
      %s2217 = scalar_lea.vmem %s3, %s2216
      // Predicated region
      $region41: #{multi_head_cross_attention.6} parent=31 // pred_check
        %p2218 = pneg %p137
      $region42: #{multi_head_cross_attention.6} parent=31 // pred_check_branch
        %2220 = sbr.rel (%p2218) target = $region44
      $region43: #{multi_head_cross_attention.6} parent=31 // pred_region
        %s2221 = smul.u32 8, %s20
      $region44: #{multi_head_cross_attention.6} parent=31 // pred_fallthru
        _
    $region32: #{multi_head_cross_attention.6} parent=5 // pred_fallthru
      _
    %p2222 = scmp.le.s32.totalorder 2, %s9
    // Predicated region
    $region45: #{multi_head_cross_attention.6} parent=5 // pred_check
      %p2223 = pneg %p2222
    $region46: #{multi_head_cross_attention.6} parent=5 // pred_check_branch
      %2225 = sbr.rel (%p2223) target = $region48
    $region47: #{multi_head_cross_attention.6} parent=5 // pred_region
      %s2226 = ssub.s32 %s9, 2
      // Predicated region
      $region49: #{multi_head_cross_attention.6} parent=47 // pred_check
        %p2227 = pneg %p143
      $region50: #{multi_head_cross_attention.6} parent=47 // pred_check_branch
        %2229 = sbr.rel (%p2227) target = $region52
      $region51: #{multi_head_cross_attention.6} parent=47 // pred_region
        %s2230 = smul.u32 8, %s23
        %p2231 = scmp.lt.s32.totalorder %s22, 1
        %s2232 = scalar_select %p2231, %s22, 1
        %p2233 = scmp.lt.s32.totalorder %s2230, 7
        %s2234 = scalar_select %p2233, %s2230, 7
        %s2235 = smul.addr %s2232, 8
        %s2236 = sadd.s32 %s2234, %s2235
        %s2237 = smul.addr %s2236, 4
        %s2238 = scalar_lea.vmem %s3, %s2237
      $region52: #{multi_head_cross_attention.6} parent=47 // pred_fallthru
        _
    $region48: #{multi_head_cross_attention.6} parent=5 // pred_fallthru
      _
  $region6: #{multi_head_cross_attention.6} parent=0 // loop_footer
    %s13 = sadd.s32 1, %s9
  $region7: #{multi_head_cross_attention.6} parent=0 // loop_footer_branch
    %8 = sbr.rel target = $region3
  $region8: #{multi_head_cross_attention.6} parent=0 // loop_exit
    _

</llo_original>
